<compile_context>
chip_gen: v6e
topology: v6e:2x2x1
jax: 0.10.0
libtpu: 0.0.40
codegen_flags: <defaults>
</compile_context>

<pallas_src>
import math

import numpy as np
import jax
import jax.numpy as jnp
from jax.experimental import pallas as pl
from jax.experimental.pallas import tpu as pltpu

# ----------------------------- config ---------------------------------------
BATCH = 2
SEQ = 8
D_MODEL = 32
HEAD_DIM = 8
NUM_HEADS = D_MODEL // HEAD_DIM
DECAY_LOW_RANK = 8
GATE_LOW_RANK = 16
A_LOW_RANK = 8
MID_DIM = DECAY_LOW_RANK + A_LOW_RANK + GATE_LOW_RANK      # 32
NORM_EPS = 1e-5
GN_EPS = HEAD_DIM * NORM_EPS          # fla GroupNorm eps = head_dim * norm_eps
L2_EPS = 1e-6                         # eps used inside l2_norm
LAYER_IDX = 0                         # layer 0: v_first = v (no v_lora)

_HI = jax.lax.Precision.HIGHEST       # used only by the pure-JAX reference


# ------------------------- the fused Pallas kernel ---------------------------
def _rwkv7_kernel(x_ref, w1_ref, w2_ref, wb_ref, ab_ref, kk_ref, ka_ref,
                  rk_ref, gnw_ref, gnb_ref, ow_ref, out_ref):
    """One batch element end-to-end.

    x_ref:  (T, D)              hidden states of this batch element (f32).
    w1_ref: (2D, 3D+MID) bf16   [x ; delta] -> [r | k | v | w1 | a1 | g1].
    w2_ref: (MID, 3D)    bf16   block-diagonal [w_lora2 | a_lora2 | g_lora2].
    wb/ab/kk/ka/rk/gnw/gnb: (1, D) f32 row parameters.
    ow_ref: (D, D) bf16         o_proj weight (stored (in, out)).
    out_ref:(T, D) f32          final output rows for this batch element.
    """
    D, HD, T = D_MODEL, HEAD_DIM, SEQ

    # ---- hoisted lane-index constants (built once, reused everywhere) -------
    lane1 = jax.lax.broadcasted_iota(jnp.int32, (1, D), 1)
    lane_mod = lane1 % HD
    # butterfly masks for the per-head (HD-lane segment) sum
    seg_masks = []
    seg = HD
    while seg > 1:
        seg_masks.append((lane1 % seg) < (seg // 2))
        seg //= 2
    # per-value-index lane selectors for the readout diagonal extraction
    dsel_masks = [lane_mod == j for j in range(HD)]
    # value-index selector matrix: row v keeps only lanes with (lane % HD) == v
    rowi = jax.lax.broadcasted_iota(jnp.int32, (HD, D), 0)
    lanei = jax.lax.broadcasted_iota(jnp.int32, (HD, D), 1)
    avi = ((lanei % HD) == rowi).astype(jnp.float32)
    rowT = jax.lax.broadcasted_iota(jnp.int32, (T, D), 0)

    def head_sum(y):
        """Exact-f32 sum over each HEAD_DIM-lane segment, broadcast back to
        every lane of the segment.  3 x (roll + select + add): XLU/VPU only,
        no MXU round-trip on the recurrence's critical path."""
        s = HD
        for m in seg_masks:
            h = s // 2
            up = pltpu.roll(y, shift=D - h, axis=1)   # lane i <- lane i + h
            dn = pltpu.roll(y, shift=h, axis=1)       # lane i <- lane i - h
            y = y + jnp.where(m, up, dn)
            s = h
        return y

    # ---- time shift + token mix + fused projections / LoRA stacks -----------
    x = x_ref[...]                                               # (T, D) f32
    shifted = jnp.concatenate([jnp.zeros((1, D), x.dtype), x[:T - 1, :]],
                              axis=0)
    delta = shifted - x

    # xs_i = x + x_x[i]*delta  =>  [x | delta] @ [[W_cat], [x_x-scaled W_cat]]
    xin = jnp.concatenate([x, delta], axis=1).astype(jnp.bfloat16)      # (T,2D)
    h1 = jnp.dot(xin, w1_ref[...], preferred_element_type=jnp.float32)  # (T,128)

    r = h1[:, 0 * D:1 * D]
    k = h1[:, 1 * D:2 * D]
    v = h1[:, 2 * D:3 * D]

    # LoRA mid activations selected by lane index (tanh | identity | sigmoid)
    mid_in = h1[:, 3 * D:3 * D + MID_DIM]
    mlane = jax.lax.broadcasted_iota(jnp.int32, mid_in.shape, 1)
    mid = jnp.where(mlane < DECAY_LOW_RANK, jnp.tanh(mid_in),
                    jnp.where(mlane < DECAY_LOW_RANK + A_LOW_RANK, mid_in,
                              jax.nn.sigmoid(mid_in)))
    h2 = jnp.dot(mid.astype(jnp.bfloat16), w2_ref[...],
                 preferred_element_type=jnp.float32)             # (T, 3D)

    decay = jnp.exp(-math.exp(-0.5)
                    * jax.nn.sigmoid(h2[:, 0 * D:1 * D] + wb_ref[...]))
    a_gate = jax.nn.sigmoid(h2[:, 1 * D:2 * D] + ab_ref[...])
    g = h2[:, 2 * D:3 * D]

    # per-head l2 norm of k*k_k, k modulation, delta-rule a/b terms
    kkr = k * kk_ref[...]
    kk = kkr * jax.lax.rsqrt(head_sum(kkr * kkr) + L2_EPS)
    k_mod = k + (k * (a_gate - 1.0)) * ka_ref[...]
    na = -kk
    bb = kk * a_gate

    # ---- RWKV7 generalized delta-rule recurrence (the only serial part) -----
    # state layout: rows = value index (HD), lanes = head*HD + key index (D)
    S = jnp.zeros((HD, D), jnp.float32)
    o = jnp.zeros((T, D), jnp.float32)
    # TODO(synk): for production T, switch to lax.fori_loop(..., unroll=k) and
    #             the chunked/WY delta-rule form so per-chunk work becomes
    #             >=128-wide MXU matmuls instead of a per-step scan.
    for t in range(T):
        d_t = decay[t:t + 1, :]
        na_t = na[t:t + 1, :]
        b_t = bb[t:t + 1, :]
        # v k^T contribution in state layout (off the serial critical path)
        vk_t = head_sum(avi * v[t:t + 1, :]) * k_mod[t:t + 1, :]
        # (S a) per head, broadcast over the key index (critical path: XLU/VPU)
        sa = head_sum(S * na_t)
        S = S * d_t + sa * b_t + vk_t
        # readout o_t = S_t r_t (independent of step t+1's dependence chain)
        hs = head_sum(S * r[t:t + 1, :])          # lane(h,*) = o[t, h, row]
        o_vec = jnp.zeros((1, D), jnp.float32)
        for j in range(HD):
            o_vec = o_vec + jnp.where(dsel_masks[j], hs[j:j + 1, :], 0.0)
        o = jnp.where(rowT == t, o_vec, o)

    # ---- GroupNorm(num_heads groups) + bonus + gate + o_proj ----------------
    inv_hd = 1.0 / HD
    mu = head_sum(o) * inv_hd
    xc = o - mu
    var = head_sum(xc * xc) * inv_hd
    gn = xc * jax.lax.rsqrt(var + GN_EPS) * gnw_ref[...] + gnb_ref[...]
    bonus = head_sum(r * k_mod * rk_ref[...]) * v
    og = (gn + bonus) * g
    out_ref[...] = jnp.dot(og.astype(jnp.bfloat16), ow_ref[...],
                           preferred_element_type=jnp.float32)


# ------------------------- one-time weight fusion ----------------------------
def prepare_weights(params):
    """Parameter-only fusion, done ONCE outside the forward path."""
    D = D_MODEL
    xx = params["x_x"]
    w1x = jnp.concatenate([params["r_w"], params["k_w"], params["v_w"],
                           params["w_lora1"], params["a_lora1"],
                           params["g_lora1"]], axis=1)
    w1d = jnp.concatenate([xx[0][:, None] * params["r_w"],
                           xx[2][:, None] * params["k_w"],
                           xx[3][:, None] * params["v_w"],
                           xx[1][:, None] * params["w_lora1"],
                           xx[4][:, None] * params["a_lora1"],
                           xx[5][:, None] * params["g_lora1"]], axis=1)
    w1 = jnp.concatenate([w1x, w1d], axis=0).astype(jnp.bfloat16)   # (2D, 128)

    w2 = jnp.zeros((MID_DIM, 3 * D), jnp.float32)
    w2 = w2.at[:DECAY_LOW_RANK, 0 * D:1 * D].set(params["w_lora2"])
    w2 = w2.at[DECAY_LOW_RANK:DECAY_LOW_RANK + A_LOW_RANK,
               1 * D:2 * D].set(params["a_lora2"])
    w2 = w2.at[DECAY_LOW_RANK + A_LOW_RANK:, 2 * D:3 * D].set(params["g_lora2"])

    row = lambda p: jnp.asarray(p, jnp.float32).reshape(1, D)
    return dict(w1=w1, w2=w2.astype(jnp.bfloat16),
                o_w=params["o_w"].astype(jnp.bfloat16),
                w_b=row(params["w_lora_b"]), a_b=row(params["a_lora_b"]),
                k_k=row(params["k_k"]), k_a=row(params["k_a"]),
                r_k=row(params["r_k"]),
                gn_w=row(params["gn_w"]), gn_b=row(params["gn_b"]))


# ------------------------- forward (single fused kernel) ---------------------
@jax.jit
def rwkv7_forward(prep, x):
    B, T, D = x.shape
    full = lambda shape: pl.BlockSpec(shape, lambda b: (0,) * len(shape))
    in_specs = [
        pl.BlockSpec((None, T, D), lambda b: (b, 0, 0)),      # x (per batch)
        full((2 * D, 3 * D + MID_DIM)),                       # w1
        full((MID_DIM, 3 * D)),                               # w2
        full((1, D)), full((1, D)),                           # w_lora_b, a_lora_b
        full((1, D)), full((1, D)), full((1, D)),             # k_k, k_a, r_k
        full((1, D)), full((1, D)),                           # gn_w, gn_b
        full((D, D)),                                         # o_w
    ]
    return pl.pallas_call(
        _rwkv7_kernel,
        out_shape=jax.ShapeDtypeStruct((B, T, D), jnp.float32),
        grid=(B,),
        in_specs=in_specs,
        out_specs=pl.BlockSpec((None, T, D), lambda b: (b, 0, 0)),
        compiler_params=pltpu.CompilerParams(
            dimension_semantics=("parallel",)),
    )(x, prep["w1"], prep["w2"], prep["w_b"], prep["a_b"],
      prep["k_k"], prep["k_a"], prep["r_k"], prep["gn_w"], prep["gn_b"],
      prep["o_w"])


# ------------------------- parameter init (deterministic) --------------------
def init_params(key):
    ks = jax.random.split(key, 18)

    def lin(k, fan_in, fan_out):
        # xavier_uniform with gain 2**-2.5, stored as (in, out) so x @ W works.
        limit = (2 ** -2.5) * math.sqrt(6.0 / (fan_in + fan_out))
        return jax.random.uniform(k, (fan_in, fan_out), jnp.float32, -limit, limit)

    p = {}
    p["x_x"] = jax.random.uniform(ks[0], (6, D_MODEL), jnp.float32, 0.0, 1.0)
    p["k_k"] = 0.8 + 0.5 * jax.random.normal(ks[1], (D_MODEL,), jnp.float32)
    p["k_a"] = 0.5 * jax.random.normal(ks[2], (D_MODEL,), jnp.float32)
    p["r_k"] = 0.5 * jax.random.normal(ks[3], (NUM_HEADS, HEAD_DIM), jnp.float32)
    p["r_w"] = lin(ks[4], D_MODEL, D_MODEL)
    p["k_w"] = lin(ks[5], D_MODEL, D_MODEL)
    p["v_w"] = lin(ks[6], D_MODEL, D_MODEL)
    p["o_w"] = lin(ks[7], D_MODEL, D_MODEL)
    p["w_lora1"] = lin(ks[8], D_MODEL, DECAY_LOW_RANK)
    p["w_lora2"] = lin(ks[9], DECAY_LOW_RANK, D_MODEL)
    p["w_lora_b"] = 0.1 * jax.random.normal(ks[10], (D_MODEL,), jnp.float32)
    p["a_lora1"] = lin(ks[11], D_MODEL, A_LOW_RANK)
    p["a_lora2"] = lin(ks[12], A_LOW_RANK, D_MODEL)
    p["a_lora_b"] = 0.1 * jax.random.normal(ks[13], (D_MODEL,), jnp.float32)
    p["g_lora1"] = lin(ks[14], D_MODEL, GATE_LOW_RANK)
    p["g_lora2"] = lin(ks[15], GATE_LOW_RANK, D_MODEL)   # g_lora has bias=False
    p["gn_w"] = 1.0 + 0.1 * jax.random.normal(ks[16], (D_MODEL,), jnp.float32)
    p["gn_b"] = 0.1 * jax.random.normal(ks[17], (D_MODEL,), jnp.float32)
    return p


# ------------------------- pure-JAX f32 reference -----------------------------
def rwkv7_forward_reference(params, x):
    B, T, D = x.shape
    H, HD = NUM_HEADS, HEAD_DIM
    mm = lambda a, w: jnp.dot(a, w, precision=_HI)

    shifted = jnp.concatenate([jnp.zeros((B, 1, D), x.dtype), x[:, :-1]], axis=1)
    delta = shifted - x
    xx = params["x_x"]
    xr = x + delta * xx[0]
    xw = x + delta * xx[1]
    xk = x + delta * xx[2]
    xv = x + delta * xx[3]
    xa = x + delta * xx[4]
    xg = x + delta * xx[5]

    r = mm(xr, params["r_w"])
    k = mm(xk, params["k_w"])
    v = mm(xv, params["v_w"])
    w_log = -math.exp(-0.5) * jax.nn.sigmoid(
        mm(jnp.tanh(mm(xw, params["w_lora1"])), params["w_lora2"])
        + params["w_lora_b"])
    a_gate = jax.nn.sigmoid(
        mm(mm(xa, params["a_lora1"]), params["a_lora2"]) + params["a_lora_b"])
    g = mm(jax.nn.sigmoid(mm(xg, params["g_lora1"])), params["g_lora2"])

    kk = (k * params["k_k"]).reshape(B, T, H, HD)
    kk = kk * jax.lax.rsqrt(jnp.sum(kk * kk, axis=-1, keepdims=True) + L2_EPS)
    kk = kk.reshape(B, T, D)
    k_mod = k + (k * (a_gate - 1.0)) * params["k_a"]

    per_head = lambda t: t.reshape(B, T, H, HD)
    rh, wh, kh, vh = per_head(r), per_head(w_log), per_head(k_mod), per_head(v)
    ah, bh = per_head(-kk), per_head(kk * a_gate)
    decay = jnp.exp(wh)

    def step(S, inp):
        r_t, d_t, k_t, v_t, a_t, b_t = inp                 # each (B,H,HD)
        tmp = jnp.einsum('bhvk,bhk->bhv', S, a_t, precision=_HI)
        S = (S * d_t[:, :, None, :]
             + tmp[..., None] * b_t[:, :, None, :]
             + v_t[..., None] * k_t[:, :, None, :])
        o_t = jnp.einsum('bhvk,bhk->bhv', S, r_t, precision=_HI)
        return S, o_t

    S0 = jnp.zeros((B, H, HD, HD), jnp.float32)
    xs = tuple(jnp.moveaxis(t, 1, 0) for t in (rh, decay, kh, vh, ah, bh))
    _, o = jax.lax.scan(step, S0, xs)
    o = jnp.moveaxis(o, 0, 1)                              # (B,T,H,HD)

    mu = jnp.mean(o, axis=-1, keepdims=True)
    var = jnp.mean((o - mu) ** 2, axis=-1, keepdims=True)
    gn = (o - mu) * jax.lax.rsqrt(var + GN_EPS)
    gn = gn * params["gn_w"].reshape(1, 1, H, HD) + params["gn_b"].reshape(1, 1, H, HD)

    bonus = jnp.sum(rh * kh * params["r_k"][None, None], axis=-1, keepdims=True) * vh
    o = (gn + bonus).reshape(B, T, D)
    o = mm((o * g).reshape(B * T, D), params["o_w"]).reshape(B, T, D)
    return o


# ------------------------- main ------------------------------------------------
if __name__ == "__main__":
    key = jax.random.PRNGKey(0)
    kp, kx = jax.random.split(key)
    params = init_params(kp)
    x = jax.random.normal(kx, (BATCH, SEQ, D_MODEL), jnp.float32)

    prep = prepare_weights(params)          # parameter-only fusion, done once

    out = jax.block_until_ready(rwkv7_forward(prep, x))
    ref = jax.block_until_ready(rwkv7_forward_reference(params, x))

    assert out.shape == (BATCH, SEQ, D_MODEL)
    max_err = float(np.max(np.abs(np.asarray(out) - np.asarray(ref))))
    # All routing / reductions are exact f32 (rolls + adds); the only deltas vs
    # the f32 reference come from the bf16-input / f32-accumulate MXU GEMMs.
    assert np.allclose(np.asarray(out), np.asarray(ref), atol=1e-2, rtol=1e-2), max_err
    print("KERNEL_OK")
</pallas_src>

<mosaic_0001>
module attributes {stable_mosaic.version = 11 : i64} {
  func.func @_rwkv7_kernel(%arg0: i32, %arg1: memref<1x8x32xf32, #tpu.memory_space<vmem>>, %arg2: memref<64x128xbf16, #tpu.memory_space<vmem>>, %arg3: memref<32x96xbf16, #tpu.memory_space<vmem>>, %arg4: memref<1x32xf32, #tpu.memory_space<vmem>>, %arg5: memref<1x32xf32, #tpu.memory_space<vmem>>, %arg6: memref<1x32xf32, #tpu.memory_space<vmem>>, %arg7: memref<1x32xf32, #tpu.memory_space<vmem>>, %arg8: memref<1x32xf32, #tpu.memory_space<vmem>>, %arg9: memref<1x32xf32, #tpu.memory_space<vmem>>, %arg10: memref<1x32xf32, #tpu.memory_space<vmem>>, %arg11: memref<32x32xbf16, #tpu.memory_space<vmem>>, %arg12: memref<1x8x32xf32, #tpu.memory_space<vmem>>) attributes {dimension_semantics = [#tpu.dimension_semantics<parallel>], iteration_bounds = array<i64: 2>, scalar_prefetch = 0 : i64, scratch_operands = 0 : i64, tpu.core_type = #tpu.core_type<tc>, window_params = [{transform_indices = @transform_0, window_bounds = array<i64: 1, 8, 32>}, {pipeline_mode = #tpu.pipeline_mode<synchronous>, transform_indices = @transform_1, window_bounds = array<i64: 64, 128>}, {pipeline_mode = #tpu.pipeline_mode<synchronous>, transform_indices = @transform_2, window_bounds = array<i64: 32, 96>}, {pipeline_mode = #tpu.pipeline_mode<synchronous>, transform_indices = @transform_3, window_bounds = array<i64: 1, 32>}, {pipeline_mode = #tpu.pipeline_mode<synchronous>, transform_indices = @transform_4, window_bounds = array<i64: 1, 32>}, {pipeline_mode = #tpu.pipeline_mode<synchronous>, transform_indices = @transform_5, window_bounds = array<i64: 1, 32>}, {pipeline_mode = #tpu.pipeline_mode<synchronous>, transform_indices = @transform_6, window_bounds = array<i64: 1, 32>}, {pipeline_mode = #tpu.pipeline_mode<synchronous>, transform_indices = @transform_7, window_bounds = array<i64: 1, 32>}, {pipeline_mode = #tpu.pipeline_mode<synchronous>, transform_indices = @transform_8, window_bounds = array<i64: 1, 32>}, {pipeline_mode = #tpu.pipeline_mode<synchronous>, transform_indices = @transform_9, window_bounds = array<i64: 1, 32>}, {pipeline_mode = #tpu.pipeline_mode<synchronous>, transform_indices = @transform_10, window_bounds = array<i64: 32, 32>}, {transform_indices = @transform_11, window_bounds = array<i64: 1, 8, 32>}]} {
    %0 = tpu.iota {dimensions = array<i32: 1>} : vector<1x32xi32>
    %c8_i32 = arith.constant 8 : i32
    %c0_i32 = arith.constant 0 : i32
    %1 = arith.cmpi eq, %c8_i32, %c0_i32 : i32
    %c1_i32 = arith.constant 1 : i32
    %2 = arith.select %1, %c1_i32, %c8_i32 : i32
    %3 = vector.broadcast %2 : i32 to vector<1x32xi32>
    %4 = arith.remsi %0, %3 : vector<1x32xi32>
    %c0_i32_0 = arith.constant 0 : i32
    %5 = vector.broadcast %c0_i32_0 : i32 to vector<1x32xi32>
    %6 = arith.cmpi ne, %4, %5 : vector<1x32xi32>
    %c0_i32_1 = arith.constant 0 : i32
    %7 = vector.broadcast %c0_i32_1 : i32 to vector<1x32xi32>
    %8 = arith.cmpi slt, %4, %7 : vector<1x32xi32>
    %c0_i32_2 = arith.constant 0 : i32
    %9 = arith.cmpi slt, %2, %c0_i32_2 : i32
    %10 = vector.broadcast %9 : i1 to vector<1x32xi1>
    %11 = vector.broadcast %10 : vector<1x32xi1> to vector<1x32xi1>
    %12 = arith.xori %8, %11 : vector<1x32xi1>
    %13 = arith.andi %12, %6 : vector<1x32xi1>
    %14 = vector.broadcast %2 : i32 to vector<1x32xi32>
    %15 = arith.addi %4, %14 : vector<1x32xi32>
    %16 = arith.select %13, %15, %4 : vector<1x32xi1>, vector<1x32xi32>
    %c8_i32_3 = arith.constant 8 : i32
    %c0_i32_4 = arith.constant 0 : i32
    %17 = arith.cmpi eq, %c8_i32_3, %c0_i32_4 : i32
    %c1_i32_5 = arith.constant 1 : i32
    %18 = arith.select %17, %c1_i32_5, %c8_i32_3 : i32
    %19 = vector.broadcast %18 : i32 to vector<1x32xi32>
    %20 = arith.remsi %0, %19 : vector<1x32xi32>
    %c0_i32_6 = arith.constant 0 : i32
    %21 = vector.broadcast %c0_i32_6 : i32 to vector<1x32xi32>
    %22 = arith.cmpi ne, %20, %21 : vector<1x32xi32>
    %c0_i32_7 = arith.constant 0 : i32
    %23 = vector.broadcast %c0_i32_7 : i32 to vector<1x32xi32>
    %24 = arith.cmpi slt, %20, %23 : vector<1x32xi32>
    %c0_i32_8 = arith.constant 0 : i32
    %25 = arith.cmpi slt, %18, %c0_i32_8 : i32
    %26 = vector.broadcast %25 : i1 to vector<1x32xi1>
    %27 = vector.broadcast %26 : vector<1x32xi1> to vector<1x32xi1>
    %28 = arith.xori %24, %27 : vector<1x32xi1>
    %29 = arith.andi %28, %22 : vector<1x32xi1>
    %30 = vector.broadcast %18 : i32 to vector<1x32xi32>
    %31 = arith.addi %20, %30 : vector<1x32xi32>
    %32 = arith.select %29, %31, %20 : vector<1x32xi1>, vector<1x32xi32>
    %c4_i32 = arith.constant 4 : i32
    %33 = vector.broadcast %c4_i32 : i32 to vector<1x32xi32>
    %34 = arith.cmpi slt, %32, %33 : vector<1x32xi32>
    %c4_i32_9 = arith.constant 4 : i32
    %c0_i32_10 = arith.constant 0 : i32
    %35 = arith.cmpi eq, %c4_i32_9, %c0_i32_10 : i32
    %c1_i32_11 = arith.constant 1 : i32
    %36 = arith.select %35, %c1_i32_11, %c4_i32_9 : i32
    %37 = vector.broadcast %36 : i32 to vector<1x32xi32>
    %38 = arith.remsi %0, %37 : vector<1x32xi32>
    %c0_i32_12 = arith.constant 0 : i32
    %39 = vector.broadcast %c0_i32_12 : i32 to vector<1x32xi32>
    %40 = arith.cmpi ne, %38, %39 : vector<1x32xi32>
    %c0_i32_13 = arith.constant 0 : i32
    %41 = vector.broadcast %c0_i32_13 : i32 to vector<1x32xi32>
    %42 = arith.cmpi slt, %38, %41 : vector<1x32xi32>
    %c0_i32_14 = arith.constant 0 : i32
    %43 = arith.cmpi slt, %36, %c0_i32_14 : i32
    %44 = vector.broadcast %43 : i1 to vector<1x32xi1>
    %45 = vector.broadcast %44 : vector<1x32xi1> to vector<1x32xi1>
    %46 = arith.xori %42, %45 : vector<1x32xi1>
    %47 = arith.andi %46, %40 : vector<1x32xi1>
    %48 = vector.broadcast %36 : i32 to vector<1x32xi32>
    %49 = arith.addi %38, %48 : vector<1x32xi32>
    %50 = arith.select %47, %49, %38 : vector<1x32xi1>, vector<1x32xi32>
    %c2_i32 = arith.constant 2 : i32
    %51 = vector.broadcast %c2_i32 : i32 to vector<1x32xi32>
    %52 = arith.cmpi slt, %50, %51 : vector<1x32xi32>
    %c2_i32_15 = arith.constant 2 : i32
    %c0_i32_16 = arith.constant 0 : i32
    %53 = arith.cmpi eq, %c2_i32_15, %c0_i32_16 : i32
    %c1_i32_17 = arith.constant 1 : i32
    %54 = arith.select %53, %c1_i32_17, %c2_i32_15 : i32
    %55 = vector.broadcast %54 : i32 to vector<1x32xi32>
    %56 = arith.remsi %0, %55 : vector<1x32xi32>
    %c0_i32_18 = arith.constant 0 : i32
    %57 = vector.broadcast %c0_i32_18 : i32 to vector<1x32xi32>
    %58 = arith.cmpi ne, %56, %57 : vector<1x32xi32>
    %c0_i32_19 = arith.constant 0 : i32
    %59 = vector.broadcast %c0_i32_19 : i32 to vector<1x32xi32>
    %60 = arith.cmpi slt, %56, %59 : vector<1x32xi32>
    %c0_i32_20 = arith.constant 0 : i32
    %61 = arith.cmpi slt, %54, %c0_i32_20 : i32
    %62 = vector.broadcast %61 : i1 to vector<1x32xi1>
    %63 = vector.broadcast %62 : vector<1x32xi1> to vector<1x32xi1>
    %64 = arith.xori %60, %63 : vector<1x32xi1>
    %65 = arith.andi %64, %58 : vector<1x32xi1>
    %66 = vector.broadcast %54 : i32 to vector<1x32xi32>
    %67 = arith.addi %56, %66 : vector<1x32xi32>
    %68 = arith.select %65, %67, %56 : vector<1x32xi1>, vector<1x32xi32>
    %c1_i32_21 = arith.constant 1 : i32
    %69 = vector.broadcast %c1_i32_21 : i32 to vector<1x32xi32>
    %70 = arith.cmpi slt, %68, %69 : vector<1x32xi32>
    %c0_i32_22 = arith.constant 0 : i32
    %71 = vector.broadcast %c0_i32_22 : i32 to vector<1x32xi32>
    %72 = arith.cmpi eq, %16, %71 : vector<1x32xi32>
    %c1_i32_23 = arith.constant 1 : i32
    %73 = vector.broadcast %c1_i32_23 : i32 to vector<1x32xi32>
    %74 = arith.cmpi eq, %16, %73 : vector<1x32xi32>
    %c2_i32_24 = arith.constant 2 : i32
    %75 = vector.broadcast %c2_i32_24 : i32 to vector<1x32xi32>
    %76 = arith.cmpi eq, %16, %75 : vector<1x32xi32>
    %c3_i32 = arith.constant 3 : i32
    %77 = vector.broadcast %c3_i32 : i32 to vector<1x32xi32>
    %78 = arith.cmpi eq, %16, %77 : vector<1x32xi32>
    %c4_i32_25 = arith.constant 4 : i32
    %79 = vector.broadcast %c4_i32_25 : i32 to vector<1x32xi32>
    %80 = arith.cmpi eq, %16, %79 : vector<1x32xi32>
    %c5_i32 = arith.constant 5 : i32
    %81 = vector.broadcast %c5_i32 : i32 to vector<1x32xi32>
    %82 = arith.cmpi eq, %16, %81 : vector<1x32xi32>
    %c6_i32 = arith.constant 6 : i32
    %83 = vector.broadcast %c6_i32 : i32 to vector<1x32xi32>
    %84 = arith.cmpi eq, %16, %83 : vector<1x32xi32>
    %c7_i32 = arith.constant 7 : i32
    %85 = vector.broadcast %c7_i32 : i32 to vector<1x32xi32>
    %86 = arith.cmpi eq, %16, %85 : vector<1x32xi32>
    %87 = tpu.iota {dimensions = array<i32: 0>} : vector<8x32xi32>
    %88 = tpu.iota {dimensions = array<i32: 1>} : vector<8x32xi32>
    %c8_i32_26 = arith.constant 8 : i32
    %c0_i32_27 = arith.constant 0 : i32
    %89 = arith.cmpi eq, %c8_i32_26, %c0_i32_27 : i32
    %c1_i32_28 = arith.constant 1 : i32
    %90 = arith.select %89, %c1_i32_28, %c8_i32_26 : i32
    %91 = vector.broadcast %90 : i32 to vector<8x32xi32>
    %92 = arith.remsi %88, %91 : vector<8x32xi32>
    %c0_i32_29 = arith.constant 0 : i32
    %93 = vector.broadcast %c0_i32_29 : i32 to vector<8x32xi32>
    %94 = arith.cmpi ne, %92, %93 : vector<8x32xi32>
    %c0_i32_30 = arith.constant 0 : i32
    %95 = vector.broadcast %c0_i32_30 : i32 to vector<8x32xi32>
    %96 = arith.cmpi slt, %92, %95 : vector<8x32xi32>
    %c0_i32_31 = arith.constant 0 : i32
    %97 = arith.cmpi slt, %90, %c0_i32_31 : i32
    %98 = vector.broadcast %97 : i1 to vector<8x32xi1>
    %99 = vector.broadcast %98 : vector<8x32xi1> to vector<8x32xi1>
    %100 = arith.xori %96, %99 : vector<8x32xi1>
    %101 = arith.andi %100, %94 : vector<8x32xi1>
    %102 = vector.broadcast %90 : i32 to vector<8x32xi32>
    %103 = arith.addi %92, %102 : vector<8x32xi32>
    %104 = arith.select %101, %103, %92 : vector<8x32xi1>, vector<8x32xi32>
    %105 = arith.cmpi eq, %104, %87 : vector<8x32xi32>
    %106 = arith.extui %105 : vector<8x32xi1> to vector<8x32xi32>
    %107 = arith.sitofp %106 : vector<8x32xi32> to vector<8x32xf32>
    %108 = tpu.iota {dimensions = array<i32: 0>} : vector<8x32xi32>
    %c0 = arith.constant 0 : index
    %c0_32 = arith.constant 0 : index
    %c0_33 = arith.constant 0 : index
    %109 = vector.load %arg1[%c0, %c0_32, %c0_33] : memref<1x8x32xf32, #tpu.memory_space<vmem>>, vector<1x8x32xf32>
    %110 = vector.shape_cast %109 : vector<1x8x32xf32> to vector<8x32xf32>
    %cst = arith.constant 0.000000e+00 : f32
    %111 = vector.broadcast %cst : f32 to vector<1x32xf32>
    %112 = vector.extract_strided_slice %110 {offsets = [0, 0], sizes = [7, 32], strides = [1, 1]} : vector<8x32xf32> to vector<7x32xf32>
    %113 = tpu.concatenate %111, %112 in 0 : vector<1x32xf32>, vector<7x32xf32> -> vector<8x32xf32>
    %114 = arith.subf %113, %110 : vector<8x32xf32>
    %115 = tpu.concatenate %110, %114 in 1 : vector<8x32xf32>, vector<8x32xf32> -> vector<8x64xf32>
    %116 = arith.truncf %115 : vector<8x64xf32> to vector<8x64xbf16>
    %c0_34 = arith.constant 0 : index
    %c0_35 = arith.constant 0 : index
    %117 = vector.load %arg2[%c0_34, %c0_35] : memref<64x128xbf16, #tpu.memory_space<vmem>>, vector<64x128xbf16>
    %cst_36 = arith.constant dense<0.000000e+00> : vector<8x128xf32>
    %118 = tpu.matmul %116, %117, %cst_36 {dimension_numbers = #tpu.dot_dimension_numbers<[1], [0], [0], [1], [0, 0, 1, 1], [], []>} : vector<8x64xbf16>, vector<64x128xbf16>, vector<8x128xf32> -> vector<8x128xf32>
    %119 = vector.extract_strided_slice %118 {offsets = [0, 0], sizes = [8, 32], strides = [1, 1]} : vector<8x128xf32> to vector<8x32xf32>
    %120 = vector.extract_strided_slice %118 {offsets = [0, 32], sizes = [8, 32], strides = [1, 1]} : vector<8x128xf32> to vector<8x32xf32>
    %121 = vector.extract_strided_slice %118 {offsets = [0, 64], sizes = [8, 32], strides = [1, 1]} : vector<8x128xf32> to vector<8x32xf32>
    %122 = vector.extract_strided_slice %118 {offsets = [0, 96], sizes = [8, 32], strides = [1, 1]} : vector<8x128xf32> to vector<8x32xf32>
    %123 = tpu.iota {dimensions = array<i32: 1>} : vector<8x32xi32>
    %c8_i32_37 = arith.constant 8 : i32
    %124 = vector.broadcast %c8_i32_37 : i32 to vector<8x32xi32>
    %125 = arith.cmpi slt, %123, %124 : vector<8x32xi32>
    %126 = math.tanh %122 : vector<8x32xf32>
    %c16_i32 = arith.constant 16 : i32
    %127 = vector.broadcast %c16_i32 : i32 to vector<8x32xi32>
    %128 = arith.cmpi slt, %123, %127 : vector<8x32xi32>
    %129 = arith.negf %122 : vector<8x32xf32>
    %130 = math.exp %129 : vector<8x32xf32>
    %cst_38 = arith.constant 1.000000e+00 : f32
    %131 = vector.broadcast %cst_38 : f32 to vector<8x32xf32>
    %132 = arith.addf %131, %130 : vector<8x32xf32>
    %133 = arith.divf %131, %132 : vector<8x32xf32>
    %134 = arith.select %128, %122, %133 : vector<8x32xi1>, vector<8x32xf32>
    %135 = arith.select %125, %126, %134 : vector<8x32xi1>, vector<8x32xf32>
    %136 = arith.truncf %135 : vector<8x32xf32> to vector<8x32xbf16>
    %c0_39 = arith.constant 0 : index
    %c0_40 = arith.constant 0 : index
    %137 = vector.load %arg3[%c0_39, %c0_40] : memref<32x96xbf16, #tpu.memory_space<vmem>>, vector<32x96xbf16>
    %cst_41 = arith.constant dense<0.000000e+00> : vector<8x96xf32>
    %138 = tpu.matmul %136, %137, %cst_41 {dimension_numbers = #tpu.dot_dimension_numbers<[1], [0], [0], [1], [0, 0, 1, 1], [], []>} : vector<8x32xbf16>, vector<32x96xbf16>, vector<8x96xf32> -> vector<8x96xf32>
    %139 = vector.extract_strided_slice %138 {offsets = [0, 0], sizes = [8, 32], strides = [1, 1]} : vector<8x96xf32> to vector<8x32xf32>
    %c0_42 = arith.constant 0 : index
    %c0_43 = arith.constant 0 : index
    %140 = vector.load %arg4[%c0_42, %c0_43] : memref<1x32xf32, #tpu.memory_space<vmem>>, vector<1x32xf32>
    %141 = vector.broadcast %140 : vector<1x32xf32> to vector<8x32xf32>
    %142 = arith.addf %139, %141 : vector<8x32xf32>
    %143 = arith.negf %142 : vector<8x32xf32>
    %144 = math.exp %143 : vector<8x32xf32>
    %cst_44 = arith.constant 1.000000e+00 : f32
    %145 = vector.broadcast %cst_44 : f32 to vector<8x32xf32>
    %146 = arith.addf %145, %144 : vector<8x32xf32>
    %147 = arith.divf %145, %146 : vector<8x32xf32>
    %cst_45 = arith.constant -0.606530666 : f32
    %148 = vector.broadcast %cst_45 : f32 to vector<8x32xf32>
    %149 = arith.mulf %148, %147 : vector<8x32xf32>
    %150 = math.exp %149 : vector<8x32xf32>
    %151 = vector.extract_strided_slice %138 {offsets = [0, 32], sizes = [8, 32], strides = [1, 1]} : vector<8x96xf32> to vector<8x32xf32>
    %c0_46 = arith.constant 0 : index
    %c0_47 = arith.constant 0 : index
    %152 = vector.load %arg5[%c0_46, %c0_47] : memref<1x32xf32, #tpu.memory_space<vmem>>, vector<1x32xf32>
    %153 = vector.broadcast %152 : vector<1x32xf32> to vector<8x32xf32>
    %154 = arith.addf %151, %153 : vector<8x32xf32>
    %155 = arith.negf %154 : vector<8x32xf32>
    %156 = math.exp %155 : vector<8x32xf32>
    %cst_48 = arith.constant 1.000000e+00 : f32
    %157 = vector.broadcast %cst_48 : f32 to vector<8x32xf32>
    %158 = arith.addf %157, %156 : vector<8x32xf32>
    %159 = arith.divf %157, %158 : vector<8x32xf32>
    %160 = vector.extract_strided_slice %138 {offsets = [0, 64], sizes = [8, 32], strides = [1, 1]} : vector<8x96xf32> to vector<8x32xf32>
    %c0_49 = arith.constant 0 : index
    %c0_50 = arith.constant 0 : index
    %161 = vector.load %arg6[%c0_49, %c0_50] : memref<1x32xf32, #tpu.memory_space<vmem>>, vector<1x32xf32>
    %162 = vector.broadcast %161 : vector<1x32xf32> to vector<8x32xf32>
    %163 = arith.mulf %120, %162 : vector<8x32xf32>
    %164 = arith.mulf %163, %163 : vector<8x32xf32>
    %c28_i32 = arith.constant 28 : i32
    %165 = tpu.dynamic_rotate %164 by %c28_i32 dim 1 : vector<8x32xf32>, i32 -> vector<8x32xf32>
    %c4_i32_51 = arith.constant 4 : i32
    %166 = tpu.dynamic_rotate %164 by %c4_i32_51 dim 1 : vector<8x32xf32>, i32 -> vector<8x32xf32>
    %167 = vector.shape_cast %34 : vector<1x32xi1> to vector<1x32xi1>
    %168 = vector.broadcast %167 : vector<1x32xi1> to vector<8x32xi1>
    %169 = arith.select %168, %165, %166 : vector<8x32xi1>, vector<8x32xf32>
    %170 = arith.addf %164, %169 : vector<8x32xf32>
    %c30_i32 = arith.constant 30 : i32
    %171 = tpu.dynamic_rotate %170 by %c30_i32 dim 1 : vector<8x32xf32>, i32 -> vector<8x32xf32>
    %c2_i32_52 = arith.constant 2 : i32
    %172 = tpu.dynamic_rotate %170 by %c2_i32_52 dim 1 : vector<8x32xf32>, i32 -> vector<8x32xf32>
    %173 = vector.shape_cast %52 : vector<1x32xi1> to vector<1x32xi1>
    %174 = vector.broadcast %173 : vector<1x32xi1> to vector<8x32xi1>
    %175 = arith.select %174, %171, %172 : vector<8x32xi1>, vector<8x32xf32>
    %176 = arith.addf %170, %175 : vector<8x32xf32>
    %c31_i32 = arith.constant 31 : i32
    %177 = tpu.dynamic_rotate %176 by %c31_i32 dim 1 : vector<8x32xf32>, i32 -> vector<8x32xf32>
    %c1_i32_53 = arith.constant 1 : i32
    %178 = tpu.dynamic_rotate %176 by %c1_i32_53 dim 1 : vector<8x32xf32>, i32 -> vector<8x32xf32>
    %179 = vector.shape_cast %70 : vector<1x32xi1> to vector<1x32xi1>
    %180 = vector.broadcast %179 : vector<1x32xi1> to vector<8x32xi1>
    %181 = arith.select %180, %177, %178 : vector<8x32xi1>, vector<8x32xf32>
    %182 = arith.addf %176, %181 : vector<8x32xf32>
    %cst_54 = arith.constant 9.99999997E-7 : f32
    %183 = vector.broadcast %cst_54 : f32 to vector<8x32xf32>
    %184 = arith.addf %182, %183 : vector<8x32xf32>
    %185 = math.rsqrt %184 : vector<8x32xf32>
    %186 = arith.mulf %163, %185 : vector<8x32xf32>
    %cst_55 = arith.constant 1.000000e+00 : f32
    %187 = vector.broadcast %cst_55 : f32 to vector<8x32xf32>
    %188 = arith.subf %159, %187 : vector<8x32xf32>
    %189 = arith.mulf %120, %188 : vector<8x32xf32>
    %c0_56 = arith.constant 0 : index
    %c0_57 = arith.constant 0 : index
    %190 = vector.load %arg7[%c0_56, %c0_57] : memref<1x32xf32, #tpu.memory_space<vmem>>, vector<1x32xf32>
    %191 = vector.broadcast %190 : vector<1x32xf32> to vector<8x32xf32>
    %192 = arith.mulf %189, %191 : vector<8x32xf32>
    %193 = arith.addf %120, %192 : vector<8x32xf32>
    %cst_58 = arith.constant 0.000000e+00 : f32
    %194 = vector.broadcast %cst_58 : f32 to vector<8x32xf32>
    %195 = arith.subf %194, %186 : vector<8x32xf32>
    %196 = arith.mulf %186, %159 : vector<8x32xf32>
    %cst_59 = arith.constant 0.000000e+00 : f32
    %197 = vector.broadcast %cst_59 : f32 to vector<8x32xf32>
    %cst_60 = arith.constant 0.000000e+00 : f32
    %198 = vector.broadcast %cst_60 : f32 to vector<8x32xf32>
    %199 = vector.extract_strided_slice %150 {offsets = [0, 0], sizes = [1, 32], strides = [1, 1]} : vector<8x32xf32> to vector<1x32xf32>
    %200 = vector.extract_strided_slice %195 {offsets = [0, 0], sizes = [1, 32], strides = [1, 1]} : vector<8x32xf32> to vector<1x32xf32>
    %201 = vector.extract_strided_slice %196 {offsets = [0, 0], sizes = [1, 32], strides = [1, 1]} : vector<8x32xf32> to vector<1x32xf32>
    %202 = vector.extract_strided_slice %121 {offsets = [0, 0], sizes = [1, 32], strides = [1, 1]} : vector<8x32xf32> to vector<1x32xf32>
    %203 = vector.broadcast %202 : vector<1x32xf32> to vector<8x32xf32>
    %204 = arith.mulf %107, %203 : vector<8x32xf32>
    %c28_i32_61 = arith.constant 28 : i32
    %205 = tpu.dynamic_rotate %204 by %c28_i32_61 dim 1 : vector<8x32xf32>, i32 -> vector<8x32xf32>
    %c4_i32_62 = arith.constant 4 : i32
    %206 = tpu.dynamic_rotate %204 by %c4_i32_62 dim 1 : vector<8x32xf32>, i32 -> vector<8x32xf32>
    %207 = vector.shape_cast %34 : vector<1x32xi1> to vector<1x32xi1>
    %208 = vector.broadcast %207 : vector<1x32xi1> to vector<8x32xi1>
    %209 = arith.select %208, %205, %206 : vector<8x32xi1>, vector<8x32xf32>
    %210 = arith.addf %204, %209 : vector<8x32xf32>
    %c30_i32_63 = arith.constant 30 : i32
    %211 = tpu.dynamic_rotate %210 by %c30_i32_63 dim 1 : vector<8x32xf32>, i32 -> vector<8x32xf32>
    %c2_i32_64 = arith.constant 2 : i32
    %212 = tpu.dynamic_rotate %210 by %c2_i32_64 dim 1 : vector<8x32xf32>, i32 -> vector<8x32xf32>
    %213 = vector.shape_cast %52 : vector<1x32xi1> to vector<1x32xi1>
    %214 = vector.broadcast %213 : vector<1x32xi1> to vector<8x32xi1>
    %215 = arith.select %214, %211, %212 : vector<8x32xi1>, vector<8x32xf32>
    %216 = arith.addf %210, %215 : vector<8x32xf32>
    %c31_i32_65 = arith.constant 31 : i32
    %217 = tpu.dynamic_rotate %216 by %c31_i32_65 dim 1 : vector<8x32xf32>, i32 -> vector<8x32xf32>
    %c1_i32_66 = arith.constant 1 : i32
    %218 = tpu.dynamic_rotate %216 by %c1_i32_66 dim 1 : vector<8x32xf32>, i32 -> vector<8x32xf32>
    %219 = vector.shape_cast %70 : vector<1x32xi1> to vector<1x32xi1>
    %220 = vector.broadcast %219 : vector<1x32xi1> to vector<8x32xi1>
    %221 = arith.select %220, %217, %218 : vector<8x32xi1>, vector<8x32xf32>
    %222 = arith.addf %216, %221 : vector<8x32xf32>
    %223 = vector.extract_strided_slice %193 {offsets = [0, 0], sizes = [1, 32], strides = [1, 1]} : vector<8x32xf32> to vector<1x32xf32>
    %224 = vector.broadcast %223 : vector<1x32xf32> to vector<8x32xf32>
    %225 = arith.mulf %222, %224 : vector<8x32xf32>
    %226 = vector.broadcast %200 : vector<1x32xf32> to vector<8x32xf32>
    %227 = arith.mulf %197, %226 : vector<8x32xf32>
    %c28_i32_67 = arith.constant 28 : i32
    %228 = tpu.dynamic_rotate %227 by %c28_i32_67 dim 1 : vector<8x32xf32>, i32 -> vector<8x32xf32>
    %c4_i32_68 = arith.constant 4 : i32
    %229 = tpu.dynamic_rotate %227 by %c4_i32_68 dim 1 : vector<8x32xf32>, i32 -> vector<8x32xf32>
    %230 = vector.shape_cast %34 : vector<1x32xi1> to vector<1x32xi1>
    %231 = vector.broadcast %230 : vector<1x32xi1> to vector<8x32xi1>
    %232 = arith.select %231, %228, %229 : vector<8x32xi1>, vector<8x32xf32>
    %233 = arith.addf %227, %232 : vector<8x32xf32>
    %c30_i32_69 = arith.constant 30 : i32
    %234 = tpu.dynamic_rotate %233 by %c30_i32_69 dim 1 : vector<8x32xf32>, i32 -> vector<8x32xf32>
    %c2_i32_70 = arith.constant 2 : i32
    %235 = tpu.dynamic_rotate %233 by %c2_i32_70 dim 1 : vector<8x32xf32>, i32 -> vector<8x32xf32>
    %236 = vector.shape_cast %52 : vector<1x32xi1> to vector<1x32xi1>
    %237 = vector.broadcast %236 : vector<1x32xi1> to vector<8x32xi1>
    %238 = arith.select %237, %234, %235 : vector<8x32xi1>, vector<8x32xf32>
    %239 = arith.addf %233, %238 : vector<8x32xf32>
    %c31_i32_71 = arith.constant 31 : i32
    %240 = tpu.dynamic_rotate %239 by %c31_i32_71 dim 1 : vector<8x32xf32>, i32 -> vector<8x32xf32>
    %c1_i32_72 = arith.constant 1 : i32
    %241 = tpu.dynamic_rotate %239 by %c1_i32_72 dim 1 : vector<8x32xf32>, i32 -> vector<8x32xf32>
    %242 = vector.shape_cast %70 : vector<1x32xi1> to vector<1x32xi1>
    %243 = vector.broadcast %242 : vector<1x32xi1> to vector<8x32xi1>
    %244 = arith.select %243, %240, %241 : vector<8x32xi1>, vector<8x32xf32>
    %245 = arith.addf %239, %244 : vector<8x32xf32>
    %246 = vector.broadcast %199 : vector<1x32xf32> to vector<8x32xf32>
    %247 = arith.mulf %197, %246 : vector<8x32xf32>
    %248 = vector.broadcast %201 : vector<1x32xf32> to vector<8x32xf32>
    %249 = arith.mulf %245, %248 : vector<8x32xf32>
    %250 = arith.addf %247, %249 : vector<8x32xf32>
    %251 = arith.addf %250, %225 : vector<8x32xf32>
    %252 = vector.extract_strided_slice %119 {offsets = [0, 0], sizes = [1, 32], strides = [1, 1]} : vector<8x32xf32> to vector<1x32xf32>
    %253 = vector.broadcast %252 : vector<1x32xf32> to vector<8x32xf32>
    %254 = arith.mulf %251, %253 : vector<8x32xf32>
    %c28_i32_73 = arith.constant 28 : i32
    %255 = tpu.dynamic_rotate %254 by %c28_i32_73 dim 1 : vector<8x32xf32>, i32 -> vector<8x32xf32>
    %c4_i32_74 = arith.constant 4 : i32
    %256 = tpu.dynamic_rotate %254 by %c4_i32_74 dim 1 : vector<8x32xf32>, i32 -> vector<8x32xf32>
    %257 = vector.shape_cast %34 : vector<1x32xi1> to vector<1x32xi1>
    %258 = vector.broadcast %257 : vector<1x32xi1> to vector<8x32xi1>
    %259 = arith.select %258, %255, %256 : vector<8x32xi1>, vector<8x32xf32>
    %260 = arith.addf %254, %259 : vector<8x32xf32>
    %c30_i32_75 = arith.constant 30 : i32
    %261 = tpu.dynamic_rotate %260 by %c30_i32_75 dim 1 : vector<8x32xf32>, i32 -> vector<8x32xf32>
    %c2_i32_76 = arith.constant 2 : i32
    %262 = tpu.dynamic_rotate %260 by %c2_i32_76 dim 1 : vector<8x32xf32>, i32 -> vector<8x32xf32>
    %263 = vector.shape_cast %52 : vector<1x32xi1> to vector<1x32xi1>
    %264 = vector.broadcast %263 : vector<1x32xi1> to vector<8x32xi1>
    %265 = arith.select %264, %261, %262 : vector<8x32xi1>, vector<8x32xf32>
    %266 = arith.addf %260, %265 : vector<8x32xf32>
    %c31_i32_77 = arith.constant 31 : i32
    %267 = tpu.dynamic_rotate %266 by %c31_i32_77 dim 1 : vector<8x32xf32>, i32 -> vector<8x32xf32>
    %c1_i32_78 = arith.constant 1 : i32
    %268 = tpu.dynamic_rotate %266 by %c1_i32_78 dim 1 : vector<8x32xf32>, i32 -> vector<8x32xf32>
    %269 = vector.shape_cast %70 : vector<1x32xi1> to vector<1x32xi1>
    %270 = vector.broadcast %269 : vector<1x32xi1> to vector<8x32xi1>
    %271 = arith.select %270, %267, %268 : vector<8x32xi1>, vector<8x32xf32>
    %272 = arith.addf %266, %271 : vector<8x32xf32>
    %cst_79 = arith.constant 0.000000e+00 : f32
    %273 = vector.broadcast %cst_79 : f32 to vector<1x32xf32>
    %274 = vector.extract_strided_slice %272 {offsets = [0, 0], sizes = [1, 32], strides = [1, 1]} : vector<8x32xf32> to vector<1x32xf32>
    %cst_80 = arith.constant 0.000000e+00 : f32
    %275 = vector.broadcast %cst_80 : f32 to vector<1x32xf32>
    %276 = arith.select %72, %274, %275 : vector<1x32xi1>, vector<1x32xf32>
    %277 = arith.addf %273, %276 : vector<1x32xf32>
    %278 = vector.extract_strided_slice %272 {offsets = [1, 0], sizes = [1, 32], strides = [1, 1]} : vector<8x32xf32> to vector<1x32xf32>
    %cst_81 = arith.constant 0.000000e+00 : f32
    %279 = vector.broadcast %cst_81 : f32 to vector<1x32xf32>
    %280 = arith.select %74, %278, %279 : vector<1x32xi1>, vector<1x32xf32>
    %281 = arith.addf %277, %280 : vector<1x32xf32>
    %282 = vector.extract_strided_slice %272 {offsets = [2, 0], sizes = [1, 32], strides = [1, 1]} : vector<8x32xf32> to vector<1x32xf32>
    %cst_82 = arith.constant 0.000000e+00 : f32
    %283 = vector.broadcast %cst_82 : f32 to vector<1x32xf32>
    %284 = arith.select %76, %282, %283 : vector<1x32xi1>, vector<1x32xf32>
    %285 = arith.addf %281, %284 : vector<1x32xf32>
    %286 = vector.extract_strided_slice %272 {offsets = [3, 0], sizes = [1, 32], strides = [1, 1]} : vector<8x32xf32> to vector<1x32xf32>
    %cst_83 = arith.constant 0.000000e+00 : f32
    %287 = vector.broadcast %cst_83 : f32 to vector<1x32xf32>
    %288 = arith.select %78, %286, %287 : vector<1x32xi1>, vector<1x32xf32>
    %289 = arith.addf %285, %288 : vector<1x32xf32>
    %290 = vector.extract_strided_slice %272 {offsets = [4, 0], sizes = [1, 32], strides = [1, 1]} : vector<8x32xf32> to vector<1x32xf32>
    %cst_84 = arith.constant 0.000000e+00 : f32
    %291 = vector.broadcast %cst_84 : f32 to vector<1x32xf32>
    %292 = arith.select %80, %290, %291 : vector<1x32xi1>, vector<1x32xf32>
    %293 = arith.addf %289, %292 : vector<1x32xf32>
    %294 = vector.extract_strided_slice %272 {offsets = [5, 0], sizes = [1, 32], strides = [1, 1]} : vector<8x32xf32> to vector<1x32xf32>
    %cst_85 = arith.constant 0.000000e+00 : f32
    %295 = vector.broadcast %cst_85 : f32 to vector<1x32xf32>
    %296 = arith.select %82, %294, %295 : vector<1x32xi1>, vector<1x32xf32>
    %297 = arith.addf %293, %296 : vector<1x32xf32>
    %298 = vector.extract_strided_slice %272 {offsets = [6, 0], sizes = [1, 32], strides = [1, 1]} : vector<8x32xf32> to vector<1x32xf32>
    %cst_86 = arith.constant 0.000000e+00 : f32
    %299 = vector.broadcast %cst_86 : f32 to vector<1x32xf32>
    %300 = arith.select %84, %298, %299 : vector<1x32xi1>, vector<1x32xf32>
    %301 = arith.addf %297, %300 : vector<1x32xf32>
    %302 = vector.extract_strided_slice %272 {offsets = [7, 0], sizes = [1, 32], strides = [1, 1]} : vector<8x32xf32> to vector<1x32xf32>
    %cst_87 = arith.constant 0.000000e+00 : f32
    %303 = vector.broadcast %cst_87 : f32 to vector<1x32xf32>
    %304 = arith.select %86, %302, %303 : vector<1x32xi1>, vector<1x32xf32>
    %305 = arith.addf %301, %304 : vector<1x32xf32>
    %c0_i32_88 = arith.constant 0 : i32
    %306 = vector.broadcast %c0_i32_88 : i32 to vector<8x32xi32>
    %307 = arith.cmpi eq, %108, %306 : vector<8x32xi32>
    %308 = vector.shape_cast %305 : vector<1x32xf32> to vector<1x32xf32>
    %309 = vector.broadcast %308 : vector<1x32xf32> to vector<8x32xf32>
    %310 = arith.select %307, %309, %198 : vector<8x32xi1>, vector<8x32xf32>
    %311 = vector.extract_strided_slice %150 {offsets = [1, 0], sizes = [1, 32], strides = [1, 1]} : vector<8x32xf32> to vector<1x32xf32>
    %312 = vector.extract_strided_slice %195 {offsets = [1, 0], sizes = [1, 32], strides = [1, 1]} : vector<8x32xf32> to vector<1x32xf32>
    %313 = vector.extract_strided_slice %196 {offsets = [1, 0], sizes = [1, 32], strides = [1, 1]} : vector<8x32xf32> to vector<1x32xf32>
    %314 = vector.extract_strided_slice %121 {offsets = [1, 0], sizes = [1, 32], strides = [1, 1]} : vector<8x32xf32> to vector<1x32xf32>
    %315 = vector.broadcast %314 : vector<1x32xf32> to vector<8x32xf32>
    %316 = arith.mulf %107, %315 : vector<8x32xf32>
    %c28_i32_89 = arith.constant 28 : i32
    %317 = tpu.dynamic_rotate %316 by %c28_i32_89 dim 1 : vector<8x32xf32>, i32 -> vector<8x32xf32>
    %c4_i32_90 = arith.constant 4 : i32
    %318 = tpu.dynamic_rotate %316 by %c4_i32_90 dim 1 : vector<8x32xf32>, i32 -> vector<8x32xf32>
    %319 = vector.shape_cast %34 : vector<1x32xi1> to vector<1x32xi1>
    %320 = vector.broadcast %319 : vector<1x32xi1> to vector<8x32xi1>
    %321 = arith.select %320, %317, %318 : vector<8x32xi1>, vector<8x32xf32>
    %322 = arith.addf %316, %321 : vector<8x32xf32>
    %c30_i32_91 = arith.constant 30 : i32
    %323 = tpu.dynamic_rotate %322 by %c30_i32_91 dim 1 : vector<8x32xf32>, i32 -> vector<8x32xf32>
    %c2_i32_92 = arith.constant 2 : i32
    %324 = tpu.dynamic_rotate %322 by %c2_i32_92 dim 1 : vector<8x32xf32>, i32 -> vector<8x32xf32>
    %325 = vector.shape_cast %52 : vector<1x32xi1> to vector<1x32xi1>
    %326 = vector.broadcast %325 : vector<1x32xi1> to vector<8x32xi1>
    %327 = arith.select %326, %323, %324 : vector<8x32xi1>, vector<8x32xf32>
    %328 = arith.addf %322, %327 : vector<8x32xf32>
    %c31_i32_93 = arith.constant 31 : i32
    %329 = tpu.dynamic_rotate %328 by %c31_i32_93 dim 1 : vector<8x32xf32>, i32 -> vector<8x32xf32>
    %c1_i32_94 = arith.constant 1 : i32
    %330 = tpu.dynamic_rotate %328 by %c1_i32_94 dim 1 : vector<8x32xf32>, i32 -> vector<8x32xf32>
    %331 = vector.shape_cast %70 : vector<1x32xi1> to vector<1x32xi1>
    %332 = vector.broadcast %331 : vector<1x32xi1> to vector<8x32xi1>
    %333 = arith.select %332, %329, %330 : vector<8x32xi1>, vector<8x32xf32>
    %334 = arith.addf %328, %333 : vector<8x32xf32>
    %335 = vector.extract_strided_slice %193 {offsets = [1, 0], sizes = [1, 32], strides = [1, 1]} : vector<8x32xf32> to vector<1x32xf32>
    %336 = vector.broadcast %335 : vector<1x32xf32> to vector<8x32xf32>
    %337 = arith.mulf %334, %336 : vector<8x32xf32>
    %338 = vector.broadcast %312 : vector<1x32xf32> to vector<8x32xf32>
    %339 = arith.mulf %251, %338 : vector<8x32xf32>
    %c28_i32_95 = arith.constant 28 : i32
    %340 = tpu.dynamic_rotate %339 by %c28_i32_95 dim 1 : vector<8x32xf32>, i32 -> vector<8x32xf32>
    %c4_i32_96 = arith.constant 4 : i32
    %341 = tpu.dynamic_rotate %339 by %c4_i32_96 dim 1 : vector<8x32xf32>, i32 -> vector<8x32xf32>
    %342 = vector.shape_cast %34 : vector<1x32xi1> to vector<1x32xi1>
    %343 = vector.broadcast %342 : vector<1x32xi1> to vector<8x32xi1>
    %344 = arith.select %343, %340, %341 : vector<8x32xi1>, vector<8x32xf32>
    %345 = arith.addf %339, %344 : vector<8x32xf32>
    %c30_i32_97 = arith.constant 30 : i32
    %346 = tpu.dynamic_rotate %345 by %c30_i32_97 dim 1 : vector<8x32xf32>, i32 -> vector<8x32xf32>
    %c2_i32_98 = arith.constant 2 : i32
    %347 = tpu.dynamic_rotate %345 by %c2_i32_98 dim 1 : vector<8x32xf32>, i32 -> vector<8x32xf32>
    %348 = vector.shape_cast %52 : vector<1x32xi1> to vector<1x32xi1>
    %349 = vector.broadcast %348 : vector<1x32xi1> to vector<8x32xi1>
    %350 = arith.select %349, %346, %347 : vector<8x32xi1>, vector<8x32xf32>
    %351 = arith.addf %345, %350 : vector<8x32xf32>
    %c31_i32_99 = arith.constant 31 : i32
    %352 = tpu.dynamic_rotate %351 by %c31_i32_99 dim 1 : vector<8x32xf32>, i32 -> vector<8x32xf32>
    %c1_i32_100 = arith.constant 1 : i32
    %353 = tpu.dynamic_rotate %351 by %c1_i32_100 dim 1 : vector<8x32xf32>, i32 -> vector<8x32xf32>
    %354 = vector.shape_cast %70 : vector<1x32xi1> to vector<1x32xi1>
    %355 = vector.broadcast %354 : vector<1x32xi1> to vector<8x32xi1>
    %356 = arith.select %355, %352, %353 : vector<8x32xi1>, vector<8x32xf32>
    %357 = arith.addf %351, %356 : vector<8x32xf32>
    %358 = vector.broadcast %311 : vector<1x32xf32> to vector<8x32xf32>
    %359 = arith.mulf %251, %358 : vector<8x32xf32>
    %360 = vector.broadcast %313 : vector<1x32xf32> to vector<8x32xf32>
    %361 = arith.mulf %357, %360 : vector<8x32xf32>
    %362 = arith.addf %359, %361 : vector<8x32xf32>
    %363 = arith.addf %362, %337 : vector<8x32xf32>
    %364 = vector.extract_strided_slice %119 {offsets = [1, 0], sizes = [1, 32], strides = [1, 1]} : vector<8x32xf32> to vector<1x32xf32>
    %365 = vector.broadcast %364 : vector<1x32xf32> to vector<8x32xf32>
    %366 = arith.mulf %363, %365 : vector<8x32xf32>
    %c28_i32_101 = arith.constant 28 : i32
    %367 = tpu.dynamic_rotate %366 by %c28_i32_101 dim 1 : vector<8x32xf32>, i32 -> vector<8x32xf32>
    %c4_i32_102 = arith.constant 4 : i32
    %368 = tpu.dynamic_rotate %366 by %c4_i32_102 dim 1 : vector<8x32xf32>, i32 -> vector<8x32xf32>
    %369 = vector.shape_cast %34 : vector<1x32xi1> to vector<1x32xi1>
    %370 = vector.broadcast %369 : vector<1x32xi1> to vector<8x32xi1>
    %371 = arith.select %370, %367, %368 : vector<8x32xi1>, vector<8x32xf32>
    %372 = arith.addf %366, %371 : vector<8x32xf32>
    %c30_i32_103 = arith.constant 30 : i32
    %373 = tpu.dynamic_rotate %372 by %c30_i32_103 dim 1 : vector<8x32xf32>, i32 -> vector<8x32xf32>
    %c2_i32_104 = arith.constant 2 : i32
    %374 = tpu.dynamic_rotate %372 by %c2_i32_104 dim 1 : vector<8x32xf32>, i32 -> vector<8x32xf32>
    %375 = vector.shape_cast %52 : vector<1x32xi1> to vector<1x32xi1>
    %376 = vector.broadcast %375 : vector<1x32xi1> to vector<8x32xi1>
    %377 = arith.select %376, %373, %374 : vector<8x32xi1>, vector<8x32xf32>
    %378 = arith.addf %372, %377 : vector<8x32xf32>
    %c31_i32_105 = arith.constant 31 : i32
    %379 = tpu.dynamic_rotate %378 by %c31_i32_105 dim 1 : vector<8x32xf32>, i32 -> vector<8x32xf32>
    %c1_i32_106 = arith.constant 1 : i32
    %380 = tpu.dynamic_rotate %378 by %c1_i32_106 dim 1 : vector<8x32xf32>, i32 -> vector<8x32xf32>
    %381 = vector.shape_cast %70 : vector<1x32xi1> to vector<1x32xi1>
    %382 = vector.broadcast %381 : vector<1x32xi1> to vector<8x32xi1>
    %383 = arith.select %382, %379, %380 : vector<8x32xi1>, vector<8x32xf32>
    %384 = arith.addf %378, %383 : vector<8x32xf32>
    %cst_107 = arith.constant 0.000000e+00 : f32
    %385 = vector.broadcast %cst_107 : f32 to vector<1x32xf32>
    %386 = vector.extract_strided_slice %384 {offsets = [0, 0], sizes = [1, 32], strides = [1, 1]} : vector<8x32xf32> to vector<1x32xf32>
    %cst_108 = arith.constant 0.000000e+00 : f32
    %387 = vector.broadcast %cst_108 : f32 to vector<1x32xf32>
    %388 = arith.select %72, %386, %387 : vector<1x32xi1>, vector<1x32xf32>
    %389 = arith.addf %385, %388 : vector<1x32xf32>
    %390 = vector.extract_strided_slice %384 {offsets = [1, 0], sizes = [1, 32], strides = [1, 1]} : vector<8x32xf32> to vector<1x32xf32>
    %cst_109 = arith.constant 0.000000e+00 : f32
    %391 = vector.broadcast %cst_109 : f32 to vector<1x32xf32>
    %392 = arith.select %74, %390, %391 : vector<1x32xi1>, vector<1x32xf32>
    %393 = arith.addf %389, %392 : vector<1x32xf32>
    %394 = vector.extract_strided_slice %384 {offsets = [2, 0], sizes = [1, 32], strides = [1, 1]} : vector<8x32xf32> to vector<1x32xf32>
    %cst_110 = arith.constant 0.000000e+00 : f32
    %395 = vector.broadcast %cst_110 : f32 to vector<1x32xf32>
    %396 = arith.select %76, %394, %395 : vector<1x32xi1>, vector<1x32xf32>
    %397 = arith.addf %393, %396 : vector<1x32xf32>
    %398 = vector.extract_strided_slice %384 {offsets = [3, 0], sizes = [1, 32], strides = [1, 1]} : vector<8x32xf32> to vector<1x32xf32>
    %cst_111 = arith.constant 0.000000e+00 : f32
    %399 = vector.broadcast %cst_111 : f32 to vector<1x32xf32>
    %400 = arith.select %78, %398, %399 : vector<1x32xi1>, vector<1x32xf32>
    %401 = arith.addf %397, %400 : vector<1x32xf32>
    %402 = vector.extract_strided_slice %384 {offsets = [4, 0], sizes = [1, 32], strides = [1, 1]} : vector<8x32xf32> to vector<1x32xf32>
    %cst_112 = arith.constant 0.000000e+00 : f32
    %403 = vector.broadcast %cst_112 : f32 to vector<1x32xf32>
    %404 = arith.select %80, %402, %403 : vector<1x32xi1>, vector<1x32xf32>
    %405 = arith.addf %401, %404 : vector<1x32xf32>
    %406 = vector.extract_strided_slice %384 {offsets = [5, 0], sizes = [1, 32], strides = [1, 1]} : vector<8x32xf32> to vector<1x32xf32>
    %cst_113 = arith.constant 0.000000e+00 : f32
    %407 = vector.broadcast %cst_113 : f32 to vector<1x32xf32>
    %408 = arith.select %82, %406, %407 : vector<1x32xi1>, vector<1x32xf32>
    %409 = arith.addf %405, %408 : vector<1x32xf32>
    %410 = vector.extract_strided_slice %384 {offsets = [6, 0], sizes = [1, 32], strides = [1, 1]} : vector<8x32xf32> to vector<1x32xf32>
    %cst_114 = arith.constant 0.000000e+00 : f32
    %411 = vector.broadcast %cst_114 : f32 to vector<1x32xf32>
    %412 = arith.select %84, %410, %411 : vector<1x32xi1>, vector<1x32xf32>
    %413 = arith.addf %409, %412 : vector<1x32xf32>
    %414 = vector.extract_strided_slice %384 {offsets = [7, 0], sizes = [1, 32], strides = [1, 1]} : vector<8x32xf32> to vector<1x32xf32>
    %cst_115 = arith.constant 0.000000e+00 : f32
    %415 = vector.broadcast %cst_115 : f32 to vector<1x32xf32>
    %416 = arith.select %86, %414, %415 : vector<1x32xi1>, vector<1x32xf32>
    %417 = arith.addf %413, %416 : vector<1x32xf32>
    %c1_i32_116 = arith.constant 1 : i32
    %418 = vector.broadcast %c1_i32_116 : i32 to vector<8x32xi32>
    %419 = arith.cmpi eq, %108, %418 : vector<8x32xi32>
    %420 = vector.shape_cast %417 : vector<1x32xf32> to vector<1x32xf32>
    %421 = vector.broadcast %420 : vector<1x32xf32> to vector<8x32xf32>
    %422 = arith.select %419, %421, %310 : vector<8x32xi1>, vector<8x32xf32>
    %423 = vector.extract_strided_slice %150 {offsets = [2, 0], sizes = [1, 32], strides = [1, 1]} : vector<8x32xf32> to vector<1x32xf32>
    %424 = vector.extract_strided_slice %195 {offsets = [2, 0], sizes = [1, 32], strides = [1, 1]} : vector<8x32xf32> to vector<1x32xf32>
    %425 = vector.extract_strided_slice %196 {offsets = [2, 0], sizes = [1, 32], strides = [1, 1]} : vector<8x32xf32> to vector<1x32xf32>
    %426 = vector.extract_strided_slice %121 {offsets = [2, 0], sizes = [1, 32], strides = [1, 1]} : vector<8x32xf32> to vector<1x32xf32>
    %427 = vector.broadcast %426 : vector<1x32xf32> to vector<8x32xf32>
    %428 = arith.mulf %107, %427 : vector<8x32xf32>
    %c28_i32_117 = arith.constant 28 : i32
    %429 = tpu.dynamic_rotate %428 by %c28_i32_117 dim 1 : vector<8x32xf32>, i32 -> vector<8x32xf32>
    %c4_i32_118 = arith.constant 4 : i32
    %430 = tpu.dynamic_rotate %428 by %c4_i32_118 dim 1 : vector<8x32xf32>, i32 -> vector<8x32xf32>
    %431 = vector.shape_cast %34 : vector<1x32xi1> to vector<1x32xi1>
    %432 = vector.broadcast %431 : vector<1x32xi1> to vector<8x32xi1>
    %433 = arith.select %432, %429, %430 : vector<8x32xi1>, vector<8x32xf32>
    %434 = arith.addf %428, %433 : vector<8x32xf32>
    %c30_i32_119 = arith.constant 30 : i32
    %435 = tpu.dynamic_rotate %434 by %c30_i32_119 dim 1 : vector<8x32xf32>, i32 -> vector<8x32xf32>
    %c2_i32_120 = arith.constant 2 : i32
    %436 = tpu.dynamic_rotate %434 by %c2_i32_120 dim 1 : vector<8x32xf32>, i32 -> vector<8x32xf32>
    %437 = vector.shape_cast %52 : vector<1x32xi1> to vector<1x32xi1>
    %438 = vector.broadcast %437 : vector<1x32xi1> to vector<8x32xi1>
    %439 = arith.select %438, %435, %436 : vector<8x32xi1>, vector<8x32xf32>
    %440 = arith.addf %434, %439 : vector<8x32xf32>
    %c31_i32_121 = arith.constant 31 : i32
    %441 = tpu.dynamic_rotate %440 by %c31_i32_121 dim 1 : vector<8x32xf32>, i32 -> vector<8x32xf32>
    %c1_i32_122 = arith.constant 1 : i32
    %442 = tpu.dynamic_rotate %440 by %c1_i32_122 dim 1 : vector<8x32xf32>, i32 -> vector<8x32xf32>
    %443 = vector.shape_cast %70 : vector<1x32xi1> to vector<1x32xi1>
    %444 = vector.broadcast %443 : vector<1x32xi1> to vector<8x32xi1>
    %445 = arith.select %444, %441, %442 : vector<8x32xi1>, vector<8x32xf32>
    %446 = arith.addf %440, %445 : vector<8x32xf32>
    %447 = vector.extract_strided_slice %193 {offsets = [2, 0], sizes = [1, 32], strides = [1, 1]} : vector<8x32xf32> to vector<1x32xf32>
    %448 = vector.broadcast %447 : vector<1x32xf32> to vector<8x32xf32>
    %449 = arith.mulf %446, %448 : vector<8x32xf32>
    %450 = vector.broadcast %424 : vector<1x32xf32> to vector<8x32xf32>
    %451 = arith.mulf %363, %450 : vector<8x32xf32>
    %c28_i32_123 = arith.constant 28 : i32
    %452 = tpu.dynamic_rotate %451 by %c28_i32_123 dim 1 : vector<8x32xf32>, i32 -> vector<8x32xf32>
    %c4_i32_124 = arith.constant 4 : i32
    %453 = tpu.dynamic_rotate %451 by %c4_i32_124 dim 1 : vector<8x32xf32>, i32 -> vector<8x32xf32>
    %454 = vector.shape_cast %34 : vector<1x32xi1> to vector<1x32xi1>
    %455 = vector.broadcast %454 : vector<1x32xi1> to vector<8x32xi1>
    %456 = arith.select %455, %452, %453 : vector<8x32xi1>, vector<8x32xf32>
    %457 = arith.addf %451, %456 : vector<8x32xf32>
    %c30_i32_125 = arith.constant 30 : i32
    %458 = tpu.dynamic_rotate %457 by %c30_i32_125 dim 1 : vector<8x32xf32>, i32 -> vector<8x32xf32>
    %c2_i32_126 = arith.constant 2 : i32
    %459 = tpu.dynamic_rotate %457 by %c2_i32_126 dim 1 : vector<8x32xf32>, i32 -> vector<8x32xf32>
    %460 = vector.shape_cast %52 : vector<1x32xi1> to vector<1x32xi1>
    %461 = vector.broadcast %460 : vector<1x32xi1> to vector<8x32xi1>
    %462 = arith.select %461, %458, %459 : vector<8x32xi1>, vector<8x32xf32>
    %463 = arith.addf %457, %462 : vector<8x32xf32>
    %c31_i32_127 = arith.constant 31 : i32
    %464 = tpu.dynamic_rotate %463 by %c31_i32_127 dim 1 : vector<8x32xf32>, i32 -> vector<8x32xf32>
    %c1_i32_128 = arith.constant 1 : i32
    %465 = tpu.dynamic_rotate %463 by %c1_i32_128 dim 1 : vector<8x32xf32>, i32 -> vector<8x32xf32>
    %466 = vector.shape_cast %70 : vector<1x32xi1> to vector<1x32xi1>
    %467 = vector.broadcast %466 : vector<1x32xi1> to vector<8x32xi1>
    %468 = arith.select %467, %464, %465 : vector<8x32xi1>, vector<8x32xf32>
    %469 = arith.addf %463, %468 : vector<8x32xf32>
    %470 = vector.broadcast %423 : vector<1x32xf32> to vector<8x32xf32>
    %471 = arith.mulf %363, %470 : vector<8x32xf32>
    %472 = vector.broadcast %425 : vector<1x32xf32> to vector<8x32xf32>
    %473 = arith.mulf %469, %472 : vector<8x32xf32>
    %474 = arith.addf %471, %473 : vector<8x32xf32>
    %475 = arith.addf %474, %449 : vector<8x32xf32>
    %476 = vector.extract_strided_slice %119 {offsets = [2, 0], sizes = [1, 32], strides = [1, 1]} : vector<8x32xf32> to vector<1x32xf32>
    %477 = vector.broadcast %476 : vector<1x32xf32> to vector<8x32xf32>
    %478 = arith.mulf %475, %477 : vector<8x32xf32>
    %c28_i32_129 = arith.constant 28 : i32
    %479 = tpu.dynamic_rotate %478 by %c28_i32_129 dim 1 : vector<8x32xf32>, i32 -> vector<8x32xf32>
    %c4_i32_130 = arith.constant 4 : i32
    %480 = tpu.dynamic_rotate %478 by %c4_i32_130 dim 1 : vector<8x32xf32>, i32 -> vector<8x32xf32>
    %481 = vector.shape_cast %34 : vector<1x32xi1> to vector<1x32xi1>
    %482 = vector.broadcast %481 : vector<1x32xi1> to vector<8x32xi1>
    %483 = arith.select %482, %479, %480 : vector<8x32xi1>, vector<8x32xf32>
    %484 = arith.addf %478, %483 : vector<8x32xf32>
    %c30_i32_131 = arith.constant 30 : i32
    %485 = tpu.dynamic_rotate %484 by %c30_i32_131 dim 1 : vector<8x32xf32>, i32 -> vector<8x32xf32>
    %c2_i32_132 = arith.constant 2 : i32
    %486 = tpu.dynamic_rotate %484 by %c2_i32_132 dim 1 : vector<8x32xf32>, i32 -> vector<8x32xf32>
    %487 = vector.shape_cast %52 : vector<1x32xi1> to vector<1x32xi1>
    %488 = vector.broadcast %487 : vector<1x32xi1> to vector<8x32xi1>
    %489 = arith.select %488, %485, %486 : vector<8x32xi1>, vector<8x32xf32>
    %490 = arith.addf %484, %489 : vector<8x32xf32>
    %c31_i32_133 = arith.constant 31 : i32
    %491 = tpu.dynamic_rotate %490 by %c31_i32_133 dim 1 : vector<8x32xf32>, i32 -> vector<8x32xf32>
    %c1_i32_134 = arith.constant 1 : i32
    %492 = tpu.dynamic_rotate %490 by %c1_i32_134 dim 1 : vector<8x32xf32>, i32 -> vector<8x32xf32>
    %493 = vector.shape_cast %70 : vector<1x32xi1> to vector<1x32xi1>
    %494 = vector.broadcast %493 : vector<1x32xi1> to vector<8x32xi1>
    %495 = arith.select %494, %491, %492 : vector<8x32xi1>, vector<8x32xf32>
    %496 = arith.addf %490, %495 : vector<8x32xf32>
    %cst_135 = arith.constant 0.000000e+00 : f32
    %497 = vector.broadcast %cst_135 : f32 to vector<1x32xf32>
    %498 = vector.extract_strided_slice %496 {offsets = [0, 0], sizes = [1, 32], strides = [1, 1]} : vector<8x32xf32> to vector<1x32xf32>
    %cst_136 = arith.constant 0.000000e+00 : f32
    %499 = vector.broadcast %cst_136 : f32 to vector<1x32xf32>
    %500 = arith.select %72, %498, %499 : vector<1x32xi1>, vector<1x32xf32>
    %501 = arith.addf %497, %500 : vector<1x32xf32>
    %502 = vector.extract_strided_slice %496 {offsets = [1, 0], sizes = [1, 32], strides = [1, 1]} : vector<8x32xf32> to vector<1x32xf32>
    %cst_137 = arith.constant 0.000000e+00 : f32
    %503 = vector.broadcast %cst_137 : f32 to vector<1x32xf32>
    %504 = arith.select %74, %502, %503 : vector<1x32xi1>, vector<1x32xf32>
    %505 = arith.addf %501, %504 : vector<1x32xf32>
    %506 = vector.extract_strided_slice %496 {offsets = [2, 0], sizes = [1, 32], strides = [1, 1]} : vector<8x32xf32> to vector<1x32xf32>
    %cst_138 = arith.constant 0.000000e+00 : f32
    %507 = vector.broadcast %cst_138 : f32 to vector<1x32xf32>
    %508 = arith.select %76, %506, %507 : vector<1x32xi1>, vector<1x32xf32>
    %509 = arith.addf %505, %508 : vector<1x32xf32>
    %510 = vector.extract_strided_slice %496 {offsets = [3, 0], sizes = [1, 32], strides = [1, 1]} : vector<8x32xf32> to vector<1x32xf32>
    %cst_139 = arith.constant 0.000000e+00 : f32
    %511 = vector.broadcast %cst_139 : f32 to vector<1x32xf32>
    %512 = arith.select %78, %510, %511 : vector<1x32xi1>, vector<1x32xf32>
    %513 = arith.addf %509, %512 : vector<1x32xf32>
    %514 = vector.extract_strided_slice %496 {offsets = [4, 0], sizes = [1, 32], strides = [1, 1]} : vector<8x32xf32> to vector<1x32xf32>
    %cst_140 = arith.constant 0.000000e+00 : f32
    %515 = vector.broadcast %cst_140 : f32 to vector<1x32xf32>
    %516 = arith.select %80, %514, %515 : vector<1x32xi1>, vector<1x32xf32>
    %517 = arith.addf %513, %516 : vector<1x32xf32>
    %518 = vector.extract_strided_slice %496 {offsets = [5, 0], sizes = [1, 32], strides = [1, 1]} : vector<8x32xf32> to vector<1x32xf32>
    %cst_141 = arith.constant 0.000000e+00 : f32
    %519 = vector.broadcast %cst_141 : f32 to vector<1x32xf32>
    %520 = arith.select %82, %518, %519 : vector<1x32xi1>, vector<1x32xf32>
    %521 = arith.addf %517, %520 : vector<1x32xf32>
    %522 = vector.extract_strided_slice %496 {offsets = [6, 0], sizes = [1, 32], strides = [1, 1]} : vector<8x32xf32> to vector<1x32xf32>
    %cst_142 = arith.constant 0.000000e+00 : f32
    %523 = vector.broadcast %cst_142 : f32 to vector<1x32xf32>
    %524 = arith.select %84, %522, %523 : vector<1x32xi1>, vector<1x32xf32>
    %525 = arith.addf %521, %524 : vector<1x32xf32>
    %526 = vector.extract_strided_slice %496 {offsets = [7, 0], sizes = [1, 32], strides = [1, 1]} : vector<8x32xf32> to vector<1x32xf32>
    %cst_143 = arith.constant 0.000000e+00 : f32
    %527 = vector.broadcast %cst_143 : f32 to vector<1x32xf32>
    %528 = arith.select %86, %526, %527 : vector<1x32xi1>, vector<1x32xf32>
    %529 = arith.addf %525, %528 : vector<1x32xf32>
    %c2_i32_144 = arith.constant 2 : i32
    %530 = vector.broadcast %c2_i32_144 : i32 to vector<8x32xi32>
    %531 = arith.cmpi eq, %108, %530 : vector<8x32xi32>
    %532 = vector.shape_cast %529 : vector<1x32xf32> to vector<1x32xf32>
    %533 = vector.broadcast %532 : vector<1x32xf32> to vector<8x32xf32>
    %534 = arith.select %531, %533, %422 : vector<8x32xi1>, vector<8x32xf32>
    %535 = vector.extract_strided_slice %150 {offsets = [3, 0], sizes = [1, 32], strides = [1, 1]} : vector<8x32xf32> to vector<1x32xf32>
    %536 = vector.extract_strided_slice %195 {offsets = [3, 0], sizes = [1, 32], strides = [1, 1]} : vector<8x32xf32> to vector<1x32xf32>
    %537 = vector.extract_strided_slice %196 {offsets = [3, 0], sizes = [1, 32], strides = [1, 1]} : vector<8x32xf32> to vector<1x32xf32>
    %538 = vector.extract_strided_slice %121 {offsets = [3, 0], sizes = [1, 32], strides = [1, 1]} : vector<8x32xf32> to vector<1x32xf32>
    %539 = vector.broadcast %538 : vector<1x32xf32> to vector<8x32xf32>
    %540 = arith.mulf %107, %539 : vector<8x32xf32>
    %c28_i32_145 = arith.constant 28 : i32
    %541 = tpu.dynamic_rotate %540 by %c28_i32_145 dim 1 : vector<8x32xf32>, i32 -> vector<8x32xf32>
    %c4_i32_146 = arith.constant 4 : i32
    %542 = tpu.dynamic_rotate %540 by %c4_i32_146 dim 1 : vector<8x32xf32>, i32 -> vector<8x32xf32>
    %543 = vector.shape_cast %34 : vector<1x32xi1> to vector<1x32xi1>
    %544 = vector.broadcast %543 : vector<1x32xi1> to vector<8x32xi1>
    %545 = arith.select %544, %541, %542 : vector<8x32xi1>, vector<8x32xf32>
    %546 = arith.addf %540, %545 : vector<8x32xf32>
    %c30_i32_147 = arith.constant 30 : i32
    %547 = tpu.dynamic_rotate %546 by %c30_i32_147 dim 1 : vector<8x32xf32>, i32 -> vector<8x32xf32>
    %c2_i32_148 = arith.constant 2 : i32
    %548 = tpu.dynamic_rotate %546 by %c2_i32_148 dim 1 : vector<8x32xf32>, i32 -> vector<8x32xf32>
    %549 = vector.shape_cast %52 : vector<1x32xi1> to vector<1x32xi1>
    %550 = vector.broadcast %549 : vector<1x32xi1> to vector<8x32xi1>
    %551 = arith.select %550, %547, %548 : vector<8x32xi1>, vector<8x32xf32>
    %552 = arith.addf %546, %551 : vector<8x32xf32>
    %c31_i32_149 = arith.constant 31 : i32
    %553 = tpu.dynamic_rotate %552 by %c31_i32_149 dim 1 : vector<8x32xf32>, i32 -> vector<8x32xf32>
    %c1_i32_150 = arith.constant 1 : i32
    %554 = tpu.dynamic_rotate %552 by %c1_i32_150 dim 1 : vector<8x32xf32>, i32 -> vector<8x32xf32>
    %555 = vector.shape_cast %70 : vector<1x32xi1> to vector<1x32xi1>
    %556 = vector.broadcast %555 : vector<1x32xi1> to vector<8x32xi1>
    %557 = arith.select %556, %553, %554 : vector<8x32xi1>, vector<8x32xf32>
    %558 = arith.addf %552, %557 : vector<8x32xf32>
    %559 = vector.extract_strided_slice %193 {offsets = [3, 0], sizes = [1, 32], strides = [1, 1]} : vector<8x32xf32> to vector<1x32xf32>
    %560 = vector.broadcast %559 : vector<1x32xf32> to vector<8x32xf32>
    %561 = arith.mulf %558, %560 : vector<8x32xf32>
    %562 = vector.broadcast %536 : vector<1x32xf32> to vector<8x32xf32>
    %563 = arith.mulf %475, %562 : vector<8x32xf32>
    %c28_i32_151 = arith.constant 28 : i32
    %564 = tpu.dynamic_rotate %563 by %c28_i32_151 dim 1 : vector<8x32xf32>, i32 -> vector<8x32xf32>
    %c4_i32_152 = arith.constant 4 : i32
    %565 = tpu.dynamic_rotate %563 by %c4_i32_152 dim 1 : vector<8x32xf32>, i32 -> vector<8x32xf32>
    %566 = vector.shape_cast %34 : vector<1x32xi1> to vector<1x32xi1>
    %567 = vector.broadcast %566 : vector<1x32xi1> to vector<8x32xi1>
    %568 = arith.select %567, %564, %565 : vector<8x32xi1>, vector<8x32xf32>
    %569 = arith.addf %563, %568 : vector<8x32xf32>
    %c30_i32_153 = arith.constant 30 : i32
    %570 = tpu.dynamic_rotate %569 by %c30_i32_153 dim 1 : vector<8x32xf32>, i32 -> vector<8x32xf32>
    %c2_i32_154 = arith.constant 2 : i32
    %571 = tpu.dynamic_rotate %569 by %c2_i32_154 dim 1 : vector<8x32xf32>, i32 -> vector<8x32xf32>
    %572 = vector.shape_cast %52 : vector<1x32xi1> to vector<1x32xi1>
    %573 = vector.broadcast %572 : vector<1x32xi1> to vector<8x32xi1>
    %574 = arith.select %573, %570, %571 : vector<8x32xi1>, vector<8x32xf32>
    %575 = arith.addf %569, %574 : vector<8x32xf32>
    %c31_i32_155 = arith.constant 31 : i32
    %576 = tpu.dynamic_rotate %575 by %c31_i32_155 dim 1 : vector<8x32xf32>, i32 -> vector<8x32xf32>
    %c1_i32_156 = arith.constant 1 : i32
    %577 = tpu.dynamic_rotate %575 by %c1_i32_156 dim 1 : vector<8x32xf32>, i32 -> vector<8x32xf32>
    %578 = vector.shape_cast %70 : vector<1x32xi1> to vector<1x32xi1>
    %579 = vector.broadcast %578 : vector<1x32xi1> to vector<8x32xi1>
    %580 = arith.select %579, %576, %577 : vector<8x32xi1>, vector<8x32xf32>
    %581 = arith.addf %575, %580 : vector<8x32xf32>
    %582 = vector.broadcast %535 : vector<1x32xf32> to vector<8x32xf32>
    %583 = arith.mulf %475, %582 : vector<8x32xf32>
    %584 = vector.broadcast %537 : vector<1x32xf32> to vector<8x32xf32>
    %585 = arith.mulf %581, %584 : vector<8x32xf32>
    %586 = arith.addf %583, %585 : vector<8x32xf32>
    %587 = arith.addf %586, %561 : vector<8x32xf32>
    %588 = vector.extract_strided_slice %119 {offsets = [3, 0], sizes = [1, 32], strides = [1, 1]} : vector<8x32xf32> to vector<1x32xf32>
    %589 = vector.broadcast %588 : vector<1x32xf32> to vector<8x32xf32>
    %590 = arith.mulf %587, %589 : vector<8x32xf32>
    %c28_i32_157 = arith.constant 28 : i32
    %591 = tpu.dynamic_rotate %590 by %c28_i32_157 dim 1 : vector<8x32xf32>, i32 -> vector<8x32xf32>
    %c4_i32_158 = arith.constant 4 : i32
    %592 = tpu.dynamic_rotate %590 by %c4_i32_158 dim 1 : vector<8x32xf32>, i32 -> vector<8x32xf32>
    %593 = vector.shape_cast %34 : vector<1x32xi1> to vector<1x32xi1>
    %594 = vector.broadcast %593 : vector<1x32xi1> to vector<8x32xi1>
    %595 = arith.select %594, %591, %592 : vector<8x32xi1>, vector<8x32xf32>
    %596 = arith.addf %590, %595 : vector<8x32xf32>
    %c30_i32_159 = arith.constant 30 : i32
    %597 = tpu.dynamic_rotate %596 by %c30_i32_159 dim 1 : vector<8x32xf32>, i32 -> vector<8x32xf32>
    %c2_i32_160 = arith.constant 2 : i32
    %598 = tpu.dynamic_rotate %596 by %c2_i32_160 dim 1 : vector<8x32xf32>, i32 -> vector<8x32xf32>
    %599 = vector.shape_cast %52 : vector<1x32xi1> to vector<1x32xi1>
    %600 = vector.broadcast %599 : vector<1x32xi1> to vector<8x32xi1>
    %601 = arith.select %600, %597, %598 : vector<8x32xi1>, vector<8x32xf32>
    %602 = arith.addf %596, %601 : vector<8x32xf32>
    %c31_i32_161 = arith.constant 31 : i32
    %603 = tpu.dynamic_rotate %602 by %c31_i32_161 dim 1 : vector<8x32xf32>, i32 -> vector<8x32xf32>
    %c1_i32_162 = arith.constant 1 : i32
    %604 = tpu.dynamic_rotate %602 by %c1_i32_162 dim 1 : vector<8x32xf32>, i32 -> vector<8x32xf32>
    %605 = vector.shape_cast %70 : vector<1x32xi1> to vector<1x32xi1>
    %606 = vector.broadcast %605 : vector<1x32xi1> to vector<8x32xi1>
    %607 = arith.select %606, %603, %604 : vector<8x32xi1>, vector<8x32xf32>
    %608 = arith.addf %602, %607 : vector<8x32xf32>
    %cst_163 = arith.constant 0.000000e+00 : f32
    %609 = vector.broadcast %cst_163 : f32 to vector<1x32xf32>
    %610 = vector.extract_strided_slice %608 {offsets = [0, 0], sizes = [1, 32], strides = [1, 1]} : vector<8x32xf32> to vector<1x32xf32>
    %cst_164 = arith.constant 0.000000e+00 : f32
    %611 = vector.broadcast %cst_164 : f32 to vector<1x32xf32>
    %612 = arith.select %72, %610, %611 : vector<1x32xi1>, vector<1x32xf32>
    %613 = arith.addf %609, %612 : vector<1x32xf32>
    %614 = vector.extract_strided_slice %608 {offsets = [1, 0], sizes = [1, 32], strides = [1, 1]} : vector<8x32xf32> to vector<1x32xf32>
    %cst_165 = arith.constant 0.000000e+00 : f32
    %615 = vector.broadcast %cst_165 : f32 to vector<1x32xf32>
    %616 = arith.select %74, %614, %615 : vector<1x32xi1>, vector<1x32xf32>
    %617 = arith.addf %613, %616 : vector<1x32xf32>
    %618 = vector.extract_strided_slice %608 {offsets = [2, 0], sizes = [1, 32], strides = [1, 1]} : vector<8x32xf32> to vector<1x32xf32>
    %cst_166 = arith.constant 0.000000e+00 : f32
    %619 = vector.broadcast %cst_166 : f32 to vector<1x32xf32>
    %620 = arith.select %76, %618, %619 : vector<1x32xi1>, vector<1x32xf32>
    %621 = arith.addf %617, %620 : vector<1x32xf32>
    %622 = vector.extract_strided_slice %608 {offsets = [3, 0], sizes = [1, 32], strides = [1, 1]} : vector<8x32xf32> to vector<1x32xf32>
    %cst_167 = arith.constant 0.000000e+00 : f32
    %623 = vector.broadcast %cst_167 : f32 to vector<1x32xf32>
    %624 = arith.select %78, %622, %623 : vector<1x32xi1>, vector<1x32xf32>
    %625 = arith.addf %621, %624 : vector<1x32xf32>
    %626 = vector.extract_strided_slice %608 {offsets = [4, 0], sizes = [1, 32], strides = [1, 1]} : vector<8x32xf32> to vector<1x32xf32>
    %cst_168 = arith.constant 0.000000e+00 : f32
    %627 = vector.broadcast %cst_168 : f32 to vector<1x32xf32>
    %628 = arith.select %80, %626, %627 : vector<1x32xi1>, vector<1x32xf32>
    %629 = arith.addf %625, %628 : vector<1x32xf32>
    %630 = vector.extract_strided_slice %608 {offsets = [5, 0], sizes = [1, 32], strides = [1, 1]} : vector<8x32xf32> to vector<1x32xf32>
    %cst_169 = arith.constant 0.000000e+00 : f32
    %631 = vector.broadcast %cst_169 : f32 to vector<1x32xf32>
    %632 = arith.select %82, %630, %631 : vector<1x32xi1>, vector<1x32xf32>
    %633 = arith.addf %629, %632 : vector<1x32xf32>
    %634 = vector.extract_strided_slice %608 {offsets = [6, 0], sizes = [1, 32], strides = [1, 1]} : vector<8x32xf32> to vector<1x32xf32>
    %cst_170 = arith.constant 0.000000e+00 : f32
    %635 = vector.broadcast %cst_170 : f32 to vector<1x32xf32>
    %636 = arith.select %84, %634, %635 : vector<1x32xi1>, vector<1x32xf32>
    %637 = arith.addf %633, %636 : vector<1x32xf32>
    %638 = vector.extract_strided_slice %608 {offsets = [7, 0], sizes = [1, 32], strides = [1, 1]} : vector<8x32xf32> to vector<1x32xf32>
    %cst_171 = arith.constant 0.000000e+00 : f32
    %639 = vector.broadcast %cst_171 : f32 to vector<1x32xf32>
    %640 = arith.select %86, %638, %639 : vector<1x32xi1>, vector<1x32xf32>
    %641 = arith.addf %637, %640 : vector<1x32xf32>
    %c3_i32_172 = arith.constant 3 : i32
    %642 = vector.broadcast %c3_i32_172 : i32 to vector<8x32xi32>
    %643 = arith.cmpi eq, %108, %642 : vector<8x32xi32>
    %644 = vector.shape_cast %641 : vector<1x32xf32> to vector<1x32xf32>
    %645 = vector.broadcast %644 : vector<1x32xf32> to vector<8x32xf32>
    %646 = arith.select %643, %645, %534 : vector<8x32xi1>, vector<8x32xf32>
    %647 = vector.extract_strided_slice %150 {offsets = [4, 0], sizes = [1, 32], strides = [1, 1]} : vector<8x32xf32> to vector<1x32xf32>
    %648 = vector.extract_strided_slice %195 {offsets = [4, 0], sizes = [1, 32], strides = [1, 1]} : vector<8x32xf32> to vector<1x32xf32>
    %649 = vector.extract_strided_slice %196 {offsets = [4, 0], sizes = [1, 32], strides = [1, 1]} : vector<8x32xf32> to vector<1x32xf32>
    %650 = vector.extract_strided_slice %121 {offsets = [4, 0], sizes = [1, 32], strides = [1, 1]} : vector<8x32xf32> to vector<1x32xf32>
    %651 = vector.broadcast %650 : vector<1x32xf32> to vector<8x32xf32>
    %652 = arith.mulf %107, %651 : vector<8x32xf32>
    %c28_i32_173 = arith.constant 28 : i32
    %653 = tpu.dynamic_rotate %652 by %c28_i32_173 dim 1 : vector<8x32xf32>, i32 -> vector<8x32xf32>
    %c4_i32_174 = arith.constant 4 : i32
    %654 = tpu.dynamic_rotate %652 by %c4_i32_174 dim 1 : vector<8x32xf32>, i32 -> vector<8x32xf32>
    %655 = vector.shape_cast %34 : vector<1x32xi1> to vector<1x32xi1>
    %656 = vector.broadcast %655 : vector<1x32xi1> to vector<8x32xi1>
    %657 = arith.select %656, %653, %654 : vector<8x32xi1>, vector<8x32xf32>
    %658 = arith.addf %652, %657 : vector<8x32xf32>
    %c30_i32_175 = arith.constant 30 : i32
    %659 = tpu.dynamic_rotate %658 by %c30_i32_175 dim 1 : vector<8x32xf32>, i32 -> vector<8x32xf32>
    %c2_i32_176 = arith.constant 2 : i32
    %660 = tpu.dynamic_rotate %658 by %c2_i32_176 dim 1 : vector<8x32xf32>, i32 -> vector<8x32xf32>
    %661 = vector.shape_cast %52 : vector<1x32xi1> to vector<1x32xi1>
    %662 = vector.broadcast %661 : vector<1x32xi1> to vector<8x32xi1>
    %663 = arith.select %662, %659, %660 : vector<8x32xi1>, vector<8x32xf32>
    %664 = arith.addf %658, %663 : vector<8x32xf32>
    %c31_i32_177 = arith.constant 31 : i32
    %665 = tpu.dynamic_rotate %664 by %c31_i32_177 dim 1 : vector<8x32xf32>, i32 -> vector<8x32xf32>
    %c1_i32_178 = arith.constant 1 : i32
    %666 = tpu.dynamic_rotate %664 by %c1_i32_178 dim 1 : vector<8x32xf32>, i32 -> vector<8x32xf32>
    %667 = vector.shape_cast %70 : vector<1x32xi1> to vector<1x32xi1>
    %668 = vector.broadcast %667 : vector<1x32xi1> to vector<8x32xi1>
    %669 = arith.select %668, %665, %666 : vector<8x32xi1>, vector<8x32xf32>
    %670 = arith.addf %664, %669 : vector<8x32xf32>
    %671 = vector.extract_strided_slice %193 {offsets = [4, 0], sizes = [1, 32], strides = [1, 1]} : vector<8x32xf32> to vector<1x32xf32>
    %672 = vector.broadcast %671 : vector<1x32xf32> to vector<8x32xf32>
    %673 = arith.mulf %670, %672 : vector<8x32xf32>
    %674 = vector.broadcast %648 : vector<1x32xf32> to vector<8x32xf32>
    %675 = arith.mulf %587, %674 : vector<8x32xf32>
    %c28_i32_179 = arith.constant 28 : i32
    %676 = tpu.dynamic_rotate %675 by %c28_i32_179 dim 1 : vector<8x32xf32>, i32 -> vector<8x32xf32>
    %c4_i32_180 = arith.constant 4 : i32
    %677 = tpu.dynamic_rotate %675 by %c4_i32_180 dim 1 : vector<8x32xf32>, i32 -> vector<8x32xf32>
    %678 = vector.shape_cast %34 : vector<1x32xi1> to vector<1x32xi1>
    %679 = vector.broadcast %678 : vector<1x32xi1> to vector<8x32xi1>
    %680 = arith.select %679, %676, %677 : vector<8x32xi1>, vector<8x32xf32>
    %681 = arith.addf %675, %680 : vector<8x32xf32>
    %c30_i32_181 = arith.constant 30 : i32
    %682 = tpu.dynamic_rotate %681 by %c30_i32_181 dim 1 : vector<8x32xf32>, i32 -> vector<8x32xf32>
    %c2_i32_182 = arith.constant 2 : i32
    %683 = tpu.dynamic_rotate %681 by %c2_i32_182 dim 1 : vector<8x32xf32>, i32 -> vector<8x32xf32>
    %684 = vector.shape_cast %52 : vector<1x32xi1> to vector<1x32xi1>
    %685 = vector.broadcast %684 : vector<1x32xi1> to vector<8x32xi1>
    %686 = arith.select %685, %682, %683 : vector<8x32xi1>, vector<8x32xf32>
    %687 = arith.addf %681, %686 : vector<8x32xf32>
    %c31_i32_183 = arith.constant 31 : i32
    %688 = tpu.dynamic_rotate %687 by %c31_i32_183 dim 1 : vector<8x32xf32>, i32 -> vector<8x32xf32>
    %c1_i32_184 = arith.constant 1 : i32
    %689 = tpu.dynamic_rotate %687 by %c1_i32_184 dim 1 : vector<8x32xf32>, i32 -> vector<8x32xf32>
    %690 = vector.shape_cast %70 : vector<1x32xi1> to vector<1x32xi1>
    %691 = vector.broadcast %690 : vector<1x32xi1> to vector<8x32xi1>
    %692 = arith.select %691, %688, %689 : vector<8x32xi1>, vector<8x32xf32>
    %693 = arith.addf %687, %692 : vector<8x32xf32>
    %694 = vector.broadcast %647 : vector<1x32xf32> to vector<8x32xf32>
    %695 = arith.mulf %587, %694 : vector<8x32xf32>
    %696 = vector.broadcast %649 : vector<1x32xf32> to vector<8x32xf32>
    %697 = arith.mulf %693, %696 : vector<8x32xf32>
    %698 = arith.addf %695, %697 : vector<8x32xf32>
    %699 = arith.addf %698, %673 : vector<8x32xf32>
    %700 = vector.extract_strided_slice %119 {offsets = [4, 0], sizes = [1, 32], strides = [1, 1]} : vector<8x32xf32> to vector<1x32xf32>
    %701 = vector.broadcast %700 : vector<1x32xf32> to vector<8x32xf32>
    %702 = arith.mulf %699, %701 : vector<8x32xf32>
    %c28_i32_185 = arith.constant 28 : i32
    %703 = tpu.dynamic_rotate %702 by %c28_i32_185 dim 1 : vector<8x32xf32>, i32 -> vector<8x32xf32>
    %c4_i32_186 = arith.constant 4 : i32
    %704 = tpu.dynamic_rotate %702 by %c4_i32_186 dim 1 : vector<8x32xf32>, i32 -> vector<8x32xf32>
    %705 = vector.shape_cast %34 : vector<1x32xi1> to vector<1x32xi1>
    %706 = vector.broadcast %705 : vector<1x32xi1> to vector<8x32xi1>
    %707 = arith.select %706, %703, %704 : vector<8x32xi1>, vector<8x32xf32>
    %708 = arith.addf %702, %707 : vector<8x32xf32>
    %c30_i32_187 = arith.constant 30 : i32
    %709 = tpu.dynamic_rotate %708 by %c30_i32_187 dim 1 : vector<8x32xf32>, i32 -> vector<8x32xf32>
    %c2_i32_188 = arith.constant 2 : i32
    %710 = tpu.dynamic_rotate %708 by %c2_i32_188 dim 1 : vector<8x32xf32>, i32 -> vector<8x32xf32>
    %711 = vector.shape_cast %52 : vector<1x32xi1> to vector<1x32xi1>
    %712 = vector.broadcast %711 : vector<1x32xi1> to vector<8x32xi1>
    %713 = arith.select %712, %709, %710 : vector<8x32xi1>, vector<8x32xf32>
    %714 = arith.addf %708, %713 : vector<8x32xf32>
    %c31_i32_189 = arith.constant 31 : i32
    %715 = tpu.dynamic_rotate %714 by %c31_i32_189 dim 1 : vector<8x32xf32>, i32 -> vector<8x32xf32>
    %c1_i32_190 = arith.constant 1 : i32
    %716 = tpu.dynamic_rotate %714 by %c1_i32_190 dim 1 : vector<8x32xf32>, i32 -> vector<8x32xf32>
    %717 = vector.shape_cast %70 : vector<1x32xi1> to vector<1x32xi1>
    %718 = vector.broadcast %717 : vector<1x32xi1> to vector<8x32xi1>
    %719 = arith.select %718, %715, %716 : vector<8x32xi1>, vector<8x32xf32>
    %720 = arith.addf %714, %719 : vector<8x32xf32>
    %cst_191 = arith.constant 0.000000e+00 : f32
    %721 = vector.broadcast %cst_191 : f32 to vector<1x32xf32>
    %722 = vector.extract_strided_slice %720 {offsets = [0, 0], sizes = [1, 32], strides = [1, 1]} : vector<8x32xf32> to vector<1x32xf32>
    %cst_192 = arith.constant 0.000000e+00 : f32
    %723 = vector.broadcast %cst_192 : f32 to vector<1x32xf32>
    %724 = arith.select %72, %722, %723 : vector<1x32xi1>, vector<1x32xf32>
    %725 = arith.addf %721, %724 : vector<1x32xf32>
    %726 = vector.extract_strided_slice %720 {offsets = [1, 0], sizes = [1, 32], strides = [1, 1]} : vector<8x32xf32> to vector<1x32xf32>
    %cst_193 = arith.constant 0.000000e+00 : f32
    %727 = vector.broadcast %cst_193 : f32 to vector<1x32xf32>
    %728 = arith.select %74, %726, %727 : vector<1x32xi1>, vector<1x32xf32>
    %729 = arith.addf %725, %728 : vector<1x32xf32>
    %730 = vector.extract_strided_slice %720 {offsets = [2, 0], sizes = [1, 32], strides = [1, 1]} : vector<8x32xf32> to vector<1x32xf32>
    %cst_194 = arith.constant 0.000000e+00 : f32
    %731 = vector.broadcast %cst_194 : f32 to vector<1x32xf32>
    %732 = arith.select %76, %730, %731 : vector<1x32xi1>, vector<1x32xf32>
    %733 = arith.addf %729, %732 : vector<1x32xf32>
    %734 = vector.extract_strided_slice %720 {offsets = [3, 0], sizes = [1, 32], strides = [1, 1]} : vector<8x32xf32> to vector<1x32xf32>
    %cst_195 = arith.constant 0.000000e+00 : f32
    %735 = vector.broadcast %cst_195 : f32 to vector<1x32xf32>
    %736 = arith.select %78, %734, %735 : vector<1x32xi1>, vector<1x32xf32>
    %737 = arith.addf %733, %736 : vector<1x32xf32>
    %738 = vector.extract_strided_slice %720 {offsets = [4, 0], sizes = [1, 32], strides = [1, 1]} : vector<8x32xf32> to vector<1x32xf32>
    %cst_196 = arith.constant 0.000000e+00 : f32
    %739 = vector.broadcast %cst_196 : f32 to vector<1x32xf32>
    %740 = arith.select %80, %738, %739 : vector<1x32xi1>, vector<1x32xf32>
    %741 = arith.addf %737, %740 : vector<1x32xf32>
    %742 = vector.extract_strided_slice %720 {offsets = [5, 0], sizes = [1, 32], strides = [1, 1]} : vector<8x32xf32> to vector<1x32xf32>
    %cst_197 = arith.constant 0.000000e+00 : f32
    %743 = vector.broadcast %cst_197 : f32 to vector<1x32xf32>
    %744 = arith.select %82, %742, %743 : vector<1x32xi1>, vector<1x32xf32>
    %745 = arith.addf %741, %744 : vector<1x32xf32>
    %746 = vector.extract_strided_slice %720 {offsets = [6, 0], sizes = [1, 32], strides = [1, 1]} : vector<8x32xf32> to vector<1x32xf32>
    %cst_198 = arith.constant 0.000000e+00 : f32
    %747 = vector.broadcast %cst_198 : f32 to vector<1x32xf32>
    %748 = arith.select %84, %746, %747 : vector<1x32xi1>, vector<1x32xf32>
    %749 = arith.addf %745, %748 : vector<1x32xf32>
    %750 = vector.extract_strided_slice %720 {offsets = [7, 0], sizes = [1, 32], strides = [1, 1]} : vector<8x32xf32> to vector<1x32xf32>
    %cst_199 = arith.constant 0.000000e+00 : f32
    %751 = vector.broadcast %cst_199 : f32 to vector<1x32xf32>
    %752 = arith.select %86, %750, %751 : vector<1x32xi1>, vector<1x32xf32>
    %753 = arith.addf %749, %752 : vector<1x32xf32>
    %c4_i32_200 = arith.constant 4 : i32
    %754 = vector.broadcast %c4_i32_200 : i32 to vector<8x32xi32>
    %755 = arith.cmpi eq, %108, %754 : vector<8x32xi32>
    %756 = vector.shape_cast %753 : vector<1x32xf32> to vector<1x32xf32>
    %757 = vector.broadcast %756 : vector<1x32xf32> to vector<8x32xf32>
    %758 = arith.select %755, %757, %646 : vector<8x32xi1>, vector<8x32xf32>
    %759 = vector.extract_strided_slice %150 {offsets = [5, 0], sizes = [1, 32], strides = [1, 1]} : vector<8x32xf32> to vector<1x32xf32>
    %760 = vector.extract_strided_slice %195 {offsets = [5, 0], sizes = [1, 32], strides = [1, 1]} : vector<8x32xf32> to vector<1x32xf32>
    %761 = vector.extract_strided_slice %196 {offsets = [5, 0], sizes = [1, 32], strides = [1, 1]} : vector<8x32xf32> to vector<1x32xf32>
    %762 = vector.extract_strided_slice %121 {offsets = [5, 0], sizes = [1, 32], strides = [1, 1]} : vector<8x32xf32> to vector<1x32xf32>
    %763 = vector.broadcast %762 : vector<1x32xf32> to vector<8x32xf32>
    %764 = arith.mulf %107, %763 : vector<8x32xf32>
    %c28_i32_201 = arith.constant 28 : i32
    %765 = tpu.dynamic_rotate %764 by %c28_i32_201 dim 1 : vector<8x32xf32>, i32 -> vector<8x32xf32>
    %c4_i32_202 = arith.constant 4 : i32
    %766 = tpu.dynamic_rotate %764 by %c4_i32_202 dim 1 : vector<8x32xf32>, i32 -> vector<8x32xf32>
    %767 = vector.shape_cast %34 : vector<1x32xi1> to vector<1x32xi1>
    %768 = vector.broadcast %767 : vector<1x32xi1> to vector<8x32xi1>
    %769 = arith.select %768, %765, %766 : vector<8x32xi1>, vector<8x32xf32>
    %770 = arith.addf %764, %769 : vector<8x32xf32>
    %c30_i32_203 = arith.constant 30 : i32
    %771 = tpu.dynamic_rotate %770 by %c30_i32_203 dim 1 : vector<8x32xf32>, i32 -> vector<8x32xf32>
    %c2_i32_204 = arith.constant 2 : i32
    %772 = tpu.dynamic_rotate %770 by %c2_i32_204 dim 1 : vector<8x32xf32>, i32 -> vector<8x32xf32>
    %773 = vector.shape_cast %52 : vector<1x32xi1> to vector<1x32xi1>
    %774 = vector.broadcast %773 : vector<1x32xi1> to vector<8x32xi1>
    %775 = arith.select %774, %771, %772 : vector<8x32xi1>, vector<8x32xf32>
    %776 = arith.addf %770, %775 : vector<8x32xf32>
    %c31_i32_205 = arith.constant 31 : i32
    %777 = tpu.dynamic_rotate %776 by %c31_i32_205 dim 1 : vector<8x32xf32>, i32 -> vector<8x32xf32>
    %c1_i32_206 = arith.constant 1 : i32
    %778 = tpu.dynamic_rotate %776 by %c1_i32_206 dim 1 : vector<8x32xf32>, i32 -> vector<8x32xf32>
    %779 = vector.shape_cast %70 : vector<1x32xi1> to vector<1x32xi1>
    %780 = vector.broadcast %779 : vector<1x32xi1> to vector<8x32xi1>
    %781 = arith.select %780, %777, %778 : vector<8x32xi1>, vector<8x32xf32>
    %782 = arith.addf %776, %781 : vector<8x32xf32>
    %783 = vector.extract_strided_slice %193 {offsets = [5, 0], sizes = [1, 32], strides = [1, 1]} : vector<8x32xf32> to vector<1x32xf32>
    %784 = vector.broadcast %783 : vector<1x32xf32> to vector<8x32xf32>
    %785 = arith.mulf %782, %784 : vector<8x32xf32>
    %786 = vector.broadcast %760 : vector<1x32xf32> to vector<8x32xf32>
    %787 = arith.mulf %699, %786 : vector<8x32xf32>
    %c28_i32_207 = arith.constant 28 : i32
    %788 = tpu.dynamic_rotate %787 by %c28_i32_207 dim 1 : vector<8x32xf32>, i32 -> vector<8x32xf32>
    %c4_i32_208 = arith.constant 4 : i32
    %789 = tpu.dynamic_rotate %787 by %c4_i32_208 dim 1 : vector<8x32xf32>, i32 -> vector<8x32xf32>
    %790 = vector.shape_cast %34 : vector<1x32xi1> to vector<1x32xi1>
    %791 = vector.broadcast %790 : vector<1x32xi1> to vector<8x32xi1>
    %792 = arith.select %791, %788, %789 : vector<8x32xi1>, vector<8x32xf32>
    %793 = arith.addf %787, %792 : vector<8x32xf32>
    %c30_i32_209 = arith.constant 30 : i32
    %794 = tpu.dynamic_rotate %793 by %c30_i32_209 dim 1 : vector<8x32xf32>, i32 -> vector<8x32xf32>
    %c2_i32_210 = arith.constant 2 : i32
    %795 = tpu.dynamic_rotate %793 by %c2_i32_210 dim 1 : vector<8x32xf32>, i32 -> vector<8x32xf32>
    %796 = vector.shape_cast %52 : vector<1x32xi1> to vector<1x32xi1>
    %797 = vector.broadcast %796 : vector<1x32xi1> to vector<8x32xi1>
    %798 = arith.select %797, %794, %795 : vector<8x32xi1>, vector<8x32xf32>
    %799 = arith.addf %793, %798 : vector<8x32xf32>
    %c31_i32_211 = arith.constant 31 : i32
    %800 = tpu.dynamic_rotate %799 by %c31_i32_211 dim 1 : vector<8x32xf32>, i32 -> vector<8x32xf32>
    %c1_i32_212 = arith.constant 1 : i32
    %801 = tpu.dynamic_rotate %799 by %c1_i32_212 dim 1 : vector<8x32xf32>, i32 -> vector<8x32xf32>
    %802 = vector.shape_cast %70 : vector<1x32xi1> to vector<1x32xi1>
    %803 = vector.broadcast %802 : vector<1x32xi1> to vector<8x32xi1>
    %804 = arith.select %803, %800, %801 : vector<8x32xi1>, vector<8x32xf32>
    %805 = arith.addf %799, %804 : vector<8x32xf32>
    %806 = vector.broadcast %759 : vector<1x32xf32> to vector<8x32xf32>
    %807 = arith.mulf %699, %806 : vector<8x32xf32>
    %808 = vector.broadcast %761 : vector<1x32xf32> to vector<8x32xf32>
    %809 = arith.mulf %805, %808 : vector<8x32xf32>
    %810 = arith.addf %807, %809 : vector<8x32xf32>
    %811 = arith.addf %810, %785 : vector<8x32xf32>
    %812 = vector.extract_strided_slice %119 {offsets = [5, 0], sizes = [1, 32], strides = [1, 1]} : vector<8x32xf32> to vector<1x32xf32>
    %813 = vector.broadcast %812 : vector<1x32xf32> to vector<8x32xf32>
    %814 = arith.mulf %811, %813 : vector<8x32xf32>
    %c28_i32_213 = arith.constant 28 : i32
    %815 = tpu.dynamic_rotate %814 by %c28_i32_213 dim 1 : vector<8x32xf32>, i32 -> vector<8x32xf32>
    %c4_i32_214 = arith.constant 4 : i32
    %816 = tpu.dynamic_rotate %814 by %c4_i32_214 dim 1 : vector<8x32xf32>, i32 -> vector<8x32xf32>
    %817 = vector.shape_cast %34 : vector<1x32xi1> to vector<1x32xi1>
    %818 = vector.broadcast %817 : vector<1x32xi1> to vector<8x32xi1>
    %819 = arith.select %818, %815, %816 : vector<8x32xi1>, vector<8x32xf32>
    %820 = arith.addf %814, %819 : vector<8x32xf32>
    %c30_i32_215 = arith.constant 30 : i32
    %821 = tpu.dynamic_rotate %820 by %c30_i32_215 dim 1 : vector<8x32xf32>, i32 -> vector<8x32xf32>
    %c2_i32_216 = arith.constant 2 : i32
    %822 = tpu.dynamic_rotate %820 by %c2_i32_216 dim 1 : vector<8x32xf32>, i32 -> vector<8x32xf32>
    %823 = vector.shape_cast %52 : vector<1x32xi1> to vector<1x32xi1>
    %824 = vector.broadcast %823 : vector<1x32xi1> to vector<8x32xi1>
    %825 = arith.select %824, %821, %822 : vector<8x32xi1>, vector<8x32xf32>
    %826 = arith.addf %820, %825 : vector<8x32xf32>
    %c31_i32_217 = arith.constant 31 : i32
    %827 = tpu.dynamic_rotate %826 by %c31_i32_217 dim 1 : vector<8x32xf32>, i32 -> vector<8x32xf32>
    %c1_i32_218 = arith.constant 1 : i32
    %828 = tpu.dynamic_rotate %826 by %c1_i32_218 dim 1 : vector<8x32xf32>, i32 -> vector<8x32xf32>
    %829 = vector.shape_cast %70 : vector<1x32xi1> to vector<1x32xi1>
    %830 = vector.broadcast %829 : vector<1x32xi1> to vector<8x32xi1>
    %831 = arith.select %830, %827, %828 : vector<8x32xi1>, vector<8x32xf32>
    %832 = arith.addf %826, %831 : vector<8x32xf32>
    %cst_219 = arith.constant 0.000000e+00 : f32
    %833 = vector.broadcast %cst_219 : f32 to vector<1x32xf32>
    %834 = vector.extract_strided_slice %832 {offsets = [0, 0], sizes = [1, 32], strides = [1, 1]} : vector<8x32xf32> to vector<1x32xf32>
    %cst_220 = arith.constant 0.000000e+00 : f32
    %835 = vector.broadcast %cst_220 : f32 to vector<1x32xf32>
    %836 = arith.select %72, %834, %835 : vector<1x32xi1>, vector<1x32xf32>
    %837 = arith.addf %833, %836 : vector<1x32xf32>
    %838 = vector.extract_strided_slice %832 {offsets = [1, 0], sizes = [1, 32], strides = [1, 1]} : vector<8x32xf32> to vector<1x32xf32>
    %cst_221 = arith.constant 0.000000e+00 : f32
    %839 = vector.broadcast %cst_221 : f32 to vector<1x32xf32>
    %840 = arith.select %74, %838, %839 : vector<1x32xi1>, vector<1x32xf32>
    %841 = arith.addf %837, %840 : vector<1x32xf32>
    %842 = vector.extract_strided_slice %832 {offsets = [2, 0], sizes = [1, 32], strides = [1, 1]} : vector<8x32xf32> to vector<1x32xf32>
    %cst_222 = arith.constant 0.000000e+00 : f32
    %843 = vector.broadcast %cst_222 : f32 to vector<1x32xf32>
    %844 = arith.select %76, %842, %843 : vector<1x32xi1>, vector<1x32xf32>
    %845 = arith.addf %841, %844 : vector<1x32xf32>
    %846 = vector.extract_strided_slice %832 {offsets = [3, 0], sizes = [1, 32], strides = [1, 1]} : vector<8x32xf32> to vector<1x32xf32>
    %cst_223 = arith.constant 0.000000e+00 : f32
    %847 = vector.broadcast %cst_223 : f32 to vector<1x32xf32>
    %848 = arith.select %78, %846, %847 : vector<1x32xi1>, vector<1x32xf32>
    %849 = arith.addf %845, %848 : vector<1x32xf32>
    %850 = vector.extract_strided_slice %832 {offsets = [4, 0], sizes = [1, 32], strides = [1, 1]} : vector<8x32xf32> to vector<1x32xf32>
    %cst_224 = arith.constant 0.000000e+00 : f32
    %851 = vector.broadcast %cst_224 : f32 to vector<1x32xf32>
    %852 = arith.select %80, %850, %851 : vector<1x32xi1>, vector<1x32xf32>
    %853 = arith.addf %849, %852 : vector<1x32xf32>
    %854 = vector.extract_strided_slice %832 {offsets = [5, 0], sizes = [1, 32], strides = [1, 1]} : vector<8x32xf32> to vector<1x32xf32>
    %cst_225 = arith.constant 0.000000e+00 : f32
    %855 = vector.broadcast %cst_225 : f32 to vector<1x32xf32>
    %856 = arith.select %82, %854, %855 : vector<1x32xi1>, vector<1x32xf32>
    %857 = arith.addf %853, %856 : vector<1x32xf32>
    %858 = vector.extract_strided_slice %832 {offsets = [6, 0], sizes = [1, 32], strides = [1, 1]} : vector<8x32xf32> to vector<1x32xf32>
    %cst_226 = arith.constant 0.000000e+00 : f32
    %859 = vector.broadcast %cst_226 : f32 to vector<1x32xf32>
    %860 = arith.select %84, %858, %859 : vector<1x32xi1>, vector<1x32xf32>
    %861 = arith.addf %857, %860 : vector<1x32xf32>
    %862 = vector.extract_strided_slice %832 {offsets = [7, 0], sizes = [1, 32], strides = [1, 1]} : vector<8x32xf32> to vector<1x32xf32>
    %cst_227 = arith.constant 0.000000e+00 : f32
    %863 = vector.broadcast %cst_227 : f32 to vector<1x32xf32>
    %864 = arith.select %86, %862, %863 : vector<1x32xi1>, vector<1x32xf32>
    %865 = arith.addf %861, %864 : vector<1x32xf32>
    %c5_i32_228 = arith.constant 5 : i32
    %866 = vector.broadcast %c5_i32_228 : i32 to vector<8x32xi32>
    %867 = arith.cmpi eq, %108, %866 : vector<8x32xi32>
    %868 = vector.shape_cast %865 : vector<1x32xf32> to vector<1x32xf32>
    %869 = vector.broadcast %868 : vector<1x32xf32> to vector<8x32xf32>
    %870 = arith.select %867, %869, %758 : vector<8x32xi1>, vector<8x32xf32>
    %871 = vector.extract_strided_slice %150 {offsets = [6, 0], sizes = [1, 32], strides = [1, 1]} : vector<8x32xf32> to vector<1x32xf32>
    %872 = vector.extract_strided_slice %195 {offsets = [6, 0], sizes = [1, 32], strides = [1, 1]} : vector<8x32xf32> to vector<1x32xf32>
    %873 = vector.extract_strided_slice %196 {offsets = [6, 0], sizes = [1, 32], strides = [1, 1]} : vector<8x32xf32> to vector<1x32xf32>
    %874 = vector.extract_strided_slice %121 {offsets = [6, 0], sizes = [1, 32], strides = [1, 1]} : vector<8x32xf32> to vector<1x32xf32>
    %875 = vector.broadcast %874 : vector<1x32xf32> to vector<8x32xf32>
    %876 = arith.mulf %107, %875 : vector<8x32xf32>
    %c28_i32_229 = arith.constant 28 : i32
    %877 = tpu.dynamic_rotate %876 by %c28_i32_229 dim 1 : vector<8x32xf32>, i32 -> vector<8x32xf32>
    %c4_i32_230 = arith.constant 4 : i32
    %878 = tpu.dynamic_rotate %876 by %c4_i32_230 dim 1 : vector<8x32xf32>, i32 -> vector<8x32xf32>
    %879 = vector.shape_cast %34 : vector<1x32xi1> to vector<1x32xi1>
    %880 = vector.broadcast %879 : vector<1x32xi1> to vector<8x32xi1>
    %881 = arith.select %880, %877, %878 : vector<8x32xi1>, vector<8x32xf32>
    %882 = arith.addf %876, %881 : vector<8x32xf32>
    %c30_i32_231 = arith.constant 30 : i32
    %883 = tpu.dynamic_rotate %882 by %c30_i32_231 dim 1 : vector<8x32xf32>, i32 -> vector<8x32xf32>
    %c2_i32_232 = arith.constant 2 : i32
    %884 = tpu.dynamic_rotate %882 by %c2_i32_232 dim 1 : vector<8x32xf32>, i32 -> vector<8x32xf32>
    %885 = vector.shape_cast %52 : vector<1x32xi1> to vector<1x32xi1>
    %886 = vector.broadcast %885 : vector<1x32xi1> to vector<8x32xi1>
    %887 = arith.select %886, %883, %884 : vector<8x32xi1>, vector<8x32xf32>
    %888 = arith.addf %882, %887 : vector<8x32xf32>
    %c31_i32_233 = arith.constant 31 : i32
    %889 = tpu.dynamic_rotate %888 by %c31_i32_233 dim 1 : vector<8x32xf32>, i32 -> vector<8x32xf32>
    %c1_i32_234 = arith.constant 1 : i32
    %890 = tpu.dynamic_rotate %888 by %c1_i32_234 dim 1 : vector<8x32xf32>, i32 -> vector<8x32xf32>
    %891 = vector.shape_cast %70 : vector<1x32xi1> to vector<1x32xi1>
    %892 = vector.broadcast %891 : vector<1x32xi1> to vector<8x32xi1>
    %893 = arith.select %892, %889, %890 : vector<8x32xi1>, vector<8x32xf32>
    %894 = arith.addf %888, %893 : vector<8x32xf32>
    %895 = vector.extract_strided_slice %193 {offsets = [6, 0], sizes = [1, 32], strides = [1, 1]} : vector<8x32xf32> to vector<1x32xf32>
    %896 = vector.broadcast %895 : vector<1x32xf32> to vector<8x32xf32>
    %897 = arith.mulf %894, %896 : vector<8x32xf32>
    %898 = vector.broadcast %872 : vector<1x32xf32> to vector<8x32xf32>
    %899 = arith.mulf %811, %898 : vector<8x32xf32>
    %c28_i32_235 = arith.constant 28 : i32
    %900 = tpu.dynamic_rotate %899 by %c28_i32_235 dim 1 : vector<8x32xf32>, i32 -> vector<8x32xf32>
    %c4_i32_236 = arith.constant 4 : i32
    %901 = tpu.dynamic_rotate %899 by %c4_i32_236 dim 1 : vector<8x32xf32>, i32 -> vector<8x32xf32>
    %902 = vector.shape_cast %34 : vector<1x32xi1> to vector<1x32xi1>
    %903 = vector.broadcast %902 : vector<1x32xi1> to vector<8x32xi1>
    %904 = arith.select %903, %900, %901 : vector<8x32xi1>, vector<8x32xf32>
    %905 = arith.addf %899, %904 : vector<8x32xf32>
    %c30_i32_237 = arith.constant 30 : i32
    %906 = tpu.dynamic_rotate %905 by %c30_i32_237 dim 1 : vector<8x32xf32>, i32 -> vector<8x32xf32>
    %c2_i32_238 = arith.constant 2 : i32
    %907 = tpu.dynamic_rotate %905 by %c2_i32_238 dim 1 : vector<8x32xf32>, i32 -> vector<8x32xf32>
    %908 = vector.shape_cast %52 : vector<1x32xi1> to vector<1x32xi1>
    %909 = vector.broadcast %908 : vector<1x32xi1> to vector<8x32xi1>
    %910 = arith.select %909, %906, %907 : vector<8x32xi1>, vector<8x32xf32>
    %911 = arith.addf %905, %910 : vector<8x32xf32>
    %c31_i32_239 = arith.constant 31 : i32
    %912 = tpu.dynamic_rotate %911 by %c31_i32_239 dim 1 : vector<8x32xf32>, i32 -> vector<8x32xf32>
    %c1_i32_240 = arith.constant 1 : i32
    %913 = tpu.dynamic_rotate %911 by %c1_i32_240 dim 1 : vector<8x32xf32>, i32 -> vector<8x32xf32>
    %914 = vector.shape_cast %70 : vector<1x32xi1> to vector<1x32xi1>
    %915 = vector.broadcast %914 : vector<1x32xi1> to vector<8x32xi1>
    %916 = arith.select %915, %912, %913 : vector<8x32xi1>, vector<8x32xf32>
    %917 = arith.addf %911, %916 : vector<8x32xf32>
    %918 = vector.broadcast %871 : vector<1x32xf32> to vector<8x32xf32>
    %919 = arith.mulf %811, %918 : vector<8x32xf32>
    %920 = vector.broadcast %873 : vector<1x32xf32> to vector<8x32xf32>
    %921 = arith.mulf %917, %920 : vector<8x32xf32>
    %922 = arith.addf %919, %921 : vector<8x32xf32>
    %923 = arith.addf %922, %897 : vector<8x32xf32>
    %924 = vector.extract_strided_slice %119 {offsets = [6, 0], sizes = [1, 32], strides = [1, 1]} : vector<8x32xf32> to vector<1x32xf32>
    %925 = vector.broadcast %924 : vector<1x32xf32> to vector<8x32xf32>
    %926 = arith.mulf %923, %925 : vector<8x32xf32>
    %c28_i32_241 = arith.constant 28 : i32
    %927 = tpu.dynamic_rotate %926 by %c28_i32_241 dim 1 : vector<8x32xf32>, i32 -> vector<8x32xf32>
    %c4_i32_242 = arith.constant 4 : i32
    %928 = tpu.dynamic_rotate %926 by %c4_i32_242 dim 1 : vector<8x32xf32>, i32 -> vector<8x32xf32>
    %929 = vector.shape_cast %34 : vector<1x32xi1> to vector<1x32xi1>
    %930 = vector.broadcast %929 : vector<1x32xi1> to vector<8x32xi1>
    %931 = arith.select %930, %927, %928 : vector<8x32xi1>, vector<8x32xf32>
    %932 = arith.addf %926, %931 : vector<8x32xf32>
    %c30_i32_243 = arith.constant 30 : i32
    %933 = tpu.dynamic_rotate %932 by %c30_i32_243 dim 1 : vector<8x32xf32>, i32 -> vector<8x32xf32>
    %c2_i32_244 = arith.constant 2 : i32
    %934 = tpu.dynamic_rotate %932 by %c2_i32_244 dim 1 : vector<8x32xf32>, i32 -> vector<8x32xf32>
    %935 = vector.shape_cast %52 : vector<1x32xi1> to vector<1x32xi1>
    %936 = vector.broadcast %935 : vector<1x32xi1> to vector<8x32xi1>
    %937 = arith.select %936, %933, %934 : vector<8x32xi1>, vector<8x32xf32>
    %938 = arith.addf %932, %937 : vector<8x32xf32>
    %c31_i32_245 = arith.constant 31 : i32
    %939 = tpu.dynamic_rotate %938 by %c31_i32_245 dim 1 : vector<8x32xf32>, i32 -> vector<8x32xf32>
    %c1_i32_246 = arith.constant 1 : i32
    %940 = tpu.dynamic_rotate %938 by %c1_i32_246 dim 1 : vector<8x32xf32>, i32 -> vector<8x32xf32>
    %941 = vector.shape_cast %70 : vector<1x32xi1> to vector<1x32xi1>
    %942 = vector.broadcast %941 : vector<1x32xi1> to vector<8x32xi1>
    %943 = arith.select %942, %939, %940 : vector<8x32xi1>, vector<8x32xf32>
    %944 = arith.addf %938, %943 : vector<8x32xf32>
    %cst_247 = arith.constant 0.000000e+00 : f32
    %945 = vector.broadcast %cst_247 : f32 to vector<1x32xf32>
    %946 = vector.extract_strided_slice %944 {offsets = [0, 0], sizes = [1, 32], strides = [1, 1]} : vector<8x32xf32> to vector<1x32xf32>
    %cst_248 = arith.constant 0.000000e+00 : f32
    %947 = vector.broadcast %cst_248 : f32 to vector<1x32xf32>
    %948 = arith.select %72, %946, %947 : vector<1x32xi1>, vector<1x32xf32>
    %949 = arith.addf %945, %948 : vector<1x32xf32>
    %950 = vector.extract_strided_slice %944 {offsets = [1, 0], sizes = [1, 32], strides = [1, 1]} : vector<8x32xf32> to vector<1x32xf32>
    %cst_249 = arith.constant 0.000000e+00 : f32
    %951 = vector.broadcast %cst_249 : f32 to vector<1x32xf32>
    %952 = arith.select %74, %950, %951 : vector<1x32xi1>, vector<1x32xf32>
    %953 = arith.addf %949, %952 : vector<1x32xf32>
    %954 = vector.extract_strided_slice %944 {offsets = [2, 0], sizes = [1, 32], strides = [1, 1]} : vector<8x32xf32> to vector<1x32xf32>
    %cst_250 = arith.constant 0.000000e+00 : f32
    %955 = vector.broadcast %cst_250 : f32 to vector<1x32xf32>
    %956 = arith.select %76, %954, %955 : vector<1x32xi1>, vector<1x32xf32>
    %957 = arith.addf %953, %956 : vector<1x32xf32>
    %958 = vector.extract_strided_slice %944 {offsets = [3, 0], sizes = [1, 32], strides = [1, 1]} : vector<8x32xf32> to vector<1x32xf32>
    %cst_251 = arith.constant 0.000000e+00 : f32
    %959 = vector.broadcast %cst_251 : f32 to vector<1x32xf32>
    %960 = arith.select %78, %958, %959 : vector<1x32xi1>, vector<1x32xf32>
    %961 = arith.addf %957, %960 : vector<1x32xf32>
    %962 = vector.extract_strided_slice %944 {offsets = [4, 0], sizes = [1, 32], strides = [1, 1]} : vector<8x32xf32> to vector<1x32xf32>
    %cst_252 = arith.constant 0.000000e+00 : f32
    %963 = vector.broadcast %cst_252 : f32 to vector<1x32xf32>
    %964 = arith.select %80, %962, %963 : vector<1x32xi1>, vector<1x32xf32>
    %965 = arith.addf %961, %964 : vector<1x32xf32>
    %966 = vector.extract_strided_slice %944 {offsets = [5, 0], sizes = [1, 32], strides = [1, 1]} : vector<8x32xf32> to vector<1x32xf32>
    %cst_253 = arith.constant 0.000000e+00 : f32
    %967 = vector.broadcast %cst_253 : f32 to vector<1x32xf32>
    %968 = arith.select %82, %966, %967 : vector<1x32xi1>, vector<1x32xf32>
    %969 = arith.addf %965, %968 : vector<1x32xf32>
    %970 = vector.extract_strided_slice %944 {offsets = [6, 0], sizes = [1, 32], strides = [1, 1]} : vector<8x32xf32> to vector<1x32xf32>
    %cst_254 = arith.constant 0.000000e+00 : f32
    %971 = vector.broadcast %cst_254 : f32 to vector<1x32xf32>
    %972 = arith.select %84, %970, %971 : vector<1x32xi1>, vector<1x32xf32>
    %973 = arith.addf %969, %972 : vector<1x32xf32>
    %974 = vector.extract_strided_slice %944 {offsets = [7, 0], sizes = [1, 32], strides = [1, 1]} : vector<8x32xf32> to vector<1x32xf32>
    %cst_255 = arith.constant 0.000000e+00 : f32
    %975 = vector.broadcast %cst_255 : f32 to vector<1x32xf32>
    %976 = arith.select %86, %974, %975 : vector<1x32xi1>, vector<1x32xf32>
    %977 = arith.addf %973, %976 : vector<1x32xf32>
    %c6_i32_256 = arith.constant 6 : i32
    %978 = vector.broadcast %c6_i32_256 : i32 to vector<8x32xi32>
    %979 = arith.cmpi eq, %108, %978 : vector<8x32xi32>
    %980 = vector.shape_cast %977 : vector<1x32xf32> to vector<1x32xf32>
    %981 = vector.broadcast %980 : vector<1x32xf32> to vector<8x32xf32>
    %982 = arith.select %979, %981, %870 : vector<8x32xi1>, vector<8x32xf32>
    %983 = vector.extract_strided_slice %150 {offsets = [7, 0], sizes = [1, 32], strides = [1, 1]} : vector<8x32xf32> to vector<1x32xf32>
    %984 = vector.extract_strided_slice %195 {offsets = [7, 0], sizes = [1, 32], strides = [1, 1]} : vector<8x32xf32> to vector<1x32xf32>
    %985 = vector.extract_strided_slice %196 {offsets = [7, 0], sizes = [1, 32], strides = [1, 1]} : vector<8x32xf32> to vector<1x32xf32>
    %986 = vector.extract_strided_slice %121 {offsets = [7, 0], sizes = [1, 32], strides = [1, 1]} : vector<8x32xf32> to vector<1x32xf32>
    %987 = vector.broadcast %986 : vector<1x32xf32> to vector<8x32xf32>
    %988 = arith.mulf %107, %987 : vector<8x32xf32>
    %c28_i32_257 = arith.constant 28 : i32
    %989 = tpu.dynamic_rotate %988 by %c28_i32_257 dim 1 : vector<8x32xf32>, i32 -> vector<8x32xf32>
    %c4_i32_258 = arith.constant 4 : i32
    %990 = tpu.dynamic_rotate %988 by %c4_i32_258 dim 1 : vector<8x32xf32>, i32 -> vector<8x32xf32>
    %991 = vector.shape_cast %34 : vector<1x32xi1> to vector<1x32xi1>
    %992 = vector.broadcast %991 : vector<1x32xi1> to vector<8x32xi1>
    %993 = arith.select %992, %989, %990 : vector<8x32xi1>, vector<8x32xf32>
    %994 = arith.addf %988, %993 : vector<8x32xf32>
    %c30_i32_259 = arith.constant 30 : i32
    %995 = tpu.dynamic_rotate %994 by %c30_i32_259 dim 1 : vector<8x32xf32>, i32 -> vector<8x32xf32>
    %c2_i32_260 = arith.constant 2 : i32
    %996 = tpu.dynamic_rotate %994 by %c2_i32_260 dim 1 : vector<8x32xf32>, i32 -> vector<8x32xf32>
    %997 = vector.shape_cast %52 : vector<1x32xi1> to vector<1x32xi1>
    %998 = vector.broadcast %997 : vector<1x32xi1> to vector<8x32xi1>
    %999 = arith.select %998, %995, %996 : vector<8x32xi1>, vector<8x32xf32>
    %1000 = arith.addf %994, %999 : vector<8x32xf32>
    %c31_i32_261 = arith.constant 31 : i32
    %1001 = tpu.dynamic_rotate %1000 by %c31_i32_261 dim 1 : vector<8x32xf32>, i32 -> vector<8x32xf32>
    %c1_i32_262 = arith.constant 1 : i32
    %1002 = tpu.dynamic_rotate %1000 by %c1_i32_262 dim 1 : vector<8x32xf32>, i32 -> vector<8x32xf32>
    %1003 = vector.shape_cast %70 : vector<1x32xi1> to vector<1x32xi1>
    %1004 = vector.broadcast %1003 : vector<1x32xi1> to vector<8x32xi1>
    %1005 = arith.select %1004, %1001, %1002 : vector<8x32xi1>, vector<8x32xf32>
    %1006 = arith.addf %1000, %1005 : vector<8x32xf32>
    %1007 = vector.extract_strided_slice %193 {offsets = [7, 0], sizes = [1, 32], strides = [1, 1]} : vector<8x32xf32> to vector<1x32xf32>
    %1008 = vector.broadcast %1007 : vector<1x32xf32> to vector<8x32xf32>
    %1009 = arith.mulf %1006, %1008 : vector<8x32xf32>
    %1010 = vector.broadcast %984 : vector<1x32xf32> to vector<8x32xf32>
    %1011 = arith.mulf %923, %1010 : vector<8x32xf32>
    %c28_i32_263 = arith.constant 28 : i32
    %1012 = tpu.dynamic_rotate %1011 by %c28_i32_263 dim 1 : vector<8x32xf32>, i32 -> vector<8x32xf32>
    %c4_i32_264 = arith.constant 4 : i32
    %1013 = tpu.dynamic_rotate %1011 by %c4_i32_264 dim 1 : vector<8x32xf32>, i32 -> vector<8x32xf32>
    %1014 = vector.shape_cast %34 : vector<1x32xi1> to vector<1x32xi1>
    %1015 = vector.broadcast %1014 : vector<1x32xi1> to vector<8x32xi1>
    %1016 = arith.select %1015, %1012, %1013 : vector<8x32xi1>, vector<8x32xf32>
    %1017 = arith.addf %1011, %1016 : vector<8x32xf32>
    %c30_i32_265 = arith.constant 30 : i32
    %1018 = tpu.dynamic_rotate %1017 by %c30_i32_265 dim 1 : vector<8x32xf32>, i32 -> vector<8x32xf32>
    %c2_i32_266 = arith.constant 2 : i32
    %1019 = tpu.dynamic_rotate %1017 by %c2_i32_266 dim 1 : vector<8x32xf32>, i32 -> vector<8x32xf32>
    %1020 = vector.shape_cast %52 : vector<1x32xi1> to vector<1x32xi1>
    %1021 = vector.broadcast %1020 : vector<1x32xi1> to vector<8x32xi1>
    %1022 = arith.select %1021, %1018, %1019 : vector<8x32xi1>, vector<8x32xf32>
    %1023 = arith.addf %1017, %1022 : vector<8x32xf32>
    %c31_i32_267 = arith.constant 31 : i32
    %1024 = tpu.dynamic_rotate %1023 by %c31_i32_267 dim 1 : vector<8x32xf32>, i32 -> vector<8x32xf32>
    %c1_i32_268 = arith.constant 1 : i32
    %1025 = tpu.dynamic_rotate %1023 by %c1_i32_268 dim 1 : vector<8x32xf32>, i32 -> vector<8x32xf32>
    %1026 = vector.shape_cast %70 : vector<1x32xi1> to vector<1x32xi1>
    %1027 = vector.broadcast %1026 : vector<1x32xi1> to vector<8x32xi1>
    %1028 = arith.select %1027, %1024, %1025 : vector<8x32xi1>, vector<8x32xf32>
    %1029 = arith.addf %1023, %1028 : vector<8x32xf32>
    %1030 = vector.broadcast %983 : vector<1x32xf32> to vector<8x32xf32>
    %1031 = arith.mulf %923, %1030 : vector<8x32xf32>
    %1032 = vector.broadcast %985 : vector<1x32xf32> to vector<8x32xf32>
    %1033 = arith.mulf %1029, %1032 : vector<8x32xf32>
    %1034 = arith.addf %1031, %1033 : vector<8x32xf32>
    %1035 = arith.addf %1034, %1009 : vector<8x32xf32>
    %1036 = vector.extract_strided_slice %119 {offsets = [7, 0], sizes = [1, 32], strides = [1, 1]} : vector<8x32xf32> to vector<1x32xf32>
    %1037 = vector.broadcast %1036 : vector<1x32xf32> to vector<8x32xf32>
    %1038 = arith.mulf %1035, %1037 : vector<8x32xf32>
    %c28_i32_269 = arith.constant 28 : i32
    %1039 = tpu.dynamic_rotate %1038 by %c28_i32_269 dim 1 : vector<8x32xf32>, i32 -> vector<8x32xf32>
    %c4_i32_270 = arith.constant 4 : i32
    %1040 = tpu.dynamic_rotate %1038 by %c4_i32_270 dim 1 : vector<8x32xf32>, i32 -> vector<8x32xf32>
    %1041 = vector.shape_cast %34 : vector<1x32xi1> to vector<1x32xi1>
    %1042 = vector.broadcast %1041 : vector<1x32xi1> to vector<8x32xi1>
    %1043 = arith.select %1042, %1039, %1040 : vector<8x32xi1>, vector<8x32xf32>
    %1044 = arith.addf %1038, %1043 : vector<8x32xf32>
    %c30_i32_271 = arith.constant 30 : i32
    %1045 = tpu.dynamic_rotate %1044 by %c30_i32_271 dim 1 : vector<8x32xf32>, i32 -> vector<8x32xf32>
    %c2_i32_272 = arith.constant 2 : i32
    %1046 = tpu.dynamic_rotate %1044 by %c2_i32_272 dim 1 : vector<8x32xf32>, i32 -> vector<8x32xf32>
    %1047 = vector.shape_cast %52 : vector<1x32xi1> to vector<1x32xi1>
    %1048 = vector.broadcast %1047 : vector<1x32xi1> to vector<8x32xi1>
    %1049 = arith.select %1048, %1045, %1046 : vector<8x32xi1>, vector<8x32xf32>
    %1050 = arith.addf %1044, %1049 : vector<8x32xf32>
    %c31_i32_273 = arith.constant 31 : i32
    %1051 = tpu.dynamic_rotate %1050 by %c31_i32_273 dim 1 : vector<8x32xf32>, i32 -> vector<8x32xf32>
    %c1_i32_274 = arith.constant 1 : i32
    %1052 = tpu.dynamic_rotate %1050 by %c1_i32_274 dim 1 : vector<8x32xf32>, i32 -> vector<8x32xf32>
    %1053 = vector.shape_cast %70 : vector<1x32xi1> to vector<1x32xi1>
    %1054 = vector.broadcast %1053 : vector<1x32xi1> to vector<8x32xi1>
    %1055 = arith.select %1054, %1051, %1052 : vector<8x32xi1>, vector<8x32xf32>
    %1056 = arith.addf %1050, %1055 : vector<8x32xf32>
    %cst_275 = arith.constant 0.000000e+00 : f32
    %1057 = vector.broadcast %cst_275 : f32 to vector<1x32xf32>
    %1058 = vector.extract_strided_slice %1056 {offsets = [0, 0], sizes = [1, 32], strides = [1, 1]} : vector<8x32xf32> to vector<1x32xf32>
    %cst_276 = arith.constant 0.000000e+00 : f32
    %1059 = vector.broadcast %cst_276 : f32 to vector<1x32xf32>
    %1060 = arith.select %72, %1058, %1059 : vector<1x32xi1>, vector<1x32xf32>
    %1061 = arith.addf %1057, %1060 : vector<1x32xf32>
    %1062 = vector.extract_strided_slice %1056 {offsets = [1, 0], sizes = [1, 32], strides = [1, 1]} : vector<8x32xf32> to vector<1x32xf32>
    %cst_277 = arith.constant 0.000000e+00 : f32
    %1063 = vector.broadcast %cst_277 : f32 to vector<1x32xf32>
    %1064 = arith.select %74, %1062, %1063 : vector<1x32xi1>, vector<1x32xf32>
    %1065 = arith.addf %1061, %1064 : vector<1x32xf32>
    %1066 = vector.extract_strided_slice %1056 {offsets = [2, 0], sizes = [1, 32], strides = [1, 1]} : vector<8x32xf32> to vector<1x32xf32>
    %cst_278 = arith.constant 0.000000e+00 : f32
    %1067 = vector.broadcast %cst_278 : f32 to vector<1x32xf32>
    %1068 = arith.select %76, %1066, %1067 : vector<1x32xi1>, vector<1x32xf32>
    %1069 = arith.addf %1065, %1068 : vector<1x32xf32>
    %1070 = vector.extract_strided_slice %1056 {offsets = [3, 0], sizes = [1, 32], strides = [1, 1]} : vector<8x32xf32> to vector<1x32xf32>
    %cst_279 = arith.constant 0.000000e+00 : f32
    %1071 = vector.broadcast %cst_279 : f32 to vector<1x32xf32>
    %1072 = arith.select %78, %1070, %1071 : vector<1x32xi1>, vector<1x32xf32>
    %1073 = arith.addf %1069, %1072 : vector<1x32xf32>
    %1074 = vector.extract_strided_slice %1056 {offsets = [4, 0], sizes = [1, 32], strides = [1, 1]} : vector<8x32xf32> to vector<1x32xf32>
    %cst_280 = arith.constant 0.000000e+00 : f32
    %1075 = vector.broadcast %cst_280 : f32 to vector<1x32xf32>
    %1076 = arith.select %80, %1074, %1075 : vector<1x32xi1>, vector<1x32xf32>
    %1077 = arith.addf %1073, %1076 : vector<1x32xf32>
    %1078 = vector.extract_strided_slice %1056 {offsets = [5, 0], sizes = [1, 32], strides = [1, 1]} : vector<8x32xf32> to vector<1x32xf32>
    %cst_281 = arith.constant 0.000000e+00 : f32
    %1079 = vector.broadcast %cst_281 : f32 to vector<1x32xf32>
    %1080 = arith.select %82, %1078, %1079 : vector<1x32xi1>, vector<1x32xf32>
    %1081 = arith.addf %1077, %1080 : vector<1x32xf32>
    %1082 = vector.extract_strided_slice %1056 {offsets = [6, 0], sizes = [1, 32], strides = [1, 1]} : vector<8x32xf32> to vector<1x32xf32>
    %cst_282 = arith.constant 0.000000e+00 : f32
    %1083 = vector.broadcast %cst_282 : f32 to vector<1x32xf32>
    %1084 = arith.select %84, %1082, %1083 : vector<1x32xi1>, vector<1x32xf32>
    %1085 = arith.addf %1081, %1084 : vector<1x32xf32>
    %1086 = vector.extract_strided_slice %1056 {offsets = [7, 0], sizes = [1, 32], strides = [1, 1]} : vector<8x32xf32> to vector<1x32xf32>
    %cst_283 = arith.constant 0.000000e+00 : f32
    %1087 = vector.broadcast %cst_283 : f32 to vector<1x32xf32>
    %1088 = arith.select %86, %1086, %1087 : vector<1x32xi1>, vector<1x32xf32>
    %1089 = arith.addf %1085, %1088 : vector<1x32xf32>
    %c7_i32_284 = arith.constant 7 : i32
    %1090 = vector.broadcast %c7_i32_284 : i32 to vector<8x32xi32>
    %1091 = arith.cmpi eq, %108, %1090 : vector<8x32xi32>
    %1092 = vector.shape_cast %1089 : vector<1x32xf32> to vector<1x32xf32>
    %1093 = vector.broadcast %1092 : vector<1x32xf32> to vector<8x32xf32>
    %1094 = arith.select %1091, %1093, %982 : vector<8x32xi1>, vector<8x32xf32>
    %c28_i32_285 = arith.constant 28 : i32
    %1095 = tpu.dynamic_rotate %1094 by %c28_i32_285 dim 1 : vector<8x32xf32>, i32 -> vector<8x32xf32>
    %c4_i32_286 = arith.constant 4 : i32
    %1096 = tpu.dynamic_rotate %1094 by %c4_i32_286 dim 1 : vector<8x32xf32>, i32 -> vector<8x32xf32>
    %1097 = vector.shape_cast %34 : vector<1x32xi1> to vector<1x32xi1>
    %1098 = vector.broadcast %1097 : vector<1x32xi1> to vector<8x32xi1>
    %1099 = arith.select %1098, %1095, %1096 : vector<8x32xi1>, vector<8x32xf32>
    %1100 = arith.addf %1094, %1099 : vector<8x32xf32>
    %c30_i32_287 = arith.constant 30 : i32
    %1101 = tpu.dynamic_rotate %1100 by %c30_i32_287 dim 1 : vector<8x32xf32>, i32 -> vector<8x32xf32>
    %c2_i32_288 = arith.constant 2 : i32
    %1102 = tpu.dynamic_rotate %1100 by %c2_i32_288 dim 1 : vector<8x32xf32>, i32 -> vector<8x32xf32>
    %1103 = vector.shape_cast %52 : vector<1x32xi1> to vector<1x32xi1>
    %1104 = vector.broadcast %1103 : vector<1x32xi1> to vector<8x32xi1>
    %1105 = arith.select %1104, %1101, %1102 : vector<8x32xi1>, vector<8x32xf32>
    %1106 = arith.addf %1100, %1105 : vector<8x32xf32>
    %c31_i32_289 = arith.constant 31 : i32
    %1107 = tpu.dynamic_rotate %1106 by %c31_i32_289 dim 1 : vector<8x32xf32>, i32 -> vector<8x32xf32>
    %c1_i32_290 = arith.constant 1 : i32
    %1108 = tpu.dynamic_rotate %1106 by %c1_i32_290 dim 1 : vector<8x32xf32>, i32 -> vector<8x32xf32>
    %1109 = vector.shape_cast %70 : vector<1x32xi1> to vector<1x32xi1>
    %1110 = vector.broadcast %1109 : vector<1x32xi1> to vector<8x32xi1>
    %1111 = arith.select %1110, %1107, %1108 : vector<8x32xi1>, vector<8x32xf32>
    %1112 = arith.addf %1106, %1111 : vector<8x32xf32>
    %cst_291 = arith.constant 1.250000e-01 : f32
    %1113 = vector.broadcast %cst_291 : f32 to vector<8x32xf32>
    %1114 = arith.mulf %1112, %1113 : vector<8x32xf32>
    %1115 = arith.subf %1094, %1114 : vector<8x32xf32>
    %1116 = arith.mulf %1115, %1115 : vector<8x32xf32>
    %c28_i32_292 = arith.constant 28 : i32
    %1117 = tpu.dynamic_rotate %1116 by %c28_i32_292 dim 1 : vector<8x32xf32>, i32 -> vector<8x32xf32>
    %c4_i32_293 = arith.constant 4 : i32
    %1118 = tpu.dynamic_rotate %1116 by %c4_i32_293 dim 1 : vector<8x32xf32>, i32 -> vector<8x32xf32>
    %1119 = vector.shape_cast %34 : vector<1x32xi1> to vector<1x32xi1>
    %1120 = vector.broadcast %1119 : vector<1x32xi1> to vector<8x32xi1>
    %1121 = arith.select %1120, %1117, %1118 : vector<8x32xi1>, vector<8x32xf32>
    %1122 = arith.addf %1116, %1121 : vector<8x32xf32>
    %c30_i32_294 = arith.constant 30 : i32
    %1123 = tpu.dynamic_rotate %1122 by %c30_i32_294 dim 1 : vector<8x32xf32>, i32 -> vector<8x32xf32>
    %c2_i32_295 = arith.constant 2 : i32
    %1124 = tpu.dynamic_rotate %1122 by %c2_i32_295 dim 1 : vector<8x32xf32>, i32 -> vector<8x32xf32>
    %1125 = vector.shape_cast %52 : vector<1x32xi1> to vector<1x32xi1>
    %1126 = vector.broadcast %1125 : vector<1x32xi1> to vector<8x32xi1>
    %1127 = arith.select %1126, %1123, %1124 : vector<8x32xi1>, vector<8x32xf32>
    %1128 = arith.addf %1122, %1127 : vector<8x32xf32>
    %c31_i32_296 = arith.constant 31 : i32
    %1129 = tpu.dynamic_rotate %1128 by %c31_i32_296 dim 1 : vector<8x32xf32>, i32 -> vector<8x32xf32>
    %c1_i32_297 = arith.constant 1 : i32
    %1130 = tpu.dynamic_rotate %1128 by %c1_i32_297 dim 1 : vector<8x32xf32>, i32 -> vector<8x32xf32>
    %1131 = vector.shape_cast %70 : vector<1x32xi1> to vector<1x32xi1>
    %1132 = vector.broadcast %1131 : vector<1x32xi1> to vector<8x32xi1>
    %1133 = arith.select %1132, %1129, %1130 : vector<8x32xi1>, vector<8x32xf32>
    %1134 = arith.addf %1128, %1133 : vector<8x32xf32>
    %cst_298 = arith.constant 1.250000e-01 : f32
    %1135 = vector.broadcast %cst_298 : f32 to vector<8x32xf32>
    %1136 = arith.mulf %1134, %1135 : vector<8x32xf32>
    %cst_299 = arith.constant 8.000000e-05 : f32
    %1137 = vector.broadcast %cst_299 : f32 to vector<8x32xf32>
    %1138 = arith.addf %1136, %1137 : vector<8x32xf32>
    %1139 = math.rsqrt %1138 : vector<8x32xf32>
    %1140 = arith.mulf %1115, %1139 : vector<8x32xf32>
    %c0_300 = arith.constant 0 : index
    %c0_301 = arith.constant 0 : index
    %1141 = vector.load %arg9[%c0_300, %c0_301] : memref<1x32xf32, #tpu.memory_space<vmem>>, vector<1x32xf32>
    %1142 = vector.broadcast %1141 : vector<1x32xf32> to vector<8x32xf32>
    %1143 = arith.mulf %1140, %1142 : vector<8x32xf32>
    %c0_302 = arith.constant 0 : index
    %c0_303 = arith.constant 0 : index
    %1144 = vector.load %arg10[%c0_302, %c0_303] : memref<1x32xf32, #tpu.memory_space<vmem>>, vector<1x32xf32>
    %1145 = vector.broadcast %1144 : vector<1x32xf32> to vector<8x32xf32>
    %1146 = arith.addf %1143, %1145 : vector<8x32xf32>
    %1147 = arith.mulf %119, %193 : vector<8x32xf32>
    %c0_304 = arith.constant 0 : index
    %c0_305 = arith.constant 0 : index
    %1148 = vector.load %arg8[%c0_304, %c0_305] : memref<1x32xf32, #tpu.memory_space<vmem>>, vector<1x32xf32>
    %1149 = vector.broadcast %1148 : vector<1x32xf32> to vector<8x32xf32>
    %1150 = arith.mulf %1147, %1149 : vector<8x32xf32>
    %c28_i32_306 = arith.constant 28 : i32
    %1151 = tpu.dynamic_rotate %1150 by %c28_i32_306 dim 1 : vector<8x32xf32>, i32 -> vector<8x32xf32>
    %c4_i32_307 = arith.constant 4 : i32
    %1152 = tpu.dynamic_rotate %1150 by %c4_i32_307 dim 1 : vector<8x32xf32>, i32 -> vector<8x32xf32>
    %1153 = vector.shape_cast %34 : vector<1x32xi1> to vector<1x32xi1>
    %1154 = vector.broadcast %1153 : vector<1x32xi1> to vector<8x32xi1>
    %1155 = arith.select %1154, %1151, %1152 : vector<8x32xi1>, vector<8x32xf32>
    %1156 = arith.addf %1150, %1155 : vector<8x32xf32>
    %c30_i32_308 = arith.constant 30 : i32
    %1157 = tpu.dynamic_rotate %1156 by %c30_i32_308 dim 1 : vector<8x32xf32>, i32 -> vector<8x32xf32>
    %c2_i32_309 = arith.constant 2 : i32
    %1158 = tpu.dynamic_rotate %1156 by %c2_i32_309 dim 1 : vector<8x32xf32>, i32 -> vector<8x32xf32>
    %1159 = vector.shape_cast %52 : vector<1x32xi1> to vector<1x32xi1>
    %1160 = vector.broadcast %1159 : vector<1x32xi1> to vector<8x32xi1>
    %1161 = arith.select %1160, %1157, %1158 : vector<8x32xi1>, vector<8x32xf32>
    %1162 = arith.addf %1156, %1161 : vector<8x32xf32>
    %c31_i32_310 = arith.constant 31 : i32
    %1163 = tpu.dynamic_rotate %1162 by %c31_i32_310 dim 1 : vector<8x32xf32>, i32 -> vector<8x32xf32>
    %c1_i32_311 = arith.constant 1 : i32
    %1164 = tpu.dynamic_rotate %1162 by %c1_i32_311 dim 1 : vector<8x32xf32>, i32 -> vector<8x32xf32>
    %1165 = vector.shape_cast %70 : vector<1x32xi1> to vector<1x32xi1>
    %1166 = vector.broadcast %1165 : vector<1x32xi1> to vector<8x32xi1>
    %1167 = arith.select %1166, %1163, %1164 : vector<8x32xi1>, vector<8x32xf32>
    %1168 = arith.addf %1162, %1167 : vector<8x32xf32>
    %1169 = arith.mulf %1168, %121 : vector<8x32xf32>
    %1170 = arith.addf %1146, %1169 : vector<8x32xf32>
    %1171 = arith.mulf %1170, %160 : vector<8x32xf32>
    %1172 = arith.truncf %1171 : vector<8x32xf32> to vector<8x32xbf16>
    %c0_312 = arith.constant 0 : index
    %c0_313 = arith.constant 0 : index
    %1173 = vector.load %arg11[%c0_312, %c0_313] : memref<32x32xbf16, #tpu.memory_space<vmem>>, vector<32x32xbf16>
    %cst_314 = arith.constant dense<0.000000e+00> : vector<8x32xf32>
    %1174 = tpu.matmul %1172, %1173, %cst_314 {dimension_numbers = #tpu.dot_dimension_numbers<[1], [0], [0], [1], [0, 0, 1, 1], [], []>} : vector<8x32xbf16>, vector<32x32xbf16>, vector<8x32xf32> -> vector<8x32xf32>
    %c0_315 = arith.constant 0 : index
    %c0_316 = arith.constant 0 : index
    %c0_317 = arith.constant 0 : index
    %1175 = vector.load %arg12[%c0_315, %c0_316, %c0_317] : memref<1x8x32xf32, #tpu.memory_space<vmem>>, vector<1x8x32xf32>
    %1176 = vector.shape_cast %1175 : vector<1x8x32xf32> to vector<8x32xf32>
    %1177 = vector.shape_cast %1174 : vector<8x32xf32> to vector<1x8x32xf32>
    tpu.vector_store %arg12[%c0_315, %c0_316, %c0_317], %1177 {strides = array<i32>} : memref<1x8x32xf32, #tpu.memory_space<vmem>>, vector<1x8x32xf32>,
    return
  }
  func.func @transform_0(%arg0: i32) -> (i32, i32, i32) {
    %c0_i32 = arith.constant 0 : i32
    %c0_i32_0 = arith.constant 0 : i32
    %c0_i32_1 = arith.constant 0 : i32
    return %arg0, %c0_i32, %c0_i32_0 : i32, i32, i32
  }
  func.func @transform_1(%arg0: i32) -> (i32, i32) {
    %c0_i32 = arith.constant 0 : i32
    %c0_i32_0 = arith.constant 0 : i32
    %c0_i32_1 = arith.constant 0 : i32
    return %c0_i32, %c0_i32_0 : i32, i32
  }
  func.func @transform_2(%arg0: i32) -> (i32, i32) {
    %c0_i32 = arith.constant 0 : i32
    %c0_i32_0 = arith.constant 0 : i32
    %c0_i32_1 = arith.constant 0 : i32
    return %c0_i32, %c0_i32_0 : i32, i32
  }
  func.func @transform_3(%arg0: i32) -> (i32, i32) {
    %c0_i32 = arith.constant 0 : i32
    %c0_i32_0 = arith.constant 0 : i32
    %c0_i32_1 = arith.constant 0 : i32
    return %c0_i32, %c0_i32_0 : i32, i32
  }
  func.func @transform_4(%arg0: i32) -> (i32, i32) {
    %c0_i32 = arith.constant 0 : i32
    %c0_i32_0 = arith.constant 0 : i32
    %c0_i32_1 = arith.constant 0 : i32
    return %c0_i32, %c0_i32_0 : i32, i32
  }
  func.func @transform_5(%arg0: i32) -> (i32, i32) {
    %c0_i32 = arith.constant 0 : i32
    %c0_i32_0 = arith.constant 0 : i32
    %c0_i32_1 = arith.constant 0 : i32
    return %c0_i32, %c0_i32_0 : i32, i32
  }
  func.func @transform_6(%arg0: i32) -> (i32, i32) {
    %c0_i32 = arith.constant 0 : i32
    %c0_i32_0 = arith.constant 0 : i32
    %c0_i32_1 = arith.constant 0 : i32
    return %c0_i32, %c0_i32_0 : i32, i32
  }
  func.func @transform_7(%arg0: i32) -> (i32, i32) {
    %c0_i32 = arith.constant 0 : i32
    %c0_i32_0 = arith.constant 0 : i32
    %c0_i32_1 = arith.constant 0 : i32
    return %c0_i32, %c0_i32_0 : i32, i32
  }
  func.func @transform_8(%arg0: i32) -> (i32, i32) {
    %c0_i32 = arith.constant 0 : i32
    %c0_i32_0 = arith.constant 0 : i32
    %c0_i32_1 = arith.constant 0 : i32
    return %c0_i32, %c0_i32_0 : i32, i32
  }
  func.func @transform_9(%arg0: i32) -> (i32, i32) {
    %c0_i32 = arith.constant 0 : i32
    %c0_i32_0 = arith.constant 0 : i32
    %c0_i32_1 = arith.constant 0 : i32
    return %c0_i32, %c0_i32_0 : i32, i32
  }
  func.func @transform_10(%arg0: i32) -> (i32, i32) {
    %c0_i32 = arith.constant 0 : i32
    %c0_i32_0 = arith.constant 0 : i32
    %c0_i32_1 = arith.constant 0 : i32
    return %c0_i32, %c0_i32_0 : i32, i32
  }
  func.func @transform_11(%arg0: i32) -> (i32, i32, i32) {
    %c0_i32 = arith.constant 0 : i32
    %c0_i32_0 = arith.constant 0 : i32
    %c0_i32_1 = arith.constant 0 : i32
    return %arg0, %c0_i32, %c0_i32_0 : i32, i32, i32
  }
}

</mosaic_0001>

<llo_original>
// kernel: rwkv7_forward.1
$region0: #{rwkv7_forward.1}
  #allocation0 [shape = 'u32[]', space=smem, size = 0x4, offset = 0x4, fixed_abs, tag = 'smem constant byte address 0x4 - core index']
  #allocation1 [shape = 'u32[144,128]{1,0:T(1,128)}', space=vmem, size = 0x12000, scoped, tag = 'internal scratch']
  %s0 = inlined_call_operand.vmem [shape: f32[2,8,32], index: 0, kind: input, shape index: {}]
  %s1 = inlined_call_operand.hbm [shape: bf16[64,128], index: 1, kind: input, shape index: {}]
  %s2 = inlined_call_operand.hbm [shape: bf16[32,96], index: 2, kind: input, shape index: {}]
  %s3 = inlined_call_operand.vmem [shape: f32[1,32], index: 3, kind: input, shape index: {}]
  %s4 = inlined_call_operand.hbm [shape: f32[1,32], index: 4, kind: input, shape index: {}]
  %s5 = inlined_call_operand.vmem [shape: f32[1,32], index: 5, kind: input, shape index: {}]
  %s6 = inlined_call_operand.hbm [shape: f32[1,32], index: 6, kind: input, shape index: {}]
  %s7 = inlined_call_operand.hbm [shape: f32[1,32], index: 7, kind: input, shape index: {}]
  %s8 = inlined_call_operand.hbm [shape: f32[1,32], index: 8, kind: input, shape index: {}]
  %s9 = inlined_call_operand.hbm [shape: f32[1,32], index: 9, kind: input, shape index: {}]
  %s10 = inlined_call_operand.hbm [shape: bf16[32,32], index: 10, kind: input, shape index: {}]
  %s11 = inlined_call_operand.hbm [shape: f32[2,8,32], index: 11, kind: output, shape index: {}]
  %s12 = sld [smem:[#allocation0]]
  $region109: #{rwkv7_forward.1} parent=0
    _
  %s14 = ssub.s32 1, %s12
  %s15 = scalar_select 0, %s14, %s12
  $region1: #{rwkv7_forward.1} parent=0
    #allocation2 [shape = 'u8[16384]{0}', space=vmem, size = 0x4000, scoped, tag = 'input window, operand 1, single buffered']
    #allocation3 [shape = 's32[2]{0}', space=sflag, size = 0x8, scoped, tag = 'scoped memory for rwkv7_forward.1']
    #allocation4 [shape = 's32[2]{0}', space=sflag, size = 0x8, scoped, tag = 'scoped memory for rwkv7_forward.1']
    #allocation5 [shape = 'u8[8192]{0}', space=vmem, size = 0x2000, scoped, tag = 'input window, operand 2, single buffered']
    #allocation6 [shape = 's32[1]{0}', space=sflag, size = 0x4, scoped, tag = 'scoped memory for rwkv7_forward.1']
    #allocation7 [shape = 'u8[512]{0}', space=vmem, size = 0x400, scoped, tag = 'input window, operand 4, single buffered']
    #allocation8 [shape = 'u8[512]{0}', space=vmem, size = 0x400, scoped, tag = 'input window, operand 6, single buffered']
    #allocation9 [shape = 's32[1]{0}', space=sflag, size = 0x4, scoped, tag = 'scoped memory for rwkv7_forward.1']
    #allocation10 [shape = 'u8[512]{0}', space=vmem, size = 0x400, scoped, tag = 'input window, operand 7, single buffered']
    #allocation11 [shape = 'u8[512]{0}', space=vmem, size = 0x400, scoped, tag = 'input window, operand 8, single buffered']
    #allocation12 [shape = 's32[1]{0}', space=sflag, size = 0x4, scoped, tag = 'scoped memory for rwkv7_forward.1']
    #allocation13 [shape = 'u8[512]{0}', space=vmem, size = 0x400, scoped, tag = 'input window, operand 9, single buffered']
    #allocation14 [shape = 'u8[8192]{0}', space=vmem, size = 0x2000, scoped, tag = 'input window, operand 10, single buffered']
    #allocation15 [shape = 's32[1]{0}', space=sflag, size = 0x4, scoped, tag = 'scoped memory for rwkv7_forward.1']
    #allocation16 [shape = 'u8[8192]{0}', space=vmem, size = 0x2000, scoped, tag = 'output window, operand 0']
    %16 = vsyncpa [#allocation3], 0
    %17 = vsyncpa [#allocation6], 0
    %18 = vsyncpa [#allocation9], 0
    %19 = vsyncpa [#allocation12], 0
    %20 = vsyncpa [#allocation15], 0
    %21 = vsyncpa [#allocation4], 0
    %s22 = scalar_lea.sflag [#allocation4], 1
    %23 = vsyncpa %s22, 0
    loop: start=0, step=1, limit=4
    $region2: #{rwkv7_forward.1} parent=1 // loop_pre_header
      _
    $region3: #{rwkv7_forward.1} parent=1 // loop_header
      %s25 = sphi 0, %s29
      %p26 = scmp.ge.s32.totalorder %s25, 4
      %s35 = sphi 0, %s37
      %s38 = sphi 0, %s35
      %s39 = sphi 0, %s38
      %s55 = sphi 0, %s39
      %s59 = sphi 0, %s59
      %s61 = sphi 0, %s59
      %s62 = sphi 0, %s61
      %s76 = sphi 0, %s62
      %s80 = sphi 0, %s80
      %s82 = sphi 0, %s80
      %s83 = sphi 0, %s82
      %s97 = sphi 0, %s83
      %s101 = sphi 0, %s101
      %s103 = sphi 0, %s101
      %s104 = sphi 0, %s103
      %s118 = sphi 0, %s104
      %s122 = sphi 0, %s122
      %s124 = sphi 0, %s122
      %s125 = sphi 0, %s124
      %s139 = sphi 0, %s125
      %s143 = sphi 0, %s143
      %s145 = sphi 0, %s143
      %s146 = sphi 0, %s145
      %s160 = sphi 0, %s146
      %s164 = sphi 0, %s164
      %s166 = sphi 0, %s164
      %s167 = sphi 0, %s166
      %s181 = sphi 0, %s167
      %s185 = sphi 0, %s185
      %s187 = sphi 0, %s185
      %s188 = sphi 0, %s187
      %s202 = sphi 0, %s188
      %s206 = sphi 0, %s206
      %s208 = sphi 0, %s206
      %s209 = sphi 0, %s208
      %s223 = sphi 0, %s209
      %s227 = sphi 0, %s227
      %s229 = sphi 0, %s227
      %s230 = sphi 0, %s229
      %s244 = sphi 0, %s230
      %s248 = sphi 0, %s248
      %s250 = sphi 0, %s248
      %s251 = sphi 0, %s250
      %s265 = sphi 0, %s251
      %s271 = sphi 0, %s273
      %s274 = sphi 0, %s271
      %s275 = sphi 0, %s274
      %s291 = sphi 0, %s275
    $region4: #{rwkv7_forward.1} parent=1 // loop_header_branch
      %28 = sbr.rel (%p26) target = $region8
    $region5: #{rwkv7_forward.1} parent=1 // loop_body
      %s30 = ssub.s32 %s25, 1
      %s31 = ssub.s32 %s25, 2
      %s32 = sadd.s32 %s25, 1
      %s33 = ssub.s32 %s25, %s32
      %p34 = scmp.eq.s32.totalorder %s33, 0
      %s36 = sadd.s32 %s35, 1
      %s37 = scalar_select %p34, %s35, %s36
      %p40 = pneg %p34
      %p41 = scmp.eq.s32.totalorder %s25, 1
      %p42 = por %p40, %p41
      %p43 = scmp.ne.s32.totalorder %s35, %s38
      %p44 = scmp.eq.s32.totalorder %s25, 0
      %p45 = por %p43, %p44
      %p46 = scmp.ne.s32.totalorder %s35, %s38
      %p47 = scmp.eq.s32.totalorder %s30, 1
      %p48 = por %p46, %p47
      %p49 = scmp.ne.s32.totalorder %s38, %s39
      %p50 = scmp.eq.s32.totalorder %s30, 0
      %p51 = por %p49, %p50
      %p52 = scmp.ne.s32.totalorder %s38, %s39
      %p53 = scmp.eq.s32.totalorder %s31, 1
      %p54 = por %p52, %p53
      %p56 = scmp.ne.s32.totalorder %s39, %s55
      %p57 = scmp.eq.s32.totalorder %s31, 0
      %p58 = por %p56, %p57
      %s60 = sadd.s32 %s59, 1
      %p63 = scmp.eq.s32.totalorder %s25, 1
      %p64 = scmp.ne.s32.totalorder %s59, %s61
      %p65 = scmp.eq.s32.totalorder %s25, 0
      %p66 = por %p64, %p65
      %p67 = scmp.ne.s32.totalorder %s59, %s61
      %p68 = scmp.eq.s32.totalorder %s30, 1
      %p69 = por %p67, %p68
      %p70 = scmp.ne.s32.totalorder %s61, %s62
      %p71 = scmp.eq.s32.totalorder %s30, 0
      %p72 = por %p70, %p71
      %p73 = scmp.ne.s32.totalorder %s61, %s62
      %p74 = scmp.eq.s32.totalorder %s31, 1
      %p75 = por %p73, %p74
      %p77 = scmp.ne.s32.totalorder %s62, %s76
      %p78 = scmp.eq.s32.totalorder %s31, 0
      %p79 = por %p77, %p78
      %s81 = sadd.s32 %s80, 1
      %p84 = scmp.eq.s32.totalorder %s25, 1
      %p85 = scmp.ne.s32.totalorder %s80, %s82
      %p86 = scmp.eq.s32.totalorder %s25, 0
      %p87 = por %p85, %p86
      %p88 = scmp.ne.s32.totalorder %s80, %s82
      %p89 = scmp.eq.s32.totalorder %s30, 1
      %p90 = por %p88, %p89
      %p91 = scmp.ne.s32.totalorder %s82, %s83
      %p92 = scmp.eq.s32.totalorder %s30, 0
      %p93 = por %p91, %p92
      %p94 = scmp.ne.s32.totalorder %s82, %s83
      %p95 = scmp.eq.s32.totalorder %s31, 1
      %p96 = por %p94, %p95
      %p98 = scmp.ne.s32.totalorder %s83, %s97
      %p99 = scmp.eq.s32.totalorder %s31, 0
      %p100 = por %p98, %p99
      %s102 = sadd.s32 %s101, 1
      %p105 = scmp.eq.s32.totalorder %s25, 1
      %p106 = scmp.ne.s32.totalorder %s101, %s103
      %p107 = scmp.eq.s32.totalorder %s25, 0
      %p108 = por %p106, %p107
      %p109 = scmp.ne.s32.totalorder %s101, %s103
      %p110 = scmp.eq.s32.totalorder %s30, 1
      %p111 = por %p109, %p110
      %p112 = scmp.ne.s32.totalorder %s103, %s104
      %p113 = scmp.eq.s32.totalorder %s30, 0
      %p114 = por %p112, %p113
      %p115 = scmp.ne.s32.totalorder %s103, %s104
      %p116 = scmp.eq.s32.totalorder %s31, 1
      %p117 = por %p115, %p116
      %p119 = scmp.ne.s32.totalorder %s104, %s118
      %p120 = scmp.eq.s32.totalorder %s31, 0
      %p121 = por %p119, %p120
      %s123 = sadd.s32 %s122, 1
      %p126 = scmp.eq.s32.totalorder %s25, 1
      %p127 = scmp.ne.s32.totalorder %s122, %s124
      %p128 = scmp.eq.s32.totalorder %s25, 0
      %p129 = por %p127, %p128
      %p130 = scmp.ne.s32.totalorder %s122, %s124
      %p131 = scmp.eq.s32.totalorder %s30, 1
      %p132 = por %p130, %p131
      %p133 = scmp.ne.s32.totalorder %s124, %s125
      %p134 = scmp.eq.s32.totalorder %s30, 0
      %p135 = por %p133, %p134
      %p136 = scmp.ne.s32.totalorder %s124, %s125
      %p137 = scmp.eq.s32.totalorder %s31, 1
      %p138 = por %p136, %p137
      %p140 = scmp.ne.s32.totalorder %s125, %s139
      %p141 = scmp.eq.s32.totalorder %s31, 0
      %p142 = por %p140, %p141
      %s144 = sadd.s32 %s143, 1
      %p147 = scmp.eq.s32.totalorder %s25, 1
      %p148 = scmp.ne.s32.totalorder %s143, %s145
      %p149 = scmp.eq.s32.totalorder %s25, 0
      %p150 = por %p148, %p149
      %p151 = scmp.ne.s32.totalorder %s143, %s145
      %p152 = scmp.eq.s32.totalorder %s30, 1
      %p153 = por %p151, %p152
      %p154 = scmp.ne.s32.totalorder %s145, %s146
      %p155 = scmp.eq.s32.totalorder %s30, 0
      %p156 = por %p154, %p155
      %p157 = scmp.ne.s32.totalorder %s145, %s146
      %p158 = scmp.eq.s32.totalorder %s31, 1
      %p159 = por %p157, %p158
      %p161 = scmp.ne.s32.totalorder %s146, %s160
      %p162 = scmp.eq.s32.totalorder %s31, 0
      %p163 = por %p161, %p162
      %s165 = sadd.s32 %s164, 1
      %p168 = scmp.eq.s32.totalorder %s25, 1
      %p169 = scmp.ne.s32.totalorder %s164, %s166
      %p170 = scmp.eq.s32.totalorder %s25, 0
      %p171 = por %p169, %p170
      %p172 = scmp.ne.s32.totalorder %s164, %s166
      %p173 = scmp.eq.s32.totalorder %s30, 1
      %p174 = por %p172, %p173
      %p175 = scmp.ne.s32.totalorder %s166, %s167
      %p176 = scmp.eq.s32.totalorder %s30, 0
      %p177 = por %p175, %p176
      %p178 = scmp.ne.s32.totalorder %s166, %s167
      %p179 = scmp.eq.s32.totalorder %s31, 1
      %p180 = por %p178, %p179
      %p182 = scmp.ne.s32.totalorder %s167, %s181
      %p183 = scmp.eq.s32.totalorder %s31, 0
      %p184 = por %p182, %p183
      %s186 = sadd.s32 %s185, 1
      %p189 = scmp.eq.s32.totalorder %s25, 1
      %p190 = scmp.ne.s32.totalorder %s185, %s187
      %p191 = scmp.eq.s32.totalorder %s25, 0
      %p192 = por %p190, %p191
      %p193 = scmp.ne.s32.totalorder %s185, %s187
      %p194 = scmp.eq.s32.totalorder %s30, 1
      %p195 = por %p193, %p194
      %p196 = scmp.ne.s32.totalorder %s187, %s188
      %p197 = scmp.eq.s32.totalorder %s30, 0
      %p198 = por %p196, %p197
      %p199 = scmp.ne.s32.totalorder %s187, %s188
      %p200 = scmp.eq.s32.totalorder %s31, 1
      %p201 = por %p199, %p200
      %p203 = scmp.ne.s32.totalorder %s188, %s202
      %p204 = scmp.eq.s32.totalorder %s31, 0
      %p205 = por %p203, %p204
      %s207 = sadd.s32 %s206, 1
      %p210 = scmp.eq.s32.totalorder %s25, 1
      %p211 = scmp.ne.s32.totalorder %s206, %s208
      %p212 = scmp.eq.s32.totalorder %s25, 0
      %p213 = por %p211, %p212
      %p214 = scmp.ne.s32.totalorder %s206, %s208
      %p215 = scmp.eq.s32.totalorder %s30, 1
      %p216 = por %p214, %p215
      %p217 = scmp.ne.s32.totalorder %s208, %s209
      %p218 = scmp.eq.s32.totalorder %s30, 0
      %p219 = por %p217, %p218
      %p220 = scmp.ne.s32.totalorder %s208, %s209
      %p221 = scmp.eq.s32.totalorder %s31, 1
      %p222 = por %p220, %p221
      %p224 = scmp.ne.s32.totalorder %s209, %s223
      %p225 = scmp.eq.s32.totalorder %s31, 0
      %p226 = por %p224, %p225
      %s228 = sadd.s32 %s227, 1
      %p231 = scmp.eq.s32.totalorder %s25, 1
      %p232 = scmp.ne.s32.totalorder %s227, %s229
      %p233 = scmp.eq.s32.totalorder %s25, 0
      %p234 = por %p232, %p233
      %p235 = scmp.ne.s32.totalorder %s227, %s229
      %p236 = scmp.eq.s32.totalorder %s30, 1
      %p237 = por %p235, %p236
      %p238 = scmp.ne.s32.totalorder %s229, %s230
      %p239 = scmp.eq.s32.totalorder %s30, 0
      %p240 = por %p238, %p239
      %p241 = scmp.ne.s32.totalorder %s229, %s230
      %p242 = scmp.eq.s32.totalorder %s31, 1
      %p243 = por %p241, %p242
      %p245 = scmp.ne.s32.totalorder %s230, %s244
      %p246 = scmp.eq.s32.totalorder %s31, 0
      %p247 = por %p245, %p246
      %s249 = sadd.s32 %s248, 1
      %p252 = scmp.eq.s32.totalorder %s25, 1
      %p253 = scmp.ne.s32.totalorder %s248, %s250
      %p254 = scmp.eq.s32.totalorder %s25, 0
      %p255 = por %p253, %p254
      %p256 = scmp.ne.s32.totalorder %s248, %s250
      %p257 = scmp.eq.s32.totalorder %s30, 1
      %p258 = por %p256, %p257
      %p259 = scmp.ne.s32.totalorder %s250, %s251
      %p260 = scmp.eq.s32.totalorder %s30, 0
      %p261 = por %p259, %p260
      %p262 = scmp.ne.s32.totalorder %s250, %s251
      %p263 = scmp.eq.s32.totalorder %s31, 1
      %p264 = por %p262, %p263
      %p266 = scmp.ne.s32.totalorder %s251, %s265
      %p267 = scmp.eq.s32.totalorder %s31, 0
      %p268 = por %p266, %p267
      %s269 = ssub.s32 %s25, %s32
      %p270 = scmp.eq.s32.totalorder %s269, 0
      %s272 = sadd.s32 %s271, 1
      %s273 = scalar_select %p270, %s271, %s272
      %p276 = pneg %p270
      %p277 = scmp.eq.s32.totalorder %s25, 1
      %p278 = por %p276, %p277
      %p279 = scmp.ne.s32.totalorder %s271, %s274
      %p280 = scmp.eq.s32.totalorder %s25, 0
      %p281 = por %p279, %p280
      %p282 = scmp.ne.s32.totalorder %s271, %s274
      %p283 = scmp.eq.s32.totalorder %s30, 1
      %p284 = por %p282, %p283
      %p285 = scmp.ne.s32.totalorder %s274, %s275
      %p286 = scmp.eq.s32.totalorder %s30, 0
      %p287 = por %p285, %p286
      %p288 = scmp.ne.s32.totalorder %s274, %s275
      %p289 = scmp.eq.s32.totalorder %s31, 1
      %p290 = por %p288, %p289
      %p292 = scmp.ne.s32.totalorder %s275, %s291
      %p293 = scmp.eq.s32.totalorder %s31, 0
      %p294 = por %p292, %p293
      %p295 = scmp.le.s32.totalorder 1, %s25
      %p296 = scmp.lt.s32.totalorder %s25, 3
      %p297 = pnand %p295, %p296
      %p298 = pneg %p297
      // Predicated region
      $region9: #{rwkv7_forward.1} parent=5 // pred_check
        _
      $region10: #{rwkv7_forward.1} parent=5 // pred_check_branch
        %300 = sbr.rel (%p297) target = $region12
      $region11: #{rwkv7_forward.1} parent=5 // pred_region
        %s301 = ssub.s32 %s25, 1
        // Predicated region
        $region13: #{rwkv7_forward.1} parent=11 // pred_check
          %p302 = pneg %p72
        $region14: #{rwkv7_forward.1} parent=11 // pred_check_branch
          %304 = sbr.rel (%p302) target = $region16
        $region15: #{rwkv7_forward.1} parent=11 // pred_region
          %s306 = ssub.s32 512, 512
          %307 = vsyncadd [#allocation3], %s306
          %s308 = sshll.u32 [#allocation2], 4
          %s309 = int_to_ptr.vmem [resolvable:$true] %s308
          %314 = dma.hbm_to_vmem [thread:$0]  %s1, 512, %s309, [#allocation3], 64, 64, 4
        $region16: #{rwkv7_forward.1} parent=11 // pred_fallthru
          _
        // Predicated region
        $region17: #{rwkv7_forward.1} parent=11 // pred_check
          %p315 = pneg %p93
        $region18: #{rwkv7_forward.1} parent=11 // pred_check_branch
          %317 = sbr.rel (%p315) target = $region20
        $region19: #{rwkv7_forward.1} parent=11 // pred_region
          %s319 = ssub.s32 256, 256
          %320 = vsyncadd [#allocation6], %s319
          %s321 = sshll.u32 [#allocation5], 4
          %s322 = int_to_ptr.vmem [resolvable:$true] %s321
          %327 = dma.hbm_to_vmem [thread:$0]  %s2, 256, %s322, [#allocation6], 64, 64, 4
        $region20: #{rwkv7_forward.1} parent=11 // pred_fallthru
          _
        // Predicated region
        $region21: #{rwkv7_forward.1} parent=11 // pred_check
          %p328 = pneg %p114
        $region22: #{rwkv7_forward.1} parent=11 // pred_check_branch
          %330 = sbr.rel (%p328) target = $region24
        $region23: #{rwkv7_forward.1} parent=11 // pred_region
          _
        $region24: #{rwkv7_forward.1} parent=11 // pred_fallthru
          _
        // Predicated region
        $region25: #{rwkv7_forward.1} parent=11 // pred_check
          %p331 = pneg %p135
        $region26: #{rwkv7_forward.1} parent=11 // pred_check_branch
          %333 = sbr.rel (%p331) target = $region28
        $region27: #{rwkv7_forward.1} parent=11 // pred_region
          %s335 = ssub.s32 16, 16
          %336 = vsyncadd [#allocation6], %s335
          %s338 = sshll.u32 [#allocation7], 4
          %s339 = int_to_ptr.vmem [resolvable:$true] %s338
          %341 = dma.hbm_to_vmem [thread:$0]  %s4, 16, %s339, [#allocation6]
        $region28: #{rwkv7_forward.1} parent=11 // pred_fallthru
          _
        // Predicated region
        $region29: #{rwkv7_forward.1} parent=11 // pred_check
          %p342 = pneg %p156
        $region30: #{rwkv7_forward.1} parent=11 // pred_check_branch
          %344 = sbr.rel (%p342) target = $region32
        $region31: #{rwkv7_forward.1} parent=11 // pred_region
          _
        $region32: #{rwkv7_forward.1} parent=11 // pred_fallthru
          _
        // Predicated region
        $region33: #{rwkv7_forward.1} parent=11 // pred_check
          %p345 = pneg %p177
        $region34: #{rwkv7_forward.1} parent=11 // pred_check_branch
          %347 = sbr.rel (%p345) target = $region36
        $region35: #{rwkv7_forward.1} parent=11 // pred_region
          %s349 = ssub.s32 16, 16
          %350 = vsyncadd [#allocation9], %s349
          %s352 = sshll.u32 [#allocation8], 4
          %s353 = int_to_ptr.vmem [resolvable:$true] %s352
          %355 = dma.hbm_to_vmem [thread:$0]  %s6, 16, %s353, [#allocation9]
        $region36: #{rwkv7_forward.1} parent=11 // pred_fallthru
          _
        // Predicated region
        $region37: #{rwkv7_forward.1} parent=11 // pred_check
          %p356 = pneg %p198
        $region38: #{rwkv7_forward.1} parent=11 // pred_check_branch
          %358 = sbr.rel (%p356) target = $region40
        $region39: #{rwkv7_forward.1} parent=11 // pred_region
          %s360 = ssub.s32 16, 16
          %361 = vsyncadd [#allocation9], %s360
          %s363 = sshll.u32 [#allocation10], 4
          %s364 = int_to_ptr.vmem [resolvable:$true] %s363
          %366 = dma.hbm_to_vmem [thread:$0]  %s7, 16, %s364, [#allocation9]
        $region40: #{rwkv7_forward.1} parent=11 // pred_fallthru
          _
        // Predicated region
        $region41: #{rwkv7_forward.1} parent=11 // pred_check
          %p367 = pneg %p219
        $region42: #{rwkv7_forward.1} parent=11 // pred_check_branch
          %369 = sbr.rel (%p367) target = $region44
        $region43: #{rwkv7_forward.1} parent=11 // pred_region
          %s371 = ssub.s32 16, 16
          %372 = vsyncadd [#allocation12], %s371
          %s374 = sshll.u32 [#allocation11], 4
          %s375 = int_to_ptr.vmem [resolvable:$true] %s374
          %377 = dma.hbm_to_vmem [thread:$0]  %s8, 16, %s375, [#allocation12]
        $region44: #{rwkv7_forward.1} parent=11 // pred_fallthru
          _
        // Predicated region
        $region45: #{rwkv7_forward.1} parent=11 // pred_check
          %p378 = pneg %p240
        $region46: #{rwkv7_forward.1} parent=11 // pred_check_branch
          %380 = sbr.rel (%p378) target = $region48
        $region47: #{rwkv7_forward.1} parent=11 // pred_region
          %s382 = ssub.s32 16, 16
          %383 = vsyncadd [#allocation12], %s382
          %s385 = sshll.u32 [#allocation13], 4
          %s386 = int_to_ptr.vmem [resolvable:$true] %s385
          %388 = dma.hbm_to_vmem [thread:$0]  %s9, 16, %s386, [#allocation12]
        $region48: #{rwkv7_forward.1} parent=11 // pred_fallthru
          _
        // Predicated region
        $region49: #{rwkv7_forward.1} parent=11 // pred_check
          %p389 = pneg %p261
        $region50: #{rwkv7_forward.1} parent=11 // pred_check_branch
          %391 = sbr.rel (%p389) target = $region52
        $region51: #{rwkv7_forward.1} parent=11 // pred_region
          %s393 = ssub.s32 256, 256
          %394 = vsyncadd [#allocation15], %s393
          %s395 = sshll.u32 [#allocation14], 4
          %s396 = int_to_ptr.vmem [resolvable:$true] %s395
          %401 = dma.hbm_to_vmem [thread:$0]  %s10, 256, %s396, [#allocation15], 64, 64, 4
        $region52: #{rwkv7_forward.1} parent=11 // pred_fallthru
          _
      $region12: #{rwkv7_forward.1} parent=5 // pred_fallthru
        _
      %p402 = scmp.lt.s32.totalorder %s25, 2
      // Predicated region
      $region53: #{rwkv7_forward.1} parent=5 // pred_check
        %p403 = pneg %p402
      $region54: #{rwkv7_forward.1} parent=5 // pred_check_branch
        %405 = sbr.rel (%p403) target = $region56
      $region55: #{rwkv7_forward.1} parent=5 // pred_region
        // Predicated region
        $region57: #{rwkv7_forward.1} parent=55 // pred_check
          %p406 = pneg %p45
        $region58: #{rwkv7_forward.1} parent=55 // pred_check_branch
          %408 = sbr.rel (%p406) target = $region60
        $region59: #{rwkv7_forward.1} parent=55 // pred_region
          %p409 = scmp.lt.s32.totalorder %s25, 1
          %s410 = scalar_select %p409, %s25, 1
          %s411 = smul.addr %s410, 8
          %s412 = scalar_lea.vmem %s0, %s411
        $region60: #{rwkv7_forward.1} parent=55 // pred_fallthru
          _
      $region56: #{rwkv7_forward.1} parent=5 // pred_fallthru
        _
      %p413 = scmp.le.s32.totalorder 1, %s25
      %p414 = scmp.lt.s32.totalorder %s25, 3
      %p415 = pnand %p413, %p414
      %p416 = pneg %p415
      // Predicated region
      $region61: #{rwkv7_forward.1} parent=5 // pred_check
        _
      $region62: #{rwkv7_forward.1} parent=5 // pred_check_branch
        %418 = sbr.rel (%p415) target = $region64
      $region63: #{rwkv7_forward.1} parent=5 // pred_region
        %s419 = ssub.s32 %s25, 1
        // Predicated region
        $region65: #{rwkv7_forward.1} parent=63 // pred_check
          %p420 = pneg %p72
        $region66: #{rwkv7_forward.1} parent=63 // pred_check_branch
          %422 = sbr.rel (%p420) target = $region68
        $region67: #{rwkv7_forward.1} parent=63 // pred_region
          %423 = dma.done [#allocation3], 512
        $region68: #{rwkv7_forward.1} parent=63 // pred_fallthru
          _
        // Predicated region
        $region69: #{rwkv7_forward.1} parent=63 // pred_check
          %p424 = pneg %p93
        $region70: #{rwkv7_forward.1} parent=63 // pred_check_branch
          %426 = sbr.rel (%p424) target = $region72
        $region71: #{rwkv7_forward.1} parent=63 // pred_region
          %427 = dma.done [#allocation6], 256
        $region72: #{rwkv7_forward.1} parent=63 // pred_fallthru
          _
        // Predicated region
        $region73: #{rwkv7_forward.1} parent=63 // pred_check
          %p428 = pneg %p135
        $region74: #{rwkv7_forward.1} parent=63 // pred_check_branch
          %430 = sbr.rel (%p428) target = $region76
        $region75: #{rwkv7_forward.1} parent=63 // pred_region
          %431 = dma.done [#allocation6], 16
        $region76: #{rwkv7_forward.1} parent=63 // pred_fallthru
          _
        // Predicated region
        $region77: #{rwkv7_forward.1} parent=63 // pred_check
          %p432 = pneg %p177
        $region78: #{rwkv7_forward.1} parent=63 // pred_check_branch
          %434 = sbr.rel (%p432) target = $region80
        $region79: #{rwkv7_forward.1} parent=63 // pred_region
          %435 = dma.done [#allocation9], 16
        $region80: #{rwkv7_forward.1} parent=63 // pred_fallthru
          _
        // Predicated region
        $region81: #{rwkv7_forward.1} parent=63 // pred_check
          %p436 = pneg %p198
        $region82: #{rwkv7_forward.1} parent=63 // pred_check_branch
          %438 = sbr.rel (%p436) target = $region84
        $region83: #{rwkv7_forward.1} parent=63 // pred_region
          %439 = dma.done [#allocation9], 16
        $region84: #{rwkv7_forward.1} parent=63 // pred_fallthru
          _
        // Predicated region
        $region85: #{rwkv7_forward.1} parent=63 // pred_check
          %p440 = pneg %p219
        $region86: #{rwkv7_forward.1} parent=63 // pred_check_branch
          %442 = sbr.rel (%p440) target = $region88
        $region87: #{rwkv7_forward.1} parent=63 // pred_region
          %443 = dma.done [#allocation12], 16
        $region88: #{rwkv7_forward.1} parent=63 // pred_fallthru
          _
        // Predicated region
        $region89: #{rwkv7_forward.1} parent=63 // pred_check
          %p444 = pneg %p240
        $region90: #{rwkv7_forward.1} parent=63 // pred_check_branch
          %446 = sbr.rel (%p444) target = $region92
        $region91: #{rwkv7_forward.1} parent=63 // pred_region
          %447 = dma.done [#allocation12], 16
        $region92: #{rwkv7_forward.1} parent=63 // pred_fallthru
          _
        // Predicated region
        $region93: #{rwkv7_forward.1} parent=63 // pred_check
          %p448 = pneg %p261
        $region94: #{rwkv7_forward.1} parent=63 // pred_check_branch
          %450 = sbr.rel (%p448) target = $region96
        $region95: #{rwkv7_forward.1} parent=63 // pred_region
          %451 = dma.done [#allocation15], 256
        $region96: #{rwkv7_forward.1} parent=63 // pred_fallthru
          _
        %p452 = scmp.lt.s32.totalorder %s30, 1
        %s453 = scalar_select %p452, %s30, 1
        %s454 = smul.addr %s453, 8
        %s455 = scalar_lea.vmem %s0, %s454
        %p456 = pneg %p51
        %p457 = pneg %p48
        %p458 = pneg %p72
        %p459 = pneg %p69
        %p460 = pneg %p93
        %p461 = pneg %p90
        %p462 = pneg %p114
        %p463 = pneg %p111
        %p464 = pneg %p135
        %p465 = pneg %p132
        %p466 = pneg %p156
        %p467 = pneg %p153
        %p468 = pneg %p177
        %p469 = pneg %p174
        %p470 = pneg %p198
        %p471 = pneg %p195
        %p472 = pneg %p219
        %p473 = pneg %p216
        %p474 = pneg %p240
        %p475 = pneg %p237
        %p476 = pneg %p261
        %p477 = pneg %p258
        %p478 = pneg %p287
        %p479 = pneg %p284
        %s480 = sand.u32 %s274, 1
        %s481 = scalar_lea.sflag [#allocation4], %s480
        %s482 = sand.u32 %s274, 1
        %s483 = smul.addr %s482, 8
        %s484 = scalar_lea.vmem [#allocation16], %s483
        %p485 = scmp.lt.s32.totalorder %s30, 1
        %s486 = scalar_select %p485, %s30, 1
        %s487 = smul.addr %s486, 8
        %s488 = scalar_lea.vmem %s0, %s487
        %v490 = vlaneseq
        %v491 = vand.u32 %v490, 127
        %vm492 = vcmp.lt.s32.totalorder %v491, 0
        %v493 = vsub.s32 0, %v491
        %v494 = vsel %vm492, %v493, %v491
        %v495 = vshrl.u32 %v494, 3
        %v496 = vand.u32 %v494, 7
        %v497 = vsub.s32 0, %v496
        %v498 = vsel %vm492, %v497, %v496
        %vm499 = vcmp.ne.s32.totalorder %v498, 0
        %vm500 = vcmp.lt.s32.totalorder %v498, 0
        %vm501 = vmand %vm500, %vm499
        %v502 = vadd.s32 %v498, 8
        %v503 = vsel %vm501, %v502, %v498
        %vm504 = vcmp.lt.s32.totalorder %v503, 4
        %vm505 = vcmp.lt.s32.totalorder %v491, 0
        %v506 = vsub.s32 0, %v491
        %v507 = vsel %vm505, %v506, %v491
        %v508 = vshrl.u32 %v507, 2
        %v509 = vand.u32 %v507, 3
        %v510 = vsub.s32 0, %v509
        %v511 = vsel %vm505, %v510, %v509
        %vm512 = vcmp.ne.s32.totalorder %v511, 0
        %vm513 = vcmp.lt.s32.totalorder %v511, 0
        %vm514 = vmand %vm513, %vm512
        %v515 = vadd.s32 %v511, 4
        %v516 = vsel %vm514, %v515, %v511
        %vm517 = vcmp.lt.s32.totalorder %v516, 2
        %vm518 = vcmp.lt.s32.totalorder %v491, 0
        %v519 = vsub.s32 0, %v491
        %v520 = vsel %vm518, %v519, %v491
        %v521 = vshrl.u32 %v520, 1
        %v522 = vand.u32 %v520, 1
        %v523 = vsub.s32 0, %v522
        %v524 = vsel %vm518, %v523, %v522
        %vm525 = vcmp.ne.s32.totalorder %v524, 0
        %vm526 = vcmp.lt.s32.totalorder %v524, 0
        %vm527 = vmand %vm526, %vm525
        %v528 = vadd.s32 %v524, 2
        %v529 = vsel %vm527, %v528, %v524
        %vm530 = vcmp.lt.s32.totalorder %v529, 1
        %vm531 = vcmp.eq.s32.totalorder %v503, 0
        %vm532 = vcmp.eq.s32.totalorder %v503, 1
        %vm533 = vcmp.eq.s32.totalorder %v503, 2
        %vm534 = vcmp.eq.s32.totalorder %v503, 3
        %vm535 = vcmp.eq.s32.totalorder %v503, 4
        %vm536 = vcmp.eq.s32.totalorder %v503, 5
        %vm537 = vcmp.eq.s32.totalorder %v503, 6
        %vm538 = vcmp.eq.s32.totalorder %v503, 7
        %v539 = vlaneseq
        %v540 = vshrl.u32 %v539, 7
        %vm541 = vcmp.eq.s32.totalorder %v503, %v540
        %v542 = vsel %vm541, 1, 0
        %v543 = vcvt.s32.f32 %v542
        %v544 = vld [vmem:[%s488] sm:$0xff]
        %v546 = vrot.slane %v544, 7
        %vm548 = vcmask 1040384
        %v549 = vsel %vm548, 0.0, %v546
        %v550 = vsub.f32 %v549, %v544
        %552 = vrot.lane.b32.xlu0 %v550, 32
        %v553 = vpop.permute.xlu0 %552
        %vm555 = vcmask 261120
        %v556 = vsel %vm555, %v544, %v553
        %v557 = vpack.c.bf16 %v556, %v556
        %v558 = vld [vmem:[#allocation2] sm:$0xf]
        %v559 = vld [vmem:[#allocation2 + $0x4] sm:$0xf]
        %v560 = vld [vmem:[#allocation2 + $0x8] sm:$0xf]
        %v561 = vld [vmem:[#allocation2 + $0xc] sm:$0xf]
        %v562 = vld [vmem:[#allocation2 + $0x10] sm:$0xf]
        %v563 = vld [vmem:[#allocation2 + $0x14] sm:$0xf]
        %v564 = vld [vmem:[#allocation2 + $0x18] sm:$0xf]
        %v565 = vld [vmem:[#allocation2 + $0x1c] sm:$0xf]
        %v574 = vunpack.c.l.b16 %v558
        %v575 = vunpack.c.l.b16 %v559
        %v576 = vunpack.c.l.b16 %v560
        %v577 = vunpack.c.l.b16 %v561
        %v578 = vunpack.c.l.b16 %v562
        %v579 = vunpack.c.l.b16 %v563
        %v580 = vunpack.c.l.b16 %v564
        %v581 = vunpack.c.l.b16 %v565
        %v582 = vpack.c.b16 %v575, %v574
        %v583 = vpack.c.b16 %v577, %v576
        %v584 = vpack.c.b16 %v579, %v578
        %v585 = vpack.c.b16 %v581, %v580
        %vm590 = vcmask 523264
        %v592 = vsel %vm590, %v557, 0
        %594 = vmatprep.subr.bf16.mxu0 0
        %595 = vmatpush1.bf16.msra.mxu0 0
        %596 = vmatprep.subr.bf16.mxu0 0
        %597 = vmatpush1.bf16.msra.mxu0 0
        %598 = vmatprep.subr.bf16.mxu0 0
        %599 = vmatpush1.bf16.msra.mxu0 0
        %600 = vmatprep.subr.bf16.mxu0 0
        %601 = vmatpush1.bf16.msra.mxu0 0
        %602 = vmatprep.subr.bf16.mxu0 0
        %603 = vmatpush1.bf16.msra.mxu0 %v585
        %604 = vmatprep.subr.bf16.mxu0 0
        %605 = vmatpush1.bf16.msra.mxu0 %v584
        %606 = vmatprep.subr.bf16.mxu0 0
        %607 = vmatpush1.bf16.msra.mxu0 %v583
        %608 = vmatprep.subr.bf16.mxu0 0
        %609 = vmatpush1.bf16.msra.mxu0 %v582
        %610 = vmatprep.subr.bf16.mxu0 0
        %611 = vmatpush2.bf16.msra.mxu0 0
        %612 = vmatprep.subr.bf16.mxu0 0
        %613 = vmatpush2.bf16.msra.mxu0 0
        %614 = vmatprep.subr.bf16.mxu0 0
        %615 = vmatpush2.bf16.msra.mxu0 0
        %616 = vmatprep.subr.bf16.mxu0 0
        %617 = vmatpush2.bf16.msra.mxu0 0
        %618 = vmatprep.subr.bf16.mxu0 0
        %619 = vmatpush2.bf16.msra.mxu0 0
        %620 = vmatprep.subr.bf16.mxu0 0
        %621 = vmatpush2.bf16.msra.mxu0 0
        %622 = vmatprep.subr.bf16.mxu0 0
        %623 = vmatpush2.bf16.msra.mxu0 0
        %624 = vmatprep.subr.bf16.mxu0 0
        %625 = vmatpush2.bf16.msra.mxu0 0
        %626 = vmatprep.mubr.bf16.mxu0 0
        %627 = vmatmul.mubr.bf16.gmra.mxu0 %v592
        %v628 = vpop.f32.mrf.mxu0
        %v629 = vadd.f32 0.0, %v628
        %v630 = vpop.f32.mrf.mxu0
        %v631 = vpop.f32.mrf.mxu0
        %v632 = vpop.f32.mrf.mxu0
        %633 = vdwg.mxu0
        %vm634 = vcmp.lt.s32.totalorder %v491, 8
        %v635 = vtanh.pop %v629
        %vm636 = vcmp.lt.s32.totalorder %v491, 16
        %v637 = vxor.u32 %v629, 2147483648
        %v638 = vmul.f32 %v637, 1.442695
        %v639 = vpow.pop %v638
        %v640 = vadd.f32 %v639, 1.0
        %v641 = vrcp.pop %v640
        %v642 = vmul.f32 1.0, %v641
        %644 = vrot.lane.b32.xlu0 %v629, 32
        %v645 = vpop.permute.xlu0 %644
        %648 = vrot.lane.b32.xlu0 %v642, 32
        %v649 = vpop.permute.xlu0 %648
        %v651 = vsel %vm636, %v645, %v649
        %653 = vrot.lane.b32.xlu0 %v635, 32
        %v654 = vpop.permute.xlu0 %653
        %v656 = vsel %vm634, %v654, %v651
        %v657 = vpack.c.bf16 %v656, %v656
        %v658 = vld [vmem:[#allocation5] sm:$0xf]
        %v659 = vld [vmem:[#allocation5 + $0x4] sm:$0xf]
        %v660 = vld [vmem:[#allocation5 + $0x8] sm:$0xf]
        %v661 = vld [vmem:[#allocation5 + $0xc] sm:$0xf]
        %v666 = vunpack.c.l.b16 %v658
        %v667 = vunpack.c.l.b16 %v659
        %v668 = vunpack.c.l.b16 %v660
        %v669 = vunpack.c.l.b16 %v661
        %v670 = vpack.c.b16 %v667, %v666
        %v671 = vpack.c.b16 %v669, %v668
        %v675 = vsel %vm555, %v657, 0
        %677 = vmatprep.subr.bf16.mxu0 0
        %678 = vmatpush1.bf16.msra.mxu0 0
        %679 = vmatprep.subr.bf16.mxu0 0
        %680 = vmatpush1.bf16.msra.mxu0 0
        %681 = vmatprep.subr.bf16.mxu0 0
        %682 = vmatpush1.bf16.msra.mxu0 0
        %683 = vmatprep.subr.bf16.mxu0 0
        %684 = vmatpush1.bf16.msra.mxu0 0
        %685 = vmatprep.subr.bf16.mxu0 0
        %686 = vmatpush1.bf16.msra.mxu0 0
        %687 = vmatprep.subr.bf16.mxu0 0
        %688 = vmatpush1.bf16.msra.mxu0 0
        %689 = vmatprep.subr.bf16.mxu0 0
        %690 = vmatpush1.bf16.msra.mxu0 %v671
        %691 = vmatprep.subr.bf16.mxu0 0
        %692 = vmatpush1.bf16.msra.mxu0 %v670
        %693 = vmatprep.subr.bf16.mxu0 0
        %694 = vmatpush2.bf16.msra.mxu0 0
        %695 = vmatprep.subr.bf16.mxu0 0
        %696 = vmatpush2.bf16.msra.mxu0 0
        %697 = vmatprep.subr.bf16.mxu0 0
        %698 = vmatpush2.bf16.msra.mxu0 0
        %699 = vmatprep.subr.bf16.mxu0 0
        %700 = vmatpush2.bf16.msra.mxu0 0
        %701 = vmatprep.subr.bf16.mxu0 0
        %702 = vmatpush2.bf16.msra.mxu0 0
        %703 = vmatprep.subr.bf16.mxu0 0
        %704 = vmatpush2.bf16.msra.mxu0 0
        %705 = vmatprep.subr.bf16.mxu0 0
        %706 = vmatpush2.bf16.msra.mxu0 0
        %707 = vmatprep.subr.bf16.mxu0 0
        %708 = vmatpush2.bf16.msra.mxu0 0
        %709 = vmatprep.mubr.bf16.mxu0 0
        %710 = vmatmul.mubr.bf16.gmra.mxu0 %v675
        %v711 = vpop.f32.mrf.mxu0
        %v712 = vadd.f32 0.0, %v711
        %v713 = vpop.f32.mrf.mxu0
        %v714 = vpop.f32.mrf.mxu0
        %v715 = vpop.f32.mrf.mxu0
        %716 = vdwg.mxu0
        %v717 = vld [vmem:[%s3] sm:$0x1]
        %v719 = vlaneseq
        %v720 = vshrl.u32 %v719, 7
        %v721 = vsub.s32 0, %v720
        %v722 = vrot.slane %v717, %v721
        %v724 = vadd.f32 %v712, %v722
        %v725 = vxor.u32 %v724, 2147483648
        %v726 = vmul.f32 %v725, 1.442695
        %v727 = vpow.pop %v726
        %v728 = vadd.f32 %v727, 1.0
        %v729 = vrcp.pop %v728
        %v730 = vmul.f32 1.0, %v729
        %v731 = vmul.f32 %v730, -0.60653067
        %v732 = vmul.f32 %v731, 1.442695
        %v733 = vpow.pop %v732
        %v734 = vld [vmem:[#allocation7] sm:$0x1]
        %v736 = vlaneseq
        %v737 = vshrl.u32 %v736, 7
        %v738 = vsub.s32 0, %v737
        %v739 = vrot.slane %v734, %v738
        %740 = vrot.lane.b32.xlu0 %v739, 32
        %v741 = vpop.permute.xlu0 %740
        %v743 = vadd.f32 %v712, %v741
        %v744 = vxor.u32 %v743, 2147483648
        %v745 = vmul.f32 %v744, 1.442695
        %v746 = vpow.pop %v745
        %v747 = vadd.f32 %v746, 1.0
        %v748 = vrcp.pop %v747
        %v749 = vmul.f32 1.0, %v748
        %v750 = vld [vmem:[%s5] sm:$0x1]
        %v752 = vlaneseq
        %v753 = vshrl.u32 %v752, 7
        %v754 = vsub.s32 0, %v753
        %v755 = vrot.slane %v750, %v754
        %756 = vrot.lane.b32.xlu0 %v755, 32
        %v757 = vpop.permute.xlu0 %756
        %v759 = vmul.f32 %v629, %v757
        %v760 = vmul.f32 %v759, %v759
        %762 = vrot.lane.b32.xlu0 %v760, 96
        %v763 = vpop.permute.xlu0 %762
        %vm765 = vcmask 1047808
        %766 = vrot.lane.b32.xlu0 %v763, 32
        %v767 = vpop.permute.xlu0 %766
        %v768 = vsel %vm765, %v767, %v763
        %769 = vrot.lane.b32.xlu0 %v768, 32
        %v770 = vpop.permute.xlu0 %769
        %v771 = vsel %vm765, %v770, %v763
        %v772 = vsel %vm504, 1, 0
        %vm773 = vcmp.eq.s32.totalorder %v772, 1
        %775 = vrot.lane.b32.xlu0 %v771, 124
        %v776 = vpop.permute.xlu0 %775
        %778 = vrot.lane.b32.xlu0 %v771, 100
        %v779 = vpop.permute.xlu0 %778
        %v781 = vsel %vm773, %v776, %v779
        %783 = vrot.lane.b32.xlu0 %v781, 32
        %v784 = vpop.permute.xlu0 %783
        %v786 = vadd.f32 %v760, %v784
        %788 = vrot.lane.b32.xlu0 %v786, 96
        %v789 = vpop.permute.xlu0 %788
        %791 = vrot.lane.b32.xlu0 %v789, 32
        %v792 = vpop.permute.xlu0 %791
        %v793 = vsel %vm765, %v792, %v789
        %794 = vrot.lane.b32.xlu0 %v793, 32
        %v795 = vpop.permute.xlu0 %794
        %v796 = vsel %vm765, %v795, %v789
        %v797 = vsel %vm517, 1, 0
        %vm798 = vcmp.eq.s32.totalorder %v797, 1
        %800 = vrot.lane.b32.xlu0 %v796, 126
        %v801 = vpop.permute.xlu0 %800
        %803 = vrot.lane.b32.xlu0 %v796, 98
        %v804 = vpop.permute.xlu0 %803
        %v806 = vsel %vm798, %v801, %v804
        %808 = vrot.lane.b32.xlu0 %v806, 32
        %v809 = vpop.permute.xlu0 %808
        %v811 = vadd.f32 %v786, %v809
        %813 = vrot.lane.b32.xlu0 %v811, 96
        %v814 = vpop.permute.xlu0 %813
        %816 = vrot.lane.b32.xlu0 %v814, 32
        %v817 = vpop.permute.xlu0 %816
        %v818 = vsel %vm765, %v817, %v814
        %819 = vrot.lane.b32.xlu0 %v818, 32
        %v820 = vpop.permute.xlu0 %819
        %v821 = vsel %vm765, %v820, %v814
        %v822 = vsel %vm530, 1, 0
        %vm823 = vcmp.eq.s32.totalorder %v822, 1
        %825 = vrot.lane.b32.xlu0 %v821, 127
        %v826 = vpop.permute.xlu0 %825
        %828 = vrot.lane.b32.xlu0 %v821, 97
        %v829 = vpop.permute.xlu0 %828
        %v831 = vsel %vm823, %v826, %v829
        %833 = vrot.lane.b32.xlu0 %v831, 32
        %v834 = vpop.permute.xlu0 %833
        %v836 = vadd.f32 %v811, %v834
        %v837 = vadd.f32 %v836, 1e-06
        %v838 = vrsqrt.pop %v837
        %v839 = vmul.f32 %v759, %v838
        %v840 = vsub.f32 %v749, 1.0
        %v841 = vmul.f32 %v629, %v840
        %v842 = vld [vmem:[#allocation8] sm:$0x1]
        %v844 = vlaneseq
        %v845 = vshrl.u32 %v844, 7
        %v846 = vsub.s32 0, %v845
        %v847 = vrot.slane %v842, %v846
        %848 = vrot.lane.b32.xlu0 %v847, 32
        %v849 = vpop.permute.xlu0 %848
        %v851 = vmul.f32 %v841, %v849
        %v852 = vadd.f32 %v629, %v851
        %v853 = vsub.f32 0.0, %v839
        %v854 = vmul.f32 %v839, %v749
        %v855 = vlaneseq
        %v856 = vshrl.u32 %v855, 7
        %v857 = vsub.s32 0, %v856
        %v858 = vrot.slane %v629, %v857
        %860 = vrot.lane.b32.xlu0 %v858, 64
        %v861 = vpop.permute.xlu0 %860
        %v863 = vmul.f32 %v543, %v861
        %864 = vrot.lane.b32.xlu0 %v863, 32
        %v865 = vpop.permute.xlu0 %864
        %v866 = vsel %vm765, %v865, %v863
        %867 = vrot.lane.b32.xlu0 %v866, 32
        %v868 = vpop.permute.xlu0 %867
        %v869 = vsel %vm765, %v868, %v863
        %871 = vrot.lane.b32.xlu0 %v869, 124
        %v872 = vpop.permute.xlu0 %871
        %874 = vrot.lane.b32.xlu0 %v869, 100
        %v875 = vpop.permute.xlu0 %874
        %v877 = vsel %vm773, %v872, %v875
        %v878 = vadd.f32 %v863, %v877
        %879 = vrot.lane.b32.xlu0 %v878, 32
        %v880 = vpop.permute.xlu0 %879
        %v881 = vsel %vm765, %v880, %v878
        %882 = vrot.lane.b32.xlu0 %v881, 32
        %v883 = vpop.permute.xlu0 %882
        %v884 = vsel %vm765, %v883, %v878
        %886 = vrot.lane.b32.xlu0 %v884, 126
        %v887 = vpop.permute.xlu0 %886
        %889 = vrot.lane.b32.xlu0 %v884, 98
        %v890 = vpop.permute.xlu0 %889
        %v892 = vsel %vm798, %v887, %v890
        %v893 = vadd.f32 %v878, %v892
        %894 = vrot.lane.b32.xlu0 %v893, 32
        %v895 = vpop.permute.xlu0 %894
        %v896 = vsel %vm765, %v895, %v893
        %897 = vrot.lane.b32.xlu0 %v896, 32
        %v898 = vpop.permute.xlu0 %897
        %v899 = vsel %vm765, %v898, %v893
        %901 = vrot.lane.b32.xlu0 %v899, 127
        %v902 = vpop.permute.xlu0 %901
        %904 = vrot.lane.b32.xlu0 %v899, 97
        %v905 = vpop.permute.xlu0 %904
        %v907 = vsel %vm823, %v902, %v905
        %v908 = vadd.f32 %v893, %v907
        %v909 = vlaneseq
        %v910 = vshrl.u32 %v909, 7
        %v911 = vsub.s32 0, %v910
        %v912 = vrot.slane %v852, %v911
        %914 = vrot.lane.b32.xlu0 %v912, 96
        %v915 = vpop.permute.xlu0 %914
        %v917 = vmul.f32 %v908, %v915
        %v918 = vlaneseq
        %v919 = vshrl.u32 %v918, 7
        %v920 = vsub.s32 0, %v919
        %v921 = vrot.slane %v853, %v920
        %v922 = vmul.f32 %v921, 0.0
        %924 = vrot.lane.b32.xlu0 %v922, 96
        %v925 = vpop.permute.xlu0 %924
        %927 = vrot.lane.b32.xlu0 %v925, 32
        %v928 = vpop.permute.xlu0 %927
        %v929 = vsel %vm765, %v928, %v925
        %930 = vrot.lane.b32.xlu0 %v929, 32
        %v931 = vpop.permute.xlu0 %930
        %v932 = vsel %vm765, %v931, %v925
        %934 = vrot.lane.b32.xlu0 %v932, 124
        %v935 = vpop.permute.xlu0 %934
        %937 = vrot.lane.b32.xlu0 %v932, 100
        %v938 = vpop.permute.xlu0 %937
        %v940 = vsel %vm773, %v935, %v938
        %942 = vrot.lane.b32.xlu0 %v940, 32
        %v943 = vpop.permute.xlu0 %942
        %v945 = vadd.f32 %v922, %v943
        %947 = vrot.lane.b32.xlu0 %v945, 96
        %v948 = vpop.permute.xlu0 %947
        %950 = vrot.lane.b32.xlu0 %v948, 32
        %v951 = vpop.permute.xlu0 %950
        %v952 = vsel %vm765, %v951, %v948
        %953 = vrot.lane.b32.xlu0 %v952, 32
        %v954 = vpop.permute.xlu0 %953
        %v955 = vsel %vm765, %v954, %v948
        %957 = vrot.lane.b32.xlu0 %v955, 126
        %v958 = vpop.permute.xlu0 %957
        %960 = vrot.lane.b32.xlu0 %v955, 98
        %v961 = vpop.permute.xlu0 %960
        %v963 = vsel %vm798, %v958, %v961
        %965 = vrot.lane.b32.xlu0 %v963, 32
        %v966 = vpop.permute.xlu0 %965
        %v968 = vadd.f32 %v945, %v966
        %970 = vrot.lane.b32.xlu0 %v968, 96
        %v971 = vpop.permute.xlu0 %970
        %973 = vrot.lane.b32.xlu0 %v971, 32
        %v974 = vpop.permute.xlu0 %973
        %v975 = vsel %vm765, %v974, %v971
        %976 = vrot.lane.b32.xlu0 %v975, 32
        %v977 = vpop.permute.xlu0 %976
        %v978 = vsel %vm765, %v977, %v971
        %980 = vrot.lane.b32.xlu0 %v978, 127
        %v981 = vpop.permute.xlu0 %980
        %983 = vrot.lane.b32.xlu0 %v978, 97
        %v984 = vpop.permute.xlu0 %983
        %v986 = vsel %vm823, %v981, %v984
        %988 = vrot.lane.b32.xlu0 %v986, 32
        %v989 = vpop.permute.xlu0 %988
        %v991 = vadd.f32 %v968, %v989
        %v992 = vlaneseq
        %v993 = vshrl.u32 %v992, 7
        %v994 = vsub.s32 0, %v993
        %v995 = vrot.slane %v733, %v994
        %v996 = vmul.f32 %v995, 0.0
        %v997 = vlaneseq
        %v998 = vshrl.u32 %v997, 7
        %v999 = vsub.s32 0, %v998
        %v1000 = vrot.slane %v854, %v999
        %v1001 = vmul.f32 %v991, %v1000
        %1003 = vrot.lane.b32.xlu0 %v1001, 96
        %v1004 = vpop.permute.xlu0 %1003
        %v1006 = vadd.f32 %v996, %v1004
        %v1007 = vadd.f32 %v1006, %v917
        %v1008 = vmul.f32 %v1007, %v858
        %1009 = vrot.lane.b32.xlu0 %v1008, 32
        %v1010 = vpop.permute.xlu0 %1009
        %v1011 = vsel %vm765, %v1010, %v1008
        %1012 = vrot.lane.b32.xlu0 %v1011, 32
        %v1013 = vpop.permute.xlu0 %1012
        %v1014 = vsel %vm765, %v1013, %v1008
        %1016 = vrot.lane.b32.xlu0 %v1014, 124
        %v1017 = vpop.permute.xlu0 %1016
        %1019 = vrot.lane.b32.xlu0 %v1014, 100
        %v1020 = vpop.permute.xlu0 %1019
        %v1022 = vsel %vm773, %v1017, %v1020
        %v1023 = vadd.f32 %v1008, %v1022
        %1024 = vrot.lane.b32.xlu0 %v1023, 32
        %v1025 = vpop.permute.xlu0 %1024
        %v1026 = vsel %vm765, %v1025, %v1023
        %1027 = vrot.lane.b32.xlu0 %v1026, 32
        %v1028 = vpop.permute.xlu0 %1027
        %v1029 = vsel %vm765, %v1028, %v1023
        %1031 = vrot.lane.b32.xlu0 %v1029, 126
        %v1032 = vpop.permute.xlu0 %1031
        %1034 = vrot.lane.b32.xlu0 %v1029, 98
        %v1035 = vpop.permute.xlu0 %1034
        %v1037 = vsel %vm798, %v1032, %v1035
        %v1038 = vadd.f32 %v1023, %v1037
        %1039 = vrot.lane.b32.xlu0 %v1038, 32
        %v1040 = vpop.permute.xlu0 %1039
        %v1041 = vsel %vm765, %v1040, %v1038
        %1042 = vrot.lane.b32.xlu0 %v1041, 32
        %v1043 = vpop.permute.xlu0 %1042
        %v1044 = vsel %vm765, %v1043, %v1038
        %1046 = vrot.lane.b32.xlu0 %v1044, 127
        %v1047 = vpop.permute.xlu0 %1046
        %1049 = vrot.lane.b32.xlu0 %v1044, 97
        %v1050 = vpop.permute.xlu0 %1049
        %v1052 = vsel %vm823, %v1047, %v1050
        %v1053 = vadd.f32 %v1038, %v1052
        %v1054 = vsel %vm531, %v1053, 0.0
        %v1055 = vadd.f32 %v1054, 0.0
        %v1056 = vsel %vm532, %v1053, 0.0
        %v1058 = vrot.slane %v1056, 1
        %v1060 = vadd.f32 %v1055, %v1058
        %v1061 = vsel %vm533, %v1053, 0.0
        %v1063 = vrot.slane %v1061, 2
        %v1065 = vadd.f32 %v1060, %v1063
        %v1066 = vsel %vm534, %v1053, 0.0
        %v1068 = vrot.slane %v1066, 3
        %v1070 = vadd.f32 %v1065, %v1068
        %v1071 = vsel %vm535, %v1053, 0.0
        %v1073 = vrot.slane %v1071, 4
        %v1075 = vadd.f32 %v1070, %v1073
        %v1076 = vsel %vm536, %v1053, 0.0
        %v1078 = vrot.slane %v1076, 5
        %v1080 = vadd.f32 %v1075, %v1078
        %v1081 = vsel %vm537, %v1053, 0.0
        %v1083 = vrot.slane %v1081, 6
        %v1085 = vadd.f32 %v1080, %v1083
        %v1086 = vsel %vm538, %v1053, 0.0
        %v1088 = vrot.slane %v1086, 7
        %v1090 = vadd.f32 %v1085, %v1088
        %vm1091 = vcmp.eq.s32.totalorder %v540, 0
        %v1092 = vlaneseq
        %v1093 = vshrl.u32 %v1092, 7
        %v1094 = vsub.s32 0, %v1093
        %v1095 = vrot.slane %v1090, %v1094
        %v1096 = vsel %vm1091, %v1095, 0.0
        %v1097 = vlaneseq
        %v1098 = vshrl.u32 %v1097, 7
        %v1099 = vsub.s32 1, %v1098
        %v1100 = vrot.slane %v629, %v1099
        %1102 = vrot.lane.b32.xlu0 %v1100, 64
        %v1103 = vpop.permute.xlu0 %1102
        %v1105 = vmul.f32 %v543, %v1103
        %1106 = vrot.lane.b32.xlu0 %v1105, 32
        %v1107 = vpop.permute.xlu0 %1106
        %v1108 = vsel %vm765, %v1107, %v1105
        %1109 = vrot.lane.b32.xlu0 %v1108, 32
        %v1110 = vpop.permute.xlu0 %1109
        %v1111 = vsel %vm765, %v1110, %v1105
        %1113 = vrot.lane.b32.xlu0 %v1111, 124
        %v1114 = vpop.permute.xlu0 %1113
        %1116 = vrot.lane.b32.xlu0 %v1111, 100
        %v1117 = vpop.permute.xlu0 %1116
        %v1119 = vsel %vm773, %v1114, %v1117
        %v1120 = vadd.f32 %v1105, %v1119
        %1121 = vrot.lane.b32.xlu0 %v1120, 32
        %v1122 = vpop.permute.xlu0 %1121
        %v1123 = vsel %vm765, %v1122, %v1120
        %1124 = vrot.lane.b32.xlu0 %v1123, 32
        %v1125 = vpop.permute.xlu0 %1124
        %v1126 = vsel %vm765, %v1125, %v1120
        %1128 = vrot.lane.b32.xlu0 %v1126, 126
        %v1129 = vpop.permute.xlu0 %1128
        %1131 = vrot.lane.b32.xlu0 %v1126, 98
        %v1132 = vpop.permute.xlu0 %1131
        %v1134 = vsel %vm798, %v1129, %v1132
        %v1135 = vadd.f32 %v1120, %v1134
        %1136 = vrot.lane.b32.xlu0 %v1135, 32
        %v1137 = vpop.permute.xlu0 %1136
        %v1138 = vsel %vm765, %v1137, %v1135
        %1139 = vrot.lane.b32.xlu0 %v1138, 32
        %v1140 = vpop.permute.xlu0 %1139
        %v1141 = vsel %vm765, %v1140, %v1135
        %1143 = vrot.lane.b32.xlu0 %v1141, 127
        %v1144 = vpop.permute.xlu0 %1143
        %1146 = vrot.lane.b32.xlu0 %v1141, 97
        %v1147 = vpop.permute.xlu0 %1146
        %v1149 = vsel %vm823, %v1144, %v1147
        %v1150 = vadd.f32 %v1135, %v1149
        %v1151 = vlaneseq
        %v1152 = vshrl.u32 %v1151, 7
        %v1153 = vsub.s32 1, %v1152
        %v1154 = vrot.slane %v852, %v1153
        %1156 = vrot.lane.b32.xlu0 %v1154, 96
        %v1157 = vpop.permute.xlu0 %1156
        %v1159 = vmul.f32 %v1150, %v1157
        %v1160 = vlaneseq
        %v1161 = vshrl.u32 %v1160, 7
        %v1162 = vsub.s32 1, %v1161
        %v1163 = vrot.slane %v853, %v1162
        %1165 = vrot.lane.b32.xlu0 %v1163, 96
        %v1166 = vpop.permute.xlu0 %1165
        %v1168 = vmul.f32 %v1007, %v1166
        %1169 = vrot.lane.b32.xlu0 %v1168, 32
        %v1170 = vpop.permute.xlu0 %1169
        %v1171 = vsel %vm765, %v1170, %v1168
        %1172 = vrot.lane.b32.xlu0 %v1171, 32
        %v1173 = vpop.permute.xlu0 %1172
        %v1174 = vsel %vm765, %v1173, %v1168
        %1176 = vrot.lane.b32.xlu0 %v1174, 124
        %v1177 = vpop.permute.xlu0 %1176
        %1179 = vrot.lane.b32.xlu0 %v1174, 100
        %v1180 = vpop.permute.xlu0 %1179
        %v1182 = vsel %vm773, %v1177, %v1180
        %v1183 = vadd.f32 %v1168, %v1182
        %1184 = vrot.lane.b32.xlu0 %v1183, 32
        %v1185 = vpop.permute.xlu0 %1184
        %v1186 = vsel %vm765, %v1185, %v1183
        %1187 = vrot.lane.b32.xlu0 %v1186, 32
        %v1188 = vpop.permute.xlu0 %1187
        %v1189 = vsel %vm765, %v1188, %v1183
        %1191 = vrot.lane.b32.xlu0 %v1189, 126
        %v1192 = vpop.permute.xlu0 %1191
        %1194 = vrot.lane.b32.xlu0 %v1189, 98
        %v1195 = vpop.permute.xlu0 %1194
        %v1197 = vsel %vm798, %v1192, %v1195
        %v1198 = vadd.f32 %v1183, %v1197
        %1199 = vrot.lane.b32.xlu0 %v1198, 32
        %v1200 = vpop.permute.xlu0 %1199
        %v1201 = vsel %vm765, %v1200, %v1198
        %1202 = vrot.lane.b32.xlu0 %v1201, 32
        %v1203 = vpop.permute.xlu0 %1202
        %v1204 = vsel %vm765, %v1203, %v1198
        %1206 = vrot.lane.b32.xlu0 %v1204, 127
        %v1207 = vpop.permute.xlu0 %1206
        %1209 = vrot.lane.b32.xlu0 %v1204, 97
        %v1210 = vpop.permute.xlu0 %1209
        %v1212 = vsel %vm823, %v1207, %v1210
        %v1213 = vadd.f32 %v1198, %v1212
        %v1214 = vlaneseq
        %v1215 = vshrl.u32 %v1214, 7
        %v1216 = vsub.s32 1, %v1215
        %v1217 = vrot.slane %v733, %v1216
        %v1218 = vmul.f32 %v1007, %v1217
        %v1219 = vlaneseq
        %v1220 = vshrl.u32 %v1219, 7
        %v1221 = vsub.s32 1, %v1220
        %v1222 = vrot.slane %v854, %v1221
        %1224 = vrot.lane.b32.xlu0 %v1222, 96
        %v1225 = vpop.permute.xlu0 %1224
        %v1227 = vmul.f32 %v1213, %v1225
        %v1228 = vadd.f32 %v1218, %v1227
        %v1229 = vadd.f32 %v1228, %v1159
        %v1230 = vmul.f32 %v1229, %v1100
        %1231 = vrot.lane.b32.xlu0 %v1230, 32
        %v1232 = vpop.permute.xlu0 %1231
        %v1233 = vsel %vm765, %v1232, %v1230
        %1234 = vrot.lane.b32.xlu0 %v1233, 32
        %v1235 = vpop.permute.xlu0 %1234
        %v1236 = vsel %vm765, %v1235, %v1230
        %1238 = vrot.lane.b32.xlu0 %v1236, 124
        %v1239 = vpop.permute.xlu0 %1238
        %1241 = vrot.lane.b32.xlu0 %v1236, 100
        %v1242 = vpop.permute.xlu0 %1241
        %v1244 = vsel %vm773, %v1239, %v1242
        %v1245 = vadd.f32 %v1230, %v1244
        %1246 = vrot.lane.b32.xlu0 %v1245, 32
        %v1247 = vpop.permute.xlu0 %1246
        %v1248 = vsel %vm765, %v1247, %v1245
        %1249 = vrot.lane.b32.xlu0 %v1248, 32
        %v1250 = vpop.permute.xlu0 %1249
        %v1251 = vsel %vm765, %v1250, %v1245
        %1253 = vrot.lane.b32.xlu0 %v1251, 126
        %v1254 = vpop.permute.xlu0 %1253
        %1256 = vrot.lane.b32.xlu0 %v1251, 98
        %v1257 = vpop.permute.xlu0 %1256
        %v1259 = vsel %vm798, %v1254, %v1257
        %v1260 = vadd.f32 %v1245, %v1259
        %1261 = vrot.lane.b32.xlu0 %v1260, 32
        %v1262 = vpop.permute.xlu0 %1261
        %v1263 = vsel %vm765, %v1262, %v1260
        %1264 = vrot.lane.b32.xlu0 %v1263, 32
        %v1265 = vpop.permute.xlu0 %1264
        %v1266 = vsel %vm765, %v1265, %v1260
        %1268 = vrot.lane.b32.xlu0 %v1266, 127
        %v1269 = vpop.permute.xlu0 %1268
        %1271 = vrot.lane.b32.xlu0 %v1266, 97
        %v1272 = vpop.permute.xlu0 %1271
        %v1274 = vsel %vm823, %v1269, %v1272
        %v1275 = vadd.f32 %v1260, %v1274
        %v1276 = vsel %vm531, %v1275, 0.0
        %v1277 = vadd.f32 %v1276, 0.0
        %v1278 = vsel %vm532, %v1275, 0.0
        %v1280 = vrot.slane %v1278, 1
        %v1282 = vadd.f32 %v1277, %v1280
        %v1283 = vsel %vm533, %v1275, 0.0
        %v1285 = vrot.slane %v1283, 2
        %v1287 = vadd.f32 %v1282, %v1285
        %v1288 = vsel %vm534, %v1275, 0.0
        %v1290 = vrot.slane %v1288, 3
        %v1292 = vadd.f32 %v1287, %v1290
        %v1293 = vsel %vm535, %v1275, 0.0
        %v1295 = vrot.slane %v1293, 4
        %v1297 = vadd.f32 %v1292, %v1295
        %v1298 = vsel %vm536, %v1275, 0.0
        %v1300 = vrot.slane %v1298, 5
        %v1302 = vadd.f32 %v1297, %v1300
        %v1303 = vsel %vm537, %v1275, 0.0
        %v1305 = vrot.slane %v1303, 6
        %v1307 = vadd.f32 %v1302, %v1305
        %v1308 = vsel %vm538, %v1275, 0.0
        %v1310 = vrot.slane %v1308, 7
        %v1312 = vadd.f32 %v1307, %v1310
        %vm1313 = vcmp.eq.s32.totalorder %v540, 1
        %v1314 = vlaneseq
        %v1315 = vshrl.u32 %v1314, 7
        %v1316 = vsub.s32 0, %v1315
        %v1317 = vrot.slane %v1312, %v1316
        %v1318 = vsel %vm1313, %v1317, %v1096
        %v1319 = vlaneseq
        %v1320 = vshrl.u32 %v1319, 7
        %v1321 = vsub.s32 2, %v1320
        %v1322 = vrot.slane %v629, %v1321
        %1324 = vrot.lane.b32.xlu0 %v1322, 64
        %v1325 = vpop.permute.xlu0 %1324
        %v1327 = vmul.f32 %v543, %v1325
        %1328 = vrot.lane.b32.xlu0 %v1327, 32
        %v1329 = vpop.permute.xlu0 %1328
        %v1330 = vsel %vm765, %v1329, %v1327
        %1331 = vrot.lane.b32.xlu0 %v1330, 32
        %v1332 = vpop.permute.xlu0 %1331
        %v1333 = vsel %vm765, %v1332, %v1327
        %1335 = vrot.lane.b32.xlu0 %v1333, 124
        %v1336 = vpop.permute.xlu0 %1335
        %1338 = vrot.lane.b32.xlu0 %v1333, 100
        %v1339 = vpop.permute.xlu0 %1338
        %v1341 = vsel %vm773, %v1336, %v1339
        %v1342 = vadd.f32 %v1327, %v1341
        %1343 = vrot.lane.b32.xlu0 %v1342, 32
        %v1344 = vpop.permute.xlu0 %1343
        %v1345 = vsel %vm765, %v1344, %v1342
        %1346 = vrot.lane.b32.xlu0 %v1345, 32
        %v1347 = vpop.permute.xlu0 %1346
        %v1348 = vsel %vm765, %v1347, %v1342
        %1350 = vrot.lane.b32.xlu0 %v1348, 126
        %v1351 = vpop.permute.xlu0 %1350
        %1353 = vrot.lane.b32.xlu0 %v1348, 98
        %v1354 = vpop.permute.xlu0 %1353
        %v1356 = vsel %vm798, %v1351, %v1354
        %v1357 = vadd.f32 %v1342, %v1356
        %1358 = vrot.lane.b32.xlu0 %v1357, 32
        %v1359 = vpop.permute.xlu0 %1358
        %v1360 = vsel %vm765, %v1359, %v1357
        %1361 = vrot.lane.b32.xlu0 %v1360, 32
        %v1362 = vpop.permute.xlu0 %1361
        %v1363 = vsel %vm765, %v1362, %v1357
        %1365 = vrot.lane.b32.xlu0 %v1363, 127
        %v1366 = vpop.permute.xlu0 %1365
        %1368 = vrot.lane.b32.xlu0 %v1363, 97
        %v1369 = vpop.permute.xlu0 %1368
        %v1371 = vsel %vm823, %v1366, %v1369
        %v1372 = vadd.f32 %v1357, %v1371
        %v1373 = vlaneseq
        %v1374 = vshrl.u32 %v1373, 7
        %v1375 = vsub.s32 2, %v1374
        %v1376 = vrot.slane %v852, %v1375
        %1378 = vrot.lane.b32.xlu0 %v1376, 96
        %v1379 = vpop.permute.xlu0 %1378
        %v1381 = vmul.f32 %v1372, %v1379
        %v1382 = vlaneseq
        %v1383 = vshrl.u32 %v1382, 7
        %v1384 = vsub.s32 2, %v1383
        %v1385 = vrot.slane %v853, %v1384
        %1387 = vrot.lane.b32.xlu0 %v1385, 96
        %v1388 = vpop.permute.xlu0 %1387
        %v1390 = vmul.f32 %v1229, %v1388
        %1391 = vrot.lane.b32.xlu0 %v1390, 32
        %v1392 = vpop.permute.xlu0 %1391
        %v1393 = vsel %vm765, %v1392, %v1390
        %1394 = vrot.lane.b32.xlu0 %v1393, 32
        %v1395 = vpop.permute.xlu0 %1394
        %v1396 = vsel %vm765, %v1395, %v1390
        %1398 = vrot.lane.b32.xlu0 %v1396, 124
        %v1399 = vpop.permute.xlu0 %1398
        %1401 = vrot.lane.b32.xlu0 %v1396, 100
        %v1402 = vpop.permute.xlu0 %1401
        %v1404 = vsel %vm773, %v1399, %v1402
        %v1405 = vadd.f32 %v1390, %v1404
        %1406 = vrot.lane.b32.xlu0 %v1405, 32
        %v1407 = vpop.permute.xlu0 %1406
        %v1408 = vsel %vm765, %v1407, %v1405
        %1409 = vrot.lane.b32.xlu0 %v1408, 32
        %v1410 = vpop.permute.xlu0 %1409
        %v1411 = vsel %vm765, %v1410, %v1405
        %1413 = vrot.lane.b32.xlu0 %v1411, 126
        %v1414 = vpop.permute.xlu0 %1413
        %1416 = vrot.lane.b32.xlu0 %v1411, 98
        %v1417 = vpop.permute.xlu0 %1416
        %v1419 = vsel %vm798, %v1414, %v1417
        %v1420 = vadd.f32 %v1405, %v1419
        %1421 = vrot.lane.b32.xlu0 %v1420, 32
        %v1422 = vpop.permute.xlu0 %1421
        %v1423 = vsel %vm765, %v1422, %v1420
        %1424 = vrot.lane.b32.xlu0 %v1423, 32
        %v1425 = vpop.permute.xlu0 %1424
        %v1426 = vsel %vm765, %v1425, %v1420
        %1428 = vrot.lane.b32.xlu0 %v1426, 127
        %v1429 = vpop.permute.xlu0 %1428
        %1431 = vrot.lane.b32.xlu0 %v1426, 97
        %v1432 = vpop.permute.xlu0 %1431
        %v1434 = vsel %vm823, %v1429, %v1432
        %v1435 = vadd.f32 %v1420, %v1434
        %v1436 = vlaneseq
        %v1437 = vshrl.u32 %v1436, 7
        %v1438 = vsub.s32 2, %v1437
        %v1439 = vrot.slane %v733, %v1438
        %v1440 = vmul.f32 %v1229, %v1439
        %v1441 = vlaneseq
        %v1442 = vshrl.u32 %v1441, 7
        %v1443 = vsub.s32 2, %v1442
        %v1444 = vrot.slane %v854, %v1443
        %1446 = vrot.lane.b32.xlu0 %v1444, 96
        %v1447 = vpop.permute.xlu0 %1446
        %v1449 = vmul.f32 %v1435, %v1447
        %v1450 = vadd.f32 %v1440, %v1449
        %v1451 = vadd.f32 %v1450, %v1381
        %v1452 = vmul.f32 %v1451, %v1322
        %1453 = vrot.lane.b32.xlu0 %v1452, 32
        %v1454 = vpop.permute.xlu0 %1453
        %v1455 = vsel %vm765, %v1454, %v1452
        %1456 = vrot.lane.b32.xlu0 %v1455, 32
        %v1457 = vpop.permute.xlu0 %1456
        %v1458 = vsel %vm765, %v1457, %v1452
        %1460 = vrot.lane.b32.xlu0 %v1458, 124
        %v1461 = vpop.permute.xlu0 %1460
        %1463 = vrot.lane.b32.xlu0 %v1458, 100
        %v1464 = vpop.permute.xlu0 %1463
        %v1466 = vsel %vm773, %v1461, %v1464
        %v1467 = vadd.f32 %v1452, %v1466
        %1468 = vrot.lane.b32.xlu0 %v1467, 32
        %v1469 = vpop.permute.xlu0 %1468
        %v1470 = vsel %vm765, %v1469, %v1467
        %1471 = vrot.lane.b32.xlu0 %v1470, 32
        %v1472 = vpop.permute.xlu0 %1471
        %v1473 = vsel %vm765, %v1472, %v1467
        %1475 = vrot.lane.b32.xlu0 %v1473, 126
        %v1476 = vpop.permute.xlu0 %1475
        %1478 = vrot.lane.b32.xlu0 %v1473, 98
        %v1479 = vpop.permute.xlu0 %1478
        %v1481 = vsel %vm798, %v1476, %v1479
        %v1482 = vadd.f32 %v1467, %v1481
        %1483 = vrot.lane.b32.xlu0 %v1482, 32
        %v1484 = vpop.permute.xlu0 %1483
        %v1485 = vsel %vm765, %v1484, %v1482
        %1486 = vrot.lane.b32.xlu0 %v1485, 32
        %v1487 = vpop.permute.xlu0 %1486
        %v1488 = vsel %vm765, %v1487, %v1482
        %1490 = vrot.lane.b32.xlu0 %v1488, 127
        %v1491 = vpop.permute.xlu0 %1490
        %1493 = vrot.lane.b32.xlu0 %v1488, 97
        %v1494 = vpop.permute.xlu0 %1493
        %v1496 = vsel %vm823, %v1491, %v1494
        %v1497 = vadd.f32 %v1482, %v1496
        %v1498 = vsel %vm531, %v1497, 0.0
        %v1499 = vadd.f32 %v1498, 0.0
        %v1500 = vsel %vm532, %v1497, 0.0
        %v1502 = vrot.slane %v1500, 1
        %v1504 = vadd.f32 %v1499, %v1502
        %v1505 = vsel %vm533, %v1497, 0.0
        %v1507 = vrot.slane %v1505, 2
        %v1509 = vadd.f32 %v1504, %v1507
        %v1510 = vsel %vm534, %v1497, 0.0
        %v1512 = vrot.slane %v1510, 3
        %v1514 = vadd.f32 %v1509, %v1512
        %v1515 = vsel %vm535, %v1497, 0.0
        %v1517 = vrot.slane %v1515, 4
        %v1519 = vadd.f32 %v1514, %v1517
        %v1520 = vsel %vm536, %v1497, 0.0
        %v1522 = vrot.slane %v1520, 5
        %v1524 = vadd.f32 %v1519, %v1522
        %v1525 = vsel %vm537, %v1497, 0.0
        %v1527 = vrot.slane %v1525, 6
        %v1529 = vadd.f32 %v1524, %v1527
        %v1530 = vsel %vm538, %v1497, 0.0
        %v1532 = vrot.slane %v1530, 7
        %v1534 = vadd.f32 %v1529, %v1532
        %vm1535 = vcmp.eq.s32.totalorder %v540, 2
        %v1536 = vlaneseq
        %v1537 = vshrl.u32 %v1536, 7
        %v1538 = vsub.s32 0, %v1537
        %v1539 = vrot.slane %v1534, %v1538
        %v1540 = vsel %vm1535, %v1539, %v1318
        %v1541 = vlaneseq
        %v1542 = vshrl.u32 %v1541, 7
        %v1543 = vsub.s32 3, %v1542
        %v1544 = vrot.slane %v629, %v1543
        %1546 = vrot.lane.b32.xlu0 %v1544, 64
        %v1547 = vpop.permute.xlu0 %1546
        %v1549 = vmul.f32 %v543, %v1547
        %1550 = vrot.lane.b32.xlu0 %v1549, 32
        %v1551 = vpop.permute.xlu0 %1550
        %v1552 = vsel %vm765, %v1551, %v1549
        %1553 = vrot.lane.b32.xlu0 %v1552, 32
        %v1554 = vpop.permute.xlu0 %1553
        %v1555 = vsel %vm765, %v1554, %v1549
        %1557 = vrot.lane.b32.xlu0 %v1555, 124
        %v1558 = vpop.permute.xlu0 %1557
        %1560 = vrot.lane.b32.xlu0 %v1555, 100
        %v1561 = vpop.permute.xlu0 %1560
        %v1563 = vsel %vm773, %v1558, %v1561
        %v1564 = vadd.f32 %v1549, %v1563
        %1565 = vrot.lane.b32.xlu0 %v1564, 32
        %v1566 = vpop.permute.xlu0 %1565
        %v1567 = vsel %vm765, %v1566, %v1564
        %1568 = vrot.lane.b32.xlu0 %v1567, 32
        %v1569 = vpop.permute.xlu0 %1568
        %v1570 = vsel %vm765, %v1569, %v1564
        %1572 = vrot.lane.b32.xlu0 %v1570, 126
        %v1573 = vpop.permute.xlu0 %1572
        %1575 = vrot.lane.b32.xlu0 %v1570, 98
        %v1576 = vpop.permute.xlu0 %1575
        %v1578 = vsel %vm798, %v1573, %v1576
        %v1579 = vadd.f32 %v1564, %v1578
        %1580 = vrot.lane.b32.xlu0 %v1579, 32
        %v1581 = vpop.permute.xlu0 %1580
        %v1582 = vsel %vm765, %v1581, %v1579
        %1583 = vrot.lane.b32.xlu0 %v1582, 32
        %v1584 = vpop.permute.xlu0 %1583
        %v1585 = vsel %vm765, %v1584, %v1579
        %1587 = vrot.lane.b32.xlu0 %v1585, 127
        %v1588 = vpop.permute.xlu0 %1587
        %1590 = vrot.lane.b32.xlu0 %v1585, 97
        %v1591 = vpop.permute.xlu0 %1590
        %v1593 = vsel %vm823, %v1588, %v1591
        %v1594 = vadd.f32 %v1579, %v1593
        %v1595 = vlaneseq
        %v1596 = vshrl.u32 %v1595, 7
        %v1597 = vsub.s32 3, %v1596
        %v1598 = vrot.slane %v852, %v1597
        %1600 = vrot.lane.b32.xlu0 %v1598, 96
        %v1601 = vpop.permute.xlu0 %1600
        %v1603 = vmul.f32 %v1594, %v1601
        %v1604 = vlaneseq
        %v1605 = vshrl.u32 %v1604, 7
        %v1606 = vsub.s32 3, %v1605
        %v1607 = vrot.slane %v853, %v1606
        %1609 = vrot.lane.b32.xlu0 %v1607, 96
        %v1610 = vpop.permute.xlu0 %1609
        %v1612 = vmul.f32 %v1451, %v1610
        %1613 = vrot.lane.b32.xlu0 %v1612, 32
        %v1614 = vpop.permute.xlu0 %1613
        %v1615 = vsel %vm765, %v1614, %v1612
        %1616 = vrot.lane.b32.xlu0 %v1615, 32
        %v1617 = vpop.permute.xlu0 %1616
        %v1618 = vsel %vm765, %v1617, %v1612
        %1620 = vrot.lane.b32.xlu0 %v1618, 124
        %v1621 = vpop.permute.xlu0 %1620
        %1623 = vrot.lane.b32.xlu0 %v1618, 100
        %v1624 = vpop.permute.xlu0 %1623
        %v1626 = vsel %vm773, %v1621, %v1624
        %v1627 = vadd.f32 %v1612, %v1626
        %1628 = vrot.lane.b32.xlu0 %v1627, 32
        %v1629 = vpop.permute.xlu0 %1628
        %v1630 = vsel %vm765, %v1629, %v1627
        %1631 = vrot.lane.b32.xlu0 %v1630, 32
        %v1632 = vpop.permute.xlu0 %1631
        %v1633 = vsel %vm765, %v1632, %v1627
        %1635 = vrot.lane.b32.xlu0 %v1633, 126
        %v1636 = vpop.permute.xlu0 %1635
        %1638 = vrot.lane.b32.xlu0 %v1633, 98
        %v1639 = vpop.permute.xlu0 %1638
        %v1641 = vsel %vm798, %v1636, %v1639
        %v1642 = vadd.f32 %v1627, %v1641
        %1643 = vrot.lane.b32.xlu0 %v1642, 32
        %v1644 = vpop.permute.xlu0 %1643
        %v1645 = vsel %vm765, %v1644, %v1642
        %1646 = vrot.lane.b32.xlu0 %v1645, 32
        %v1647 = vpop.permute.xlu0 %1646
        %v1648 = vsel %vm765, %v1647, %v1642
        %1650 = vrot.lane.b32.xlu0 %v1648, 127
        %v1651 = vpop.permute.xlu0 %1650
        %1653 = vrot.lane.b32.xlu0 %v1648, 97
        %v1654 = vpop.permute.xlu0 %1653
        %v1656 = vsel %vm823, %v1651, %v1654
        %v1657 = vadd.f32 %v1642, %v1656
        %v1658 = vlaneseq
        %v1659 = vshrl.u32 %v1658, 7
        %v1660 = vsub.s32 3, %v1659
        %v1661 = vrot.slane %v733, %v1660
        %v1662 = vmul.f32 %v1451, %v1661
        %v1663 = vlaneseq
        %v1664 = vshrl.u32 %v1663, 7
        %v1665 = vsub.s32 3, %v1664
        %v1666 = vrot.slane %v854, %v1665
        %1668 = vrot.lane.b32.xlu0 %v1666, 96
        %v1669 = vpop.permute.xlu0 %1668
        %v1671 = vmul.f32 %v1657, %v1669
        %v1672 = vadd.f32 %v1662, %v1671
        %v1673 = vadd.f32 %v1672, %v1603
        %v1674 = vmul.f32 %v1673, %v1544
        %1675 = vrot.lane.b32.xlu0 %v1674, 32
        %v1676 = vpop.permute.xlu0 %1675
        %v1677 = vsel %vm765, %v1676, %v1674
        %1678 = vrot.lane.b32.xlu0 %v1677, 32
        %v1679 = vpop.permute.xlu0 %1678
        %v1680 = vsel %vm765, %v1679, %v1674
        %1682 = vrot.lane.b32.xlu0 %v1680, 124
        %v1683 = vpop.permute.xlu0 %1682
        %1685 = vrot.lane.b32.xlu0 %v1680, 100
        %v1686 = vpop.permute.xlu0 %1685
        %v1688 = vsel %vm773, %v1683, %v1686
        %v1689 = vadd.f32 %v1674, %v1688
        %1690 = vrot.lane.b32.xlu0 %v1689, 32
        %v1691 = vpop.permute.xlu0 %1690
        %v1692 = vsel %vm765, %v1691, %v1689
        %1693 = vrot.lane.b32.xlu0 %v1692, 32
        %v1694 = vpop.permute.xlu0 %1693
        %v1695 = vsel %vm765, %v1694, %v1689
        %1697 = vrot.lane.b32.xlu0 %v1695, 126
        %v1698 = vpop.permute.xlu0 %1697
        %1700 = vrot.lane.b32.xlu0 %v1695, 98
        %v1701 = vpop.permute.xlu0 %1700
        %v1703 = vsel %vm798, %v1698, %v1701
        %v1704 = vadd.f32 %v1689, %v1703
        %1705 = vrot.lane.b32.xlu0 %v1704, 32
        %v1706 = vpop.permute.xlu0 %1705
        %v1707 = vsel %vm765, %v1706, %v1704
        %1708 = vrot.lane.b32.xlu0 %v1707, 32
        %v1709 = vpop.permute.xlu0 %1708
        %v1710 = vsel %vm765, %v1709, %v1704
        %1712 = vrot.lane.b32.xlu0 %v1710, 127
        %v1713 = vpop.permute.xlu0 %1712
        %1715 = vrot.lane.b32.xlu0 %v1710, 97
        %v1716 = vpop.permute.xlu0 %1715
        %v1718 = vsel %vm823, %v1713, %v1716
        %v1719 = vadd.f32 %v1704, %v1718
        %v1720 = vsel %vm531, %v1719, 0.0
        %v1721 = vadd.f32 %v1720, 0.0
        %v1722 = vsel %vm532, %v1719, 0.0
        %v1724 = vrot.slane %v1722, 1
        %v1726 = vadd.f32 %v1721, %v1724
        %v1727 = vsel %vm533, %v1719, 0.0
        %v1729 = vrot.slane %v1727, 2
        %v1731 = vadd.f32 %v1726, %v1729
        %v1732 = vsel %vm534, %v1719, 0.0
        %v1734 = vrot.slane %v1732, 3
        %v1736 = vadd.f32 %v1731, %v1734
        %v1737 = vsel %vm535, %v1719, 0.0
        %v1739 = vrot.slane %v1737, 4
        %v1741 = vadd.f32 %v1736, %v1739
        %v1742 = vsel %vm536, %v1719, 0.0
        %v1744 = vrot.slane %v1742, 5
        %v1746 = vadd.f32 %v1741, %v1744
        %v1747 = vsel %vm537, %v1719, 0.0
        %v1749 = vrot.slane %v1747, 6
        %v1751 = vadd.f32 %v1746, %v1749
        %v1752 = vsel %vm538, %v1719, 0.0
        %v1754 = vrot.slane %v1752, 7
        %v1756 = vadd.f32 %v1751, %v1754
        %vm1757 = vcmp.eq.s32.totalorder %v540, 3
        %v1758 = vlaneseq
        %v1759 = vshrl.u32 %v1758, 7
        %v1760 = vsub.s32 0, %v1759
        %v1761 = vrot.slane %v1756, %v1760
        %v1762 = vsel %vm1757, %v1761, %v1540
        %v1763 = vlaneseq
        %v1764 = vshrl.u32 %v1763, 7
        %v1765 = vsub.s32 4, %v1764
        %v1766 = vrot.slane %v629, %v1765
        %1768 = vrot.lane.b32.xlu0 %v1766, 64
        %v1769 = vpop.permute.xlu0 %1768
        %v1771 = vmul.f32 %v543, %v1769
        %1772 = vrot.lane.b32.xlu0 %v1771, 32
        %v1773 = vpop.permute.xlu0 %1772
        %v1774 = vsel %vm765, %v1773, %v1771
        %1775 = vrot.lane.b32.xlu0 %v1774, 32
        %v1776 = vpop.permute.xlu0 %1775
        %v1777 = vsel %vm765, %v1776, %v1771
        %1779 = vrot.lane.b32.xlu0 %v1777, 124
        %v1780 = vpop.permute.xlu0 %1779
        %1782 = vrot.lane.b32.xlu0 %v1777, 100
        %v1783 = vpop.permute.xlu0 %1782
        %v1785 = vsel %vm773, %v1780, %v1783
        %v1786 = vadd.f32 %v1771, %v1785
        %1787 = vrot.lane.b32.xlu0 %v1786, 32
        %v1788 = vpop.permute.xlu0 %1787
        %v1789 = vsel %vm765, %v1788, %v1786
        %1790 = vrot.lane.b32.xlu0 %v1789, 32
        %v1791 = vpop.permute.xlu0 %1790
        %v1792 = vsel %vm765, %v1791, %v1786
        %1794 = vrot.lane.b32.xlu0 %v1792, 126
        %v1795 = vpop.permute.xlu0 %1794
        %1797 = vrot.lane.b32.xlu0 %v1792, 98
        %v1798 = vpop.permute.xlu0 %1797
        %v1800 = vsel %vm798, %v1795, %v1798
        %v1801 = vadd.f32 %v1786, %v1800
        %1802 = vrot.lane.b32.xlu0 %v1801, 32
        %v1803 = vpop.permute.xlu0 %1802
        %v1804 = vsel %vm765, %v1803, %v1801
        %1805 = vrot.lane.b32.xlu0 %v1804, 32
        %v1806 = vpop.permute.xlu0 %1805
        %v1807 = vsel %vm765, %v1806, %v1801
        %1809 = vrot.lane.b32.xlu0 %v1807, 127
        %v1810 = vpop.permute.xlu0 %1809
        %1812 = vrot.lane.b32.xlu0 %v1807, 97
        %v1813 = vpop.permute.xlu0 %1812
        %v1815 = vsel %vm823, %v1810, %v1813
        %v1816 = vadd.f32 %v1801, %v1815
        %v1817 = vlaneseq
        %v1818 = vshrl.u32 %v1817, 7
        %v1819 = vsub.s32 4, %v1818
        %v1820 = vrot.slane %v852, %v1819
        %1822 = vrot.lane.b32.xlu0 %v1820, 96
        %v1823 = vpop.permute.xlu0 %1822
        %v1825 = vmul.f32 %v1816, %v1823
        %v1826 = vlaneseq
        %v1827 = vshrl.u32 %v1826, 7
        %v1828 = vsub.s32 4, %v1827
        %v1829 = vrot.slane %v853, %v1828
        %1831 = vrot.lane.b32.xlu0 %v1829, 96
        %v1832 = vpop.permute.xlu0 %1831
        %v1834 = vmul.f32 %v1673, %v1832
        %1835 = vrot.lane.b32.xlu0 %v1834, 32
        %v1836 = vpop.permute.xlu0 %1835
        %v1837 = vsel %vm765, %v1836, %v1834
        %1838 = vrot.lane.b32.xlu0 %v1837, 32
        %v1839 = vpop.permute.xlu0 %1838
        %v1840 = vsel %vm765, %v1839, %v1834
        %1842 = vrot.lane.b32.xlu0 %v1840, 124
        %v1843 = vpop.permute.xlu0 %1842
        %1845 = vrot.lane.b32.xlu0 %v1840, 100
        %v1846 = vpop.permute.xlu0 %1845
        %v1848 = vsel %vm773, %v1843, %v1846
        %v1849 = vadd.f32 %v1834, %v1848
        %1850 = vrot.lane.b32.xlu0 %v1849, 32
        %v1851 = vpop.permute.xlu0 %1850
        %v1852 = vsel %vm765, %v1851, %v1849
        %1853 = vrot.lane.b32.xlu0 %v1852, 32
        %v1854 = vpop.permute.xlu0 %1853
        %v1855 = vsel %vm765, %v1854, %v1849
        %1857 = vrot.lane.b32.xlu0 %v1855, 126
        %v1858 = vpop.permute.xlu0 %1857
        %1860 = vrot.lane.b32.xlu0 %v1855, 98
        %v1861 = vpop.permute.xlu0 %1860
        %v1863 = vsel %vm798, %v1858, %v1861
        %v1864 = vadd.f32 %v1849, %v1863
        %1865 = vrot.lane.b32.xlu0 %v1864, 32
        %v1866 = vpop.permute.xlu0 %1865
        %v1867 = vsel %vm765, %v1866, %v1864
        %1868 = vrot.lane.b32.xlu0 %v1867, 32
        %v1869 = vpop.permute.xlu0 %1868
        %v1870 = vsel %vm765, %v1869, %v1864
        %1872 = vrot.lane.b32.xlu0 %v1870, 127
        %v1873 = vpop.permute.xlu0 %1872
        %1875 = vrot.lane.b32.xlu0 %v1870, 97
        %v1876 = vpop.permute.xlu0 %1875
        %v1878 = vsel %vm823, %v1873, %v1876
        %v1879 = vadd.f32 %v1864, %v1878
        %v1880 = vlaneseq
        %v1881 = vshrl.u32 %v1880, 7
        %v1882 = vsub.s32 4, %v1881
        %v1883 = vrot.slane %v733, %v1882
        %v1884 = vmul.f32 %v1673, %v1883
        %v1885 = vlaneseq
        %v1886 = vshrl.u32 %v1885, 7
        %v1887 = vsub.s32 4, %v1886
        %v1888 = vrot.slane %v854, %v1887
        %1890 = vrot.lane.b32.xlu0 %v1888, 96
        %v1891 = vpop.permute.xlu0 %1890
        %v1893 = vmul.f32 %v1879, %v1891
        %v1894 = vadd.f32 %v1884, %v1893
        %v1895 = vadd.f32 %v1894, %v1825
        %v1896 = vmul.f32 %v1895, %v1766
        %1897 = vrot.lane.b32.xlu0 %v1896, 32
        %v1898 = vpop.permute.xlu0 %1897
        %v1899 = vsel %vm765, %v1898, %v1896
        %1900 = vrot.lane.b32.xlu0 %v1899, 32
        %v1901 = vpop.permute.xlu0 %1900
        %v1902 = vsel %vm765, %v1901, %v1896
        %1904 = vrot.lane.b32.xlu0 %v1902, 124
        %v1905 = vpop.permute.xlu0 %1904
        %1907 = vrot.lane.b32.xlu0 %v1902, 100
        %v1908 = vpop.permute.xlu0 %1907
        %v1910 = vsel %vm773, %v1905, %v1908
        %v1911 = vadd.f32 %v1896, %v1910
        %1912 = vrot.lane.b32.xlu0 %v1911, 32
        %v1913 = vpop.permute.xlu0 %1912
        %v1914 = vsel %vm765, %v1913, %v1911
        %1915 = vrot.lane.b32.xlu0 %v1914, 32
        %v1916 = vpop.permute.xlu0 %1915
        %v1917 = vsel %vm765, %v1916, %v1911
        %1919 = vrot.lane.b32.xlu0 %v1917, 126
        %v1920 = vpop.permute.xlu0 %1919
        %1922 = vrot.lane.b32.xlu0 %v1917, 98
        %v1923 = vpop.permute.xlu0 %1922
        %v1925 = vsel %vm798, %v1920, %v1923
        %v1926 = vadd.f32 %v1911, %v1925
        %1927 = vrot.lane.b32.xlu0 %v1926, 32
        %v1928 = vpop.permute.xlu0 %1927
        %v1929 = vsel %vm765, %v1928, %v1926
        %1930 = vrot.lane.b32.xlu0 %v1929, 32
        %v1931 = vpop.permute.xlu0 %1930
        %v1932 = vsel %vm765, %v1931, %v1926
        %1934 = vrot.lane.b32.xlu0 %v1932, 127
        %v1935 = vpop.permute.xlu0 %1934
        %1937 = vrot.lane.b32.xlu0 %v1932, 97
        %v1938 = vpop.permute.xlu0 %1937
        %v1940 = vsel %vm823, %v1935, %v1938
        %v1941 = vadd.f32 %v1926, %v1940
        %v1942 = vsel %vm531, %v1941, 0.0
        %v1943 = vadd.f32 %v1942, 0.0
        %v1944 = vsel %vm532, %v1941, 0.0
        %v1946 = vrot.slane %v1944, 1
        %v1948 = vadd.f32 %v1943, %v1946
        %v1949 = vsel %vm533, %v1941, 0.0
        %v1951 = vrot.slane %v1949, 2
        %v1953 = vadd.f32 %v1948, %v1951
        %v1954 = vsel %vm534, %v1941, 0.0
        %v1956 = vrot.slane %v1954, 3
        %v1958 = vadd.f32 %v1953, %v1956
        %v1959 = vsel %vm535, %v1941, 0.0
        %v1961 = vrot.slane %v1959, 4
        %v1963 = vadd.f32 %v1958, %v1961
        %v1964 = vsel %vm536, %v1941, 0.0
        %v1966 = vrot.slane %v1964, 5
        %v1968 = vadd.f32 %v1963, %v1966
        %v1969 = vsel %vm537, %v1941, 0.0
        %v1971 = vrot.slane %v1969, 6
        %v1973 = vadd.f32 %v1968, %v1971
        %v1974 = vsel %vm538, %v1941, 0.0
        %v1976 = vrot.slane %v1974, 7
        %v1978 = vadd.f32 %v1973, %v1976
        %vm1979 = vcmp.eq.s32.totalorder %v540, 4
        %v1980 = vlaneseq
        %v1981 = vshrl.u32 %v1980, 7
        %v1982 = vsub.s32 0, %v1981
        %v1983 = vrot.slane %v1978, %v1982
        %v1984 = vsel %vm1979, %v1983, %v1762
        %v1985 = vlaneseq
        %v1986 = vshrl.u32 %v1985, 7
        %v1987 = vsub.s32 5, %v1986
        %v1988 = vrot.slane %v629, %v1987
        %1990 = vrot.lane.b32.xlu0 %v1988, 64
        %v1991 = vpop.permute.xlu0 %1990
        %v1993 = vmul.f32 %v543, %v1991
        %1994 = vrot.lane.b32.xlu0 %v1993, 32
        %v1995 = vpop.permute.xlu0 %1994
        %v1996 = vsel %vm765, %v1995, %v1993
        %1997 = vrot.lane.b32.xlu0 %v1996, 32
        %v1998 = vpop.permute.xlu0 %1997
        %v1999 = vsel %vm765, %v1998, %v1993
        %2001 = vrot.lane.b32.xlu0 %v1999, 124
        %v2002 = vpop.permute.xlu0 %2001
        %2004 = vrot.lane.b32.xlu0 %v1999, 100
        %v2005 = vpop.permute.xlu0 %2004
        %v2007 = vsel %vm773, %v2002, %v2005
        %v2008 = vadd.f32 %v1993, %v2007
        %2009 = vrot.lane.b32.xlu0 %v2008, 32
        %v2010 = vpop.permute.xlu0 %2009
        %v2011 = vsel %vm765, %v2010, %v2008
        %2012 = vrot.lane.b32.xlu0 %v2011, 32
        %v2013 = vpop.permute.xlu0 %2012
        %v2014 = vsel %vm765, %v2013, %v2008
        %2016 = vrot.lane.b32.xlu0 %v2014, 126
        %v2017 = vpop.permute.xlu0 %2016
        %2019 = vrot.lane.b32.xlu0 %v2014, 98
        %v2020 = vpop.permute.xlu0 %2019
        %v2022 = vsel %vm798, %v2017, %v2020
        %v2023 = vadd.f32 %v2008, %v2022
        %2024 = vrot.lane.b32.xlu0 %v2023, 32
        %v2025 = vpop.permute.xlu0 %2024
        %v2026 = vsel %vm765, %v2025, %v2023
        %2027 = vrot.lane.b32.xlu0 %v2026, 32
        %v2028 = vpop.permute.xlu0 %2027
        %v2029 = vsel %vm765, %v2028, %v2023
        %2031 = vrot.lane.b32.xlu0 %v2029, 127
        %v2032 = vpop.permute.xlu0 %2031
        %2034 = vrot.lane.b32.xlu0 %v2029, 97
        %v2035 = vpop.permute.xlu0 %2034
        %v2037 = vsel %vm823, %v2032, %v2035
        %v2038 = vadd.f32 %v2023, %v2037
        %v2039 = vlaneseq
        %v2040 = vshrl.u32 %v2039, 7
        %v2041 = vsub.s32 5, %v2040
        %v2042 = vrot.slane %v852, %v2041
        %2044 = vrot.lane.b32.xlu0 %v2042, 96
        %v2045 = vpop.permute.xlu0 %2044
        %v2047 = vmul.f32 %v2038, %v2045
        %v2048 = vlaneseq
        %v2049 = vshrl.u32 %v2048, 7
        %v2050 = vsub.s32 5, %v2049
        %v2051 = vrot.slane %v853, %v2050
        %2053 = vrot.lane.b32.xlu0 %v2051, 96
        %v2054 = vpop.permute.xlu0 %2053
        %v2056 = vmul.f32 %v1895, %v2054
        %2057 = vrot.lane.b32.xlu0 %v2056, 32
        %v2058 = vpop.permute.xlu0 %2057
        %v2059 = vsel %vm765, %v2058, %v2056
        %2060 = vrot.lane.b32.xlu0 %v2059, 32
        %v2061 = vpop.permute.xlu0 %2060
        %v2062 = vsel %vm765, %v2061, %v2056
        %2064 = vrot.lane.b32.xlu0 %v2062, 124
        %v2065 = vpop.permute.xlu0 %2064
        %2067 = vrot.lane.b32.xlu0 %v2062, 100
        %v2068 = vpop.permute.xlu0 %2067
        %v2070 = vsel %vm773, %v2065, %v2068
        %v2071 = vadd.f32 %v2056, %v2070
        %2072 = vrot.lane.b32.xlu0 %v2071, 32
        %v2073 = vpop.permute.xlu0 %2072
        %v2074 = vsel %vm765, %v2073, %v2071
        %2075 = vrot.lane.b32.xlu0 %v2074, 32
        %v2076 = vpop.permute.xlu0 %2075
        %v2077 = vsel %vm765, %v2076, %v2071
        %2079 = vrot.lane.b32.xlu0 %v2077, 126
        %v2080 = vpop.permute.xlu0 %2079
        %2082 = vrot.lane.b32.xlu0 %v2077, 98
        %v2083 = vpop.permute.xlu0 %2082
        %v2085 = vsel %vm798, %v2080, %v2083
        %v2086 = vadd.f32 %v2071, %v2085
        %2087 = vrot.lane.b32.xlu0 %v2086, 32
        %v2088 = vpop.permute.xlu0 %2087
        %v2089 = vsel %vm765, %v2088, %v2086
        %2090 = vrot.lane.b32.xlu0 %v2089, 32
        %v2091 = vpop.permute.xlu0 %2090
        %v2092 = vsel %vm765, %v2091, %v2086
        %2094 = vrot.lane.b32.xlu0 %v2092, 127
        %v2095 = vpop.permute.xlu0 %2094
        %2097 = vrot.lane.b32.xlu0 %v2092, 97
        %v2098 = vpop.permute.xlu0 %2097
        %v2100 = vsel %vm823, %v2095, %v2098
        %v2101 = vadd.f32 %v2086, %v2100
        %v2102 = vlaneseq
        %v2103 = vshrl.u32 %v2102, 7
        %v2104 = vsub.s32 5, %v2103
        %v2105 = vrot.slane %v733, %v2104
        %v2106 = vmul.f32 %v1895, %v2105
        %v2107 = vlaneseq
        %v2108 = vshrl.u32 %v2107, 7
        %v2109 = vsub.s32 5, %v2108
        %v2110 = vrot.slane %v854, %v2109
        %2112 = vrot.lane.b32.xlu0 %v2110, 96
        %v2113 = vpop.permute.xlu0 %2112
        %v2115 = vmul.f32 %v2101, %v2113
        %v2116 = vadd.f32 %v2106, %v2115
        %v2117 = vadd.f32 %v2116, %v2047
        %v2118 = vmul.f32 %v2117, %v1988
        %2119 = vrot.lane.b32.xlu0 %v2118, 32
        %v2120 = vpop.permute.xlu0 %2119
        %v2121 = vsel %vm765, %v2120, %v2118
        %2122 = vrot.lane.b32.xlu0 %v2121, 32
        %v2123 = vpop.permute.xlu0 %2122
        %v2124 = vsel %vm765, %v2123, %v2118
        %2126 = vrot.lane.b32.xlu0 %v2124, 124
        %v2127 = vpop.permute.xlu0 %2126
        %2129 = vrot.lane.b32.xlu0 %v2124, 100
        %v2130 = vpop.permute.xlu0 %2129
        %v2132 = vsel %vm773, %v2127, %v2130
        %v2133 = vadd.f32 %v2118, %v2132
        %2134 = vrot.lane.b32.xlu0 %v2133, 32
        %v2135 = vpop.permute.xlu0 %2134
        %v2136 = vsel %vm765, %v2135, %v2133
        %2137 = vrot.lane.b32.xlu0 %v2136, 32
        %v2138 = vpop.permute.xlu0 %2137
        %v2139 = vsel %vm765, %v2138, %v2133
        %2141 = vrot.lane.b32.xlu0 %v2139, 126
        %v2142 = vpop.permute.xlu0 %2141
        %2144 = vrot.lane.b32.xlu0 %v2139, 98
        %v2145 = vpop.permute.xlu0 %2144
        %v2147 = vsel %vm798, %v2142, %v2145
        %v2148 = vadd.f32 %v2133, %v2147
        %2149 = vrot.lane.b32.xlu0 %v2148, 32
        %v2150 = vpop.permute.xlu0 %2149
        %v2151 = vsel %vm765, %v2150, %v2148
        %2152 = vrot.lane.b32.xlu0 %v2151, 32
        %v2153 = vpop.permute.xlu0 %2152
        %v2154 = vsel %vm765, %v2153, %v2148
        %2156 = vrot.lane.b32.xlu0 %v2154, 127
        %v2157 = vpop.permute.xlu0 %2156
        %2159 = vrot.lane.b32.xlu0 %v2154, 97
        %v2160 = vpop.permute.xlu0 %2159
        %v2162 = vsel %vm823, %v2157, %v2160
        %v2163 = vadd.f32 %v2148, %v2162
        %v2164 = vsel %vm531, %v2163, 0.0
        %v2165 = vadd.f32 %v2164, 0.0
        %v2166 = vsel %vm532, %v2163, 0.0
        %v2168 = vrot.slane %v2166, 1
        %v2170 = vadd.f32 %v2165, %v2168
        %v2171 = vsel %vm533, %v2163, 0.0
        %v2173 = vrot.slane %v2171, 2
        %v2175 = vadd.f32 %v2170, %v2173
        %v2176 = vsel %vm534, %v2163, 0.0
        %v2178 = vrot.slane %v2176, 3
        %v2180 = vadd.f32 %v2175, %v2178
        %v2181 = vsel %vm535, %v2163, 0.0
        %v2183 = vrot.slane %v2181, 4
        %v2185 = vadd.f32 %v2180, %v2183
        %v2186 = vsel %vm536, %v2163, 0.0
        %v2188 = vrot.slane %v2186, 5
        %v2190 = vadd.f32 %v2185, %v2188
        %v2191 = vsel %vm537, %v2163, 0.0
        %v2193 = vrot.slane %v2191, 6
        %v2195 = vadd.f32 %v2190, %v2193
        %v2196 = vsel %vm538, %v2163, 0.0
        %v2198 = vrot.slane %v2196, 7
        %v2200 = vadd.f32 %v2195, %v2198
        %vm2201 = vcmp.eq.s32.totalorder %v540, 5
        %v2202 = vlaneseq
        %v2203 = vshrl.u32 %v2202, 7
        %v2204 = vsub.s32 0, %v2203
        %v2205 = vrot.slane %v2200, %v2204
        %v2206 = vsel %vm2201, %v2205, %v1984
        %v2207 = vlaneseq
        %v2208 = vshrl.u32 %v2207, 7
        %v2209 = vsub.s32 6, %v2208
        %v2210 = vrot.slane %v629, %v2209
        %2212 = vrot.lane.b32.xlu0 %v2210, 64
        %v2213 = vpop.permute.xlu0 %2212
        %v2215 = vmul.f32 %v543, %v2213
        %2216 = vrot.lane.b32.xlu0 %v2215, 32
        %v2217 = vpop.permute.xlu0 %2216
        %v2218 = vsel %vm765, %v2217, %v2215
        %2219 = vrot.lane.b32.xlu0 %v2218, 32
        %v2220 = vpop.permute.xlu0 %2219
        %v2221 = vsel %vm765, %v2220, %v2215
        %2223 = vrot.lane.b32.xlu0 %v2221, 124
        %v2224 = vpop.permute.xlu0 %2223
        %2226 = vrot.lane.b32.xlu0 %v2221, 100
        %v2227 = vpop.permute.xlu0 %2226
        %v2229 = vsel %vm773, %v2224, %v2227
        %v2230 = vadd.f32 %v2215, %v2229
        %2231 = vrot.lane.b32.xlu0 %v2230, 32
        %v2232 = vpop.permute.xlu0 %2231
        %v2233 = vsel %vm765, %v2232, %v2230
        %2234 = vrot.lane.b32.xlu0 %v2233, 32
        %v2235 = vpop.permute.xlu0 %2234
        %v2236 = vsel %vm765, %v2235, %v2230
        %2238 = vrot.lane.b32.xlu0 %v2236, 126
        %v2239 = vpop.permute.xlu0 %2238
        %2241 = vrot.lane.b32.xlu0 %v2236, 98
        %v2242 = vpop.permute.xlu0 %2241
        %v2244 = vsel %vm798, %v2239, %v2242
        %v2245 = vadd.f32 %v2230, %v2244
        %2246 = vrot.lane.b32.xlu0 %v2245, 32
        %v2247 = vpop.permute.xlu0 %2246
        %v2248 = vsel %vm765, %v2247, %v2245
        %2249 = vrot.lane.b32.xlu0 %v2248, 32
        %v2250 = vpop.permute.xlu0 %2249
        %v2251 = vsel %vm765, %v2250, %v2245
        %2253 = vrot.lane.b32.xlu0 %v2251, 127
        %v2254 = vpop.permute.xlu0 %2253
        %2256 = vrot.lane.b32.xlu0 %v2251, 97
        %v2257 = vpop.permute.xlu0 %2256
        %v2259 = vsel %vm823, %v2254, %v2257
        %v2260 = vadd.f32 %v2245, %v2259
        %v2261 = vlaneseq
        %v2262 = vshrl.u32 %v2261, 7
        %v2263 = vsub.s32 6, %v2262
        %v2264 = vrot.slane %v852, %v2263
        %2266 = vrot.lane.b32.xlu0 %v2264, 96
        %v2267 = vpop.permute.xlu0 %2266
        %v2269 = vmul.f32 %v2260, %v2267
        %v2270 = vlaneseq
        %v2271 = vshrl.u32 %v2270, 7
        %v2272 = vsub.s32 6, %v2271
        %v2273 = vrot.slane %v853, %v2272
        %2275 = vrot.lane.b32.xlu0 %v2273, 96
        %v2276 = vpop.permute.xlu0 %2275
        %v2278 = vmul.f32 %v2117, %v2276
        %2279 = vrot.lane.b32.xlu0 %v2278, 32
        %v2280 = vpop.permute.xlu0 %2279
        %v2281 = vsel %vm765, %v2280, %v2278
        %2282 = vrot.lane.b32.xlu0 %v2281, 32
        %v2283 = vpop.permute.xlu0 %2282
        %v2284 = vsel %vm765, %v2283, %v2278
        %2286 = vrot.lane.b32.xlu0 %v2284, 124
        %v2287 = vpop.permute.xlu0 %2286
        %2289 = vrot.lane.b32.xlu0 %v2284, 100
        %v2290 = vpop.permute.xlu0 %2289
        %v2292 = vsel %vm773, %v2287, %v2290
        %v2293 = vadd.f32 %v2278, %v2292
        %2294 = vrot.lane.b32.xlu0 %v2293, 32
        %v2295 = vpop.permute.xlu0 %2294
        %v2296 = vsel %vm765, %v2295, %v2293
        %2297 = vrot.lane.b32.xlu0 %v2296, 32
        %v2298 = vpop.permute.xlu0 %2297
        %v2299 = vsel %vm765, %v2298, %v2293
        %2301 = vrot.lane.b32.xlu0 %v2299, 126
        %v2302 = vpop.permute.xlu0 %2301
        %2304 = vrot.lane.b32.xlu0 %v2299, 98
        %v2305 = vpop.permute.xlu0 %2304
        %v2307 = vsel %vm798, %v2302, %v2305
        %v2308 = vadd.f32 %v2293, %v2307
        %2309 = vrot.lane.b32.xlu0 %v2308, 32
        %v2310 = vpop.permute.xlu0 %2309
        %v2311 = vsel %vm765, %v2310, %v2308
        %2312 = vrot.lane.b32.xlu0 %v2311, 32
        %v2313 = vpop.permute.xlu0 %2312
        %v2314 = vsel %vm765, %v2313, %v2308
        %2316 = vrot.lane.b32.xlu0 %v2314, 127
        %v2317 = vpop.permute.xlu0 %2316
        %2319 = vrot.lane.b32.xlu0 %v2314, 97
        %v2320 = vpop.permute.xlu0 %2319
        %v2322 = vsel %vm823, %v2317, %v2320
        %v2323 = vadd.f32 %v2308, %v2322
        %v2324 = vlaneseq
        %v2325 = vshrl.u32 %v2324, 7
        %v2326 = vsub.s32 6, %v2325
        %v2327 = vrot.slane %v733, %v2326
        %v2328 = vmul.f32 %v2117, %v2327
        %v2329 = vlaneseq
        %v2330 = vshrl.u32 %v2329, 7
        %v2331 = vsub.s32 6, %v2330
        %v2332 = vrot.slane %v854, %v2331
        %2334 = vrot.lane.b32.xlu0 %v2332, 96
        %v2335 = vpop.permute.xlu0 %2334
        %v2337 = vmul.f32 %v2323, %v2335
        %v2338 = vadd.f32 %v2328, %v2337
        %v2339 = vadd.f32 %v2338, %v2269
        %v2340 = vmul.f32 %v2339, %v2210
        %2341 = vrot.lane.b32.xlu0 %v2340, 32
        %v2342 = vpop.permute.xlu0 %2341
        %v2343 = vsel %vm765, %v2342, %v2340
        %2344 = vrot.lane.b32.xlu0 %v2343, 32
        %v2345 = vpop.permute.xlu0 %2344
        %v2346 = vsel %vm765, %v2345, %v2340
        %2348 = vrot.lane.b32.xlu0 %v2346, 124
        %v2349 = vpop.permute.xlu0 %2348
        %2351 = vrot.lane.b32.xlu0 %v2346, 100
        %v2352 = vpop.permute.xlu0 %2351
        %v2354 = vsel %vm773, %v2349, %v2352
        %v2355 = vadd.f32 %v2340, %v2354
        %2356 = vrot.lane.b32.xlu0 %v2355, 32
        %v2357 = vpop.permute.xlu0 %2356
        %v2358 = vsel %vm765, %v2357, %v2355
        %2359 = vrot.lane.b32.xlu0 %v2358, 32
        %v2360 = vpop.permute.xlu0 %2359
        %v2361 = vsel %vm765, %v2360, %v2355
        %2363 = vrot.lane.b32.xlu0 %v2361, 126
        %v2364 = vpop.permute.xlu0 %2363
        %2366 = vrot.lane.b32.xlu0 %v2361, 98
        %v2367 = vpop.permute.xlu0 %2366
        %v2369 = vsel %vm798, %v2364, %v2367
        %v2370 = vadd.f32 %v2355, %v2369
        %2371 = vrot.lane.b32.xlu0 %v2370, 32
        %v2372 = vpop.permute.xlu0 %2371
        %v2373 = vsel %vm765, %v2372, %v2370
        %2374 = vrot.lane.b32.xlu0 %v2373, 32
        %v2375 = vpop.permute.xlu0 %2374
        %v2376 = vsel %vm765, %v2375, %v2370
        %2378 = vrot.lane.b32.xlu0 %v2376, 127
        %v2379 = vpop.permute.xlu0 %2378
        %2381 = vrot.lane.b32.xlu0 %v2376, 97
        %v2382 = vpop.permute.xlu0 %2381
        %v2384 = vsel %vm823, %v2379, %v2382
        %v2385 = vadd.f32 %v2370, %v2384
        %v2386 = vsel %vm531, %v2385, 0.0
        %v2387 = vadd.f32 %v2386, 0.0
        %v2388 = vsel %vm532, %v2385, 0.0
        %v2390 = vrot.slane %v2388, 1
        %v2392 = vadd.f32 %v2387, %v2390
        %v2393 = vsel %vm533, %v2385, 0.0
        %v2395 = vrot.slane %v2393, 2
        %v2397 = vadd.f32 %v2392, %v2395
        %v2398 = vsel %vm534, %v2385, 0.0
        %v2400 = vrot.slane %v2398, 3
        %v2402 = vadd.f32 %v2397, %v2400
        %v2403 = vsel %vm535, %v2385, 0.0
        %v2405 = vrot.slane %v2403, 4
        %v2407 = vadd.f32 %v2402, %v2405
        %v2408 = vsel %vm536, %v2385, 0.0
        %v2410 = vrot.slane %v2408, 5
        %v2412 = vadd.f32 %v2407, %v2410
        %v2413 = vsel %vm537, %v2385, 0.0
        %v2415 = vrot.slane %v2413, 6
        %v2417 = vadd.f32 %v2412, %v2415
        %v2418 = vsel %vm538, %v2385, 0.0
        %v2420 = vrot.slane %v2418, 7
        %v2422 = vadd.f32 %v2417, %v2420
        %vm2423 = vcmp.eq.s32.totalorder %v540, 6
        %v2424 = vlaneseq
        %v2425 = vshrl.u32 %v2424, 7
        %v2426 = vsub.s32 0, %v2425
        %v2427 = vrot.slane %v2422, %v2426
        %v2428 = vsel %vm2423, %v2427, %v2206
        %v2429 = vlaneseq
        %v2430 = vshrl.u32 %v2429, 7
        %v2431 = vsub.s32 7, %v2430
        %v2432 = vrot.slane %v629, %v2431
        %2434 = vrot.lane.b32.xlu0 %v2432, 64
        %v2435 = vpop.permute.xlu0 %2434
        %v2437 = vmul.f32 %v543, %v2435
        %2438 = vrot.lane.b32.xlu0 %v2437, 32
        %v2439 = vpop.permute.xlu0 %2438
        %v2440 = vsel %vm765, %v2439, %v2437
        %2441 = vrot.lane.b32.xlu0 %v2440, 32
        %v2442 = vpop.permute.xlu0 %2441
        %v2443 = vsel %vm765, %v2442, %v2437
        %2445 = vrot.lane.b32.xlu0 %v2443, 124
        %v2446 = vpop.permute.xlu0 %2445
        %2448 = vrot.lane.b32.xlu0 %v2443, 100
        %v2449 = vpop.permute.xlu0 %2448
        %v2451 = vsel %vm773, %v2446, %v2449
        %v2452 = vadd.f32 %v2437, %v2451
        %2453 = vrot.lane.b32.xlu0 %v2452, 32
        %v2454 = vpop.permute.xlu0 %2453
        %v2455 = vsel %vm765, %v2454, %v2452
        %2456 = vrot.lane.b32.xlu0 %v2455, 32
        %v2457 = vpop.permute.xlu0 %2456
        %v2458 = vsel %vm765, %v2457, %v2452
        %2460 = vrot.lane.b32.xlu0 %v2458, 126
        %v2461 = vpop.permute.xlu0 %2460
        %2463 = vrot.lane.b32.xlu0 %v2458, 98
        %v2464 = vpop.permute.xlu0 %2463
        %v2466 = vsel %vm798, %v2461, %v2464
        %v2467 = vadd.f32 %v2452, %v2466
        %2468 = vrot.lane.b32.xlu0 %v2467, 32
        %v2469 = vpop.permute.xlu0 %2468
        %v2470 = vsel %vm765, %v2469, %v2467
        %2471 = vrot.lane.b32.xlu0 %v2470, 32
        %v2472 = vpop.permute.xlu0 %2471
        %v2473 = vsel %vm765, %v2472, %v2467
        %2475 = vrot.lane.b32.xlu0 %v2473, 127
        %v2476 = vpop.permute.xlu0 %2475
        %2478 = vrot.lane.b32.xlu0 %v2473, 97
        %v2479 = vpop.permute.xlu0 %2478
        %v2481 = vsel %vm823, %v2476, %v2479
        %v2482 = vadd.f32 %v2467, %v2481
        %v2483 = vlaneseq
        %v2484 = vshrl.u32 %v2483, 7
        %v2485 = vsub.s32 7, %v2484
        %v2486 = vrot.slane %v852, %v2485
        %2488 = vrot.lane.b32.xlu0 %v2486, 96
        %v2489 = vpop.permute.xlu0 %2488
        %v2491 = vmul.f32 %v2482, %v2489
        %v2492 = vlaneseq
        %v2493 = vshrl.u32 %v2492, 7
        %v2494 = vsub.s32 7, %v2493
        %v2495 = vrot.slane %v853, %v2494
        %2497 = vrot.lane.b32.xlu0 %v2495, 96
        %v2498 = vpop.permute.xlu0 %2497
        %v2500 = vmul.f32 %v2339, %v2498
        %2501 = vrot.lane.b32.xlu0 %v2500, 32
        %v2502 = vpop.permute.xlu0 %2501
        %v2503 = vsel %vm765, %v2502, %v2500
        %2504 = vrot.lane.b32.xlu0 %v2503, 32
        %v2505 = vpop.permute.xlu0 %2504
        %v2506 = vsel %vm765, %v2505, %v2500
        %2508 = vrot.lane.b32.xlu0 %v2506, 124
        %v2509 = vpop.permute.xlu0 %2508
        %2511 = vrot.lane.b32.xlu0 %v2506, 100
        %v2512 = vpop.permute.xlu0 %2511
        %v2514 = vsel %vm773, %v2509, %v2512
        %v2515 = vadd.f32 %v2500, %v2514
        %2516 = vrot.lane.b32.xlu0 %v2515, 32
        %v2517 = vpop.permute.xlu0 %2516
        %v2518 = vsel %vm765, %v2517, %v2515
        %2519 = vrot.lane.b32.xlu0 %v2518, 32
        %v2520 = vpop.permute.xlu0 %2519
        %v2521 = vsel %vm765, %v2520, %v2515
        %2523 = vrot.lane.b32.xlu0 %v2521, 126
        %v2524 = vpop.permute.xlu0 %2523
        %2526 = vrot.lane.b32.xlu0 %v2521, 98
        %v2527 = vpop.permute.xlu0 %2526
        %v2529 = vsel %vm798, %v2524, %v2527
        %v2530 = vadd.f32 %v2515, %v2529
        %2531 = vrot.lane.b32.xlu0 %v2530, 32
        %v2532 = vpop.permute.xlu0 %2531
        %v2533 = vsel %vm765, %v2532, %v2530
        %2534 = vrot.lane.b32.xlu0 %v2533, 32
        %v2535 = vpop.permute.xlu0 %2534
        %v2536 = vsel %vm765, %v2535, %v2530
        %2538 = vrot.lane.b32.xlu0 %v2536, 127
        %v2539 = vpop.permute.xlu0 %2538
        %2541 = vrot.lane.b32.xlu0 %v2536, 97
        %v2542 = vpop.permute.xlu0 %2541
        %v2544 = vsel %vm823, %v2539, %v2542
        %v2545 = vadd.f32 %v2530, %v2544
        %v2546 = vlaneseq
        %v2547 = vshrl.u32 %v2546, 7
        %v2548 = vsub.s32 7, %v2547
        %v2549 = vrot.slane %v733, %v2548
        %v2550 = vmul.f32 %v2339, %v2549
        %v2551 = vlaneseq
        %v2552 = vshrl.u32 %v2551, 7
        %v2553 = vsub.s32 7, %v2552
        %v2554 = vrot.slane %v854, %v2553
        %2556 = vrot.lane.b32.xlu0 %v2554, 96
        %v2557 = vpop.permute.xlu0 %2556
        %v2559 = vmul.f32 %v2545, %v2557
        %v2560 = vadd.f32 %v2550, %v2559
        %v2561 = vadd.f32 %v2560, %v2491
        %v2562 = vmul.f32 %v2561, %v2432
        %2563 = vrot.lane.b32.xlu0 %v2562, 32
        %v2564 = vpop.permute.xlu0 %2563
        %v2565 = vsel %vm765, %v2564, %v2562
        %2566 = vrot.lane.b32.xlu0 %v2565, 32
        %v2567 = vpop.permute.xlu0 %2566
        %v2568 = vsel %vm765, %v2567, %v2562
        %2570 = vrot.lane.b32.xlu0 %v2568, 124
        %v2571 = vpop.permute.xlu0 %2570
        %2573 = vrot.lane.b32.xlu0 %v2568, 100
        %v2574 = vpop.permute.xlu0 %2573
        %v2576 = vsel %vm773, %v2571, %v2574
        %v2577 = vadd.f32 %v2562, %v2576
        %2578 = vrot.lane.b32.xlu0 %v2577, 32
        %v2579 = vpop.permute.xlu0 %2578
        %v2580 = vsel %vm765, %v2579, %v2577
        %2581 = vrot.lane.b32.xlu0 %v2580, 32
        %v2582 = vpop.permute.xlu0 %2581
        %v2583 = vsel %vm765, %v2582, %v2577
        %2585 = vrot.lane.b32.xlu0 %v2583, 126
        %v2586 = vpop.permute.xlu0 %2585
        %2588 = vrot.lane.b32.xlu0 %v2583, 98
        %v2589 = vpop.permute.xlu0 %2588
        %v2591 = vsel %vm798, %v2586, %v2589
        %v2592 = vadd.f32 %v2577, %v2591
        %2593 = vrot.lane.b32.xlu0 %v2592, 32
        %v2594 = vpop.permute.xlu0 %2593
        %v2595 = vsel %vm765, %v2594, %v2592
        %2596 = vrot.lane.b32.xlu0 %v2595, 32
        %v2597 = vpop.permute.xlu0 %2596
        %v2598 = vsel %vm765, %v2597, %v2592
        %2600 = vrot.lane.b32.xlu0 %v2598, 127
        %v2601 = vpop.permute.xlu0 %2600
        %2603 = vrot.lane.b32.xlu0 %v2598, 97
        %v2604 = vpop.permute.xlu0 %2603
        %v2606 = vsel %vm823, %v2601, %v2604
        %v2607 = vadd.f32 %v2592, %v2606
        %v2608 = vsel %vm531, %v2607, 0.0
        %v2609 = vadd.f32 %v2608, 0.0
        %v2610 = vsel %vm532, %v2607, 0.0
        %v2612 = vrot.slane %v2610, 1
        %v2614 = vadd.f32 %v2609, %v2612
        %v2615 = vsel %vm533, %v2607, 0.0
        %v2617 = vrot.slane %v2615, 2
        %v2619 = vadd.f32 %v2614, %v2617
        %v2620 = vsel %vm534, %v2607, 0.0
        %v2622 = vrot.slane %v2620, 3
        %v2624 = vadd.f32 %v2619, %v2622
        %v2625 = vsel %vm535, %v2607, 0.0
        %v2627 = vrot.slane %v2625, 4
        %v2629 = vadd.f32 %v2624, %v2627
        %v2630 = vsel %vm536, %v2607, 0.0
        %v2632 = vrot.slane %v2630, 5
        %v2634 = vadd.f32 %v2629, %v2632
        %v2635 = vsel %vm537, %v2607, 0.0
        %v2637 = vrot.slane %v2635, 6
        %v2639 = vadd.f32 %v2634, %v2637
        %v2640 = vsel %vm538, %v2607, 0.0
        %v2642 = vrot.slane %v2640, 7
        %v2644 = vadd.f32 %v2639, %v2642
        %vm2645 = vcmp.eq.s32.totalorder %v540, 7
        %v2646 = vlaneseq
        %v2647 = vshrl.u32 %v2646, 7
        %v2648 = vsub.s32 0, %v2647
        %v2649 = vrot.slane %v2644, %v2648
        %v2650 = vsel %vm2645, %v2649, %v2428
        %2651 = vrot.lane.b32.xlu0 %v2650, 32
        %v2652 = vpop.permute.xlu0 %2651
        %v2653 = vsel %vm765, %v2652, %v2650
        %2654 = vrot.lane.b32.xlu0 %v2653, 32
        %v2655 = vpop.permute.xlu0 %2654
        %v2656 = vsel %vm765, %v2655, %v2650
        %2658 = vrot.lane.b32.xlu0 %v2656, 124
        %v2659 = vpop.permute.xlu0 %2658
        %2661 = vrot.lane.b32.xlu0 %v2656, 100
        %v2662 = vpop.permute.xlu0 %2661
        %v2664 = vsel %vm773, %v2659, %v2662
        %v2665 = vadd.f32 %v2650, %v2664
        %2666 = vrot.lane.b32.xlu0 %v2665, 32
        %v2667 = vpop.permute.xlu0 %2666
        %v2668 = vsel %vm765, %v2667, %v2665
        %2669 = vrot.lane.b32.xlu0 %v2668, 32
        %v2670 = vpop.permute.xlu0 %2669
        %v2671 = vsel %vm765, %v2670, %v2665
        %2673 = vrot.lane.b32.xlu0 %v2671, 126
        %v2674 = vpop.permute.xlu0 %2673
        %2676 = vrot.lane.b32.xlu0 %v2671, 98
        %v2677 = vpop.permute.xlu0 %2676
        %v2679 = vsel %vm798, %v2674, %v2677
        %v2680 = vadd.f32 %v2665, %v2679
        %2681 = vrot.lane.b32.xlu0 %v2680, 32
        %v2682 = vpop.permute.xlu0 %2681
        %v2683 = vsel %vm765, %v2682, %v2680
        %2684 = vrot.lane.b32.xlu0 %v2683, 32
        %v2685 = vpop.permute.xlu0 %2684
        %v2686 = vsel %vm765, %v2685, %v2680
        %2688 = vrot.lane.b32.xlu0 %v2686, 127
        %v2689 = vpop.permute.xlu0 %2688
        %2691 = vrot.lane.b32.xlu0 %v2686, 97
        %v2692 = vpop.permute.xlu0 %2691
        %v2694 = vsel %vm823, %v2689, %v2692
        %v2695 = vadd.f32 %v2680, %v2694
        %v2696 = vmul.f32 %v2695, 0.125
        %v2697 = vsub.f32 %v2650, %v2696
        %v2698 = vmul.f32 %v2697, %v2697
        %2699 = vrot.lane.b32.xlu0 %v2698, 32
        %v2700 = vpop.permute.xlu0 %2699
        %v2701 = vsel %vm765, %v2700, %v2698
        %2702 = vrot.lane.b32.xlu0 %v2701, 32
        %v2703 = vpop.permute.xlu0 %2702
        %v2704 = vsel %vm765, %v2703, %v2698
        %2706 = vrot.lane.b32.xlu0 %v2704, 124
        %v2707 = vpop.permute.xlu0 %2706
        %2709 = vrot.lane.b32.xlu0 %v2704, 100
        %v2710 = vpop.permute.xlu0 %2709
        %v2712 = vsel %vm773, %v2707, %v2710
        %v2713 = vadd.f32 %v2698, %v2712
        %2714 = vrot.lane.b32.xlu0 %v2713, 32
        %v2715 = vpop.permute.xlu0 %2714
        %v2716 = vsel %vm765, %v2715, %v2713
        %2717 = vrot.lane.b32.xlu0 %v2716, 32
        %v2718 = vpop.permute.xlu0 %2717
        %v2719 = vsel %vm765, %v2718, %v2713
        %2721 = vrot.lane.b32.xlu0 %v2719, 126
        %v2722 = vpop.permute.xlu0 %2721
        %2724 = vrot.lane.b32.xlu0 %v2719, 98
        %v2725 = vpop.permute.xlu0 %2724
        %v2727 = vsel %vm798, %v2722, %v2725
        %v2728 = vadd.f32 %v2713, %v2727
        %2729 = vrot.lane.b32.xlu0 %v2728, 32
        %v2730 = vpop.permute.xlu0 %2729
        %v2731 = vsel %vm765, %v2730, %v2728
        %2732 = vrot.lane.b32.xlu0 %v2731, 32
        %v2733 = vpop.permute.xlu0 %2732
        %v2734 = vsel %vm765, %v2733, %v2728
        %2736 = vrot.lane.b32.xlu0 %v2734, 127
        %v2737 = vpop.permute.xlu0 %2736
        %2739 = vrot.lane.b32.xlu0 %v2734, 97
        %v2740 = vpop.permute.xlu0 %2739
        %v2742 = vsel %vm823, %v2737, %v2740
        %v2743 = vadd.f32 %v2728, %v2742
        %v2744 = vmul.f32 %v2743, 0.125
        %v2745 = vadd.f32 %v2744, 8e-05
        %v2746 = vrsqrt.pop %v2745
        %v2747 = vmul.f32 %v2697, %v2746
        %v2748 = vld [vmem:[#allocation11] sm:$0x1]
        %v2750 = vlaneseq
        %v2751 = vshrl.u32 %v2750, 7
        %v2752 = vsub.s32 0, %v2751
        %v2753 = vrot.slane %v2748, %v2752
        %v2755 = vmul.f32 %v2747, %v2753
        %v2756 = vld [vmem:[#allocation13] sm:$0x1]
        %v2758 = vlaneseq
        %v2759 = vshrl.u32 %v2758, 7
        %v2760 = vsub.s32 0, %v2759
        %v2761 = vrot.slane %v2756, %v2760
        %v2763 = vadd.f32 %v2755, %v2761
        %2765 = vrot.lane.b32.xlu0 %v852, 96
        %v2766 = vpop.permute.xlu0 %2765
        %v2768 = vmul.f32 %v629, %v2766
        %v2769 = vld [vmem:[#allocation10] sm:$0x1]
        %v2771 = vlaneseq
        %v2772 = vshrl.u32 %v2771, 7
        %v2773 = vsub.s32 0, %v2772
        %v2774 = vrot.slane %v2769, %v2773
        %v2776 = vmul.f32 %v2768, %v2774
        %2777 = vrot.lane.b32.xlu0 %v2776, 32
        %v2778 = vpop.permute.xlu0 %2777
        %v2779 = vsel %vm765, %v2778, %v2776
        %2780 = vrot.lane.b32.xlu0 %v2779, 32
        %v2781 = vpop.permute.xlu0 %2780
        %v2782 = vsel %vm765, %v2781, %v2776
        %2784 = vrot.lane.b32.xlu0 %v2782, 124
        %v2785 = vpop.permute.xlu0 %2784
        %2787 = vrot.lane.b32.xlu0 %v2782, 100
        %v2788 = vpop.permute.xlu0 %2787
        %v2790 = vsel %vm773, %v2785, %v2788
        %v2791 = vadd.f32 %v2776, %v2790
        %2792 = vrot.lane.b32.xlu0 %v2791, 32
        %v2793 = vpop.permute.xlu0 %2792
        %v2794 = vsel %vm765, %v2793, %v2791
        %2795 = vrot.lane.b32.xlu0 %v2794, 32
        %v2796 = vpop.permute.xlu0 %2795
        %v2797 = vsel %vm765, %v2796, %v2791
        %2799 = vrot.lane.b32.xlu0 %v2797, 126
        %v2800 = vpop.permute.xlu0 %2799
        %2802 = vrot.lane.b32.xlu0 %v2797, 98
        %v2803 = vpop.permute.xlu0 %2802
        %v2805 = vsel %vm798, %v2800, %v2803
        %v2806 = vadd.f32 %v2791, %v2805
        %2807 = vrot.lane.b32.xlu0 %v2806, 32
        %v2808 = vpop.permute.xlu0 %2807
        %v2809 = vsel %vm765, %v2808, %v2806
        %2810 = vrot.lane.b32.xlu0 %v2809, 32
        %v2811 = vpop.permute.xlu0 %2810
        %v2812 = vsel %vm765, %v2811, %v2806
        %2814 = vrot.lane.b32.xlu0 %v2812, 127
        %v2815 = vpop.permute.xlu0 %2814
        %2817 = vrot.lane.b32.xlu0 %v2812, 97
        %v2818 = vpop.permute.xlu0 %2817
        %v2820 = vsel %vm823, %v2815, %v2818
        %v2821 = vadd.f32 %v2806, %v2820
        %2822 = vrot.lane.b32.xlu0 %v629, 64
        %v2823 = vpop.permute.xlu0 %2822
        %v2825 = vmul.f32 %v2821, %v2823
        %v2826 = vadd.f32 %v2763, %v2825
        %2828 = vrot.lane.b32.xlu0 %v712, 64
        %v2829 = vpop.permute.xlu0 %2828
        %v2831 = vmul.f32 %v2826, %v2829
        %v2832 = vpack.c.bf16 %v2831, %v2831
        %v2833 = vld [vmem:[#allocation14] sm:$0xf]
        %v2834 = vld [vmem:[#allocation14 + $0x4] sm:$0xf]
        %v2835 = vld [vmem:[#allocation14 + $0x8] sm:$0xf]
        %v2836 = vld [vmem:[#allocation14 + $0xc] sm:$0xf]
        %v2841 = vunpack.c.l.b16 %v2833
        %v2842 = vunpack.c.l.b16 %v2834
        %v2843 = vunpack.c.l.b16 %v2835
        %v2844 = vunpack.c.l.b16 %v2836
        %v2845 = vpack.c.b16 %v2842, %v2841
        %v2846 = vpack.c.b16 %v2844, %v2843
        %v2850 = vsel %vm555, %v2832, 0
        %2852 = vmatprep.subr.bf16.mxu0 0
        %2853 = vmatpush1.bf16.msra.mxu0 0
        %2854 = vmatprep.subr.bf16.mxu0 0
        %2855 = vmatpush1.bf16.msra.mxu0 0
        %2856 = vmatprep.subr.bf16.mxu0 0
        %2857 = vmatpush1.bf16.msra.mxu0 0
        %2858 = vmatprep.subr.bf16.mxu0 0
        %2859 = vmatpush1.bf16.msra.mxu0 0
        %2860 = vmatprep.subr.bf16.mxu0 0
        %2861 = vmatpush1.bf16.msra.mxu0 0
        %2862 = vmatprep.subr.bf16.mxu0 0
        %2863 = vmatpush1.bf16.msra.mxu0 0
        %2864 = vmatprep.subr.bf16.mxu0 0
        %2865 = vmatpush1.bf16.msra.mxu0 %v2846
        %2866 = vmatprep.subr.bf16.mxu0 0
        %2867 = vmatpush1.bf16.msra.mxu0 %v2845
        %2868 = vmatprep.subr.bf16.mxu0 0
        %2869 = vmatpush2.bf16.msra.mxu0 0
        %2870 = vmatprep.subr.bf16.mxu0 0
        %2871 = vmatpush2.bf16.msra.mxu0 0
        %2872 = vmatprep.subr.bf16.mxu0 0
        %2873 = vmatpush2.bf16.msra.mxu0 0
        %2874 = vmatprep.subr.bf16.mxu0 0
        %2875 = vmatpush2.bf16.msra.mxu0 0
        %2876 = vmatprep.subr.bf16.mxu0 0
        %2877 = vmatpush2.bf16.msra.mxu0 0
        %2878 = vmatprep.subr.bf16.mxu0 0
        %2879 = vmatpush2.bf16.msra.mxu0 0
        %2880 = vmatprep.subr.bf16.mxu0 0
        %2881 = vmatpush2.bf16.msra.mxu0 0
        %2882 = vmatprep.subr.bf16.mxu0 0
        %2883 = vmatpush2.bf16.msra.mxu0 0
        %2884 = vmatprep.mubr.bf16.mxu0 0
        %2885 = vmatmul.mubr.bf16.gmra.mxu0 %v2850
        %v2886 = vpop.f32.mrf.mxu0
        %v2887 = vadd.f32 0.0, %v2886
        %v2888 = vpop.f32.mrf.mxu0
        %v2889 = vpop.f32.mrf.mxu0
        %v2890 = vpop.f32.mrf.mxu0
        %2891 = vdwg.mxu0
        %2892 = vst.msk [vmem:[%s484] sm:$0xff] %vm555, %v2887
        %s2893 = sand.u32 %s274, 1
        %s2894 = scalar_lea.sflag [#allocation4], %s2893
        %s2895 = sand.u32 %s274, 1
        %s2896 = smul.addr %s2895, 8
        %s2897 = scalar_lea.vmem [#allocation16], %s2896
        // Predicated region
        $region97: #{rwkv7_forward.1} parent=63 // pred_check
          %p2898 = pneg %p284
        $region98: #{rwkv7_forward.1} parent=63 // pred_check_branch
          %2900 = sbr.rel (%p2898) target = $region100
        $region99: #{rwkv7_forward.1} parent=63 // pred_region
          %s2902 = ssub.s32 128, 128
          %2903 = vsyncadd %s2894, %s2902
          %s2904 = smul.addr %s30, 128
          %s2905 = scalar_lea.hbm %s11, %s2904
          %s2907 = sshll.u32 %s2897, 4
          %s2908 = int_to_ptr.vmem [resolvable:$true] %s2907
          %2910 = dma.vmem_to_hbm [thread:$0]  %s2908, 128, %s2905, %s2894
        $region100: #{rwkv7_forward.1} parent=63 // pred_fallthru
          _
      $region64: #{rwkv7_forward.1} parent=5 // pred_fallthru
        _
      %p2911 = scmp.le.s32.totalorder 2, %s25
      // Predicated region
      $region101: #{rwkv7_forward.1} parent=5 // pred_check
        %p2912 = pneg %p2911
      $region102: #{rwkv7_forward.1} parent=5 // pred_check_branch
        %2914 = sbr.rel (%p2912) target = $region104
      $region103: #{rwkv7_forward.1} parent=5 // pred_region
        %s2915 = ssub.s32 %s25, 2
        // Predicated region
        $region105: #{rwkv7_forward.1} parent=103 // pred_check
          %p2916 = pneg %p290
        $region106: #{rwkv7_forward.1} parent=103 // pred_check_branch
          %2918 = sbr.rel (%p2916) target = $region108
        $region107: #{rwkv7_forward.1} parent=103 // pred_region
          %s2919 = sand.u32 %s275, 1
          %s2920 = scalar_lea.sflag [#allocation4], %s2919
          %s2921 = sand.u32 %s275, 1
          %s2922 = smul.addr %s2921, 8
          %s2923 = scalar_lea.vmem [#allocation16], %s2922
          %2924 = dma.done %s2920, 128
        $region108: #{rwkv7_forward.1} parent=103 // pred_fallthru
          _
      $region104: #{rwkv7_forward.1} parent=5 // pred_fallthru
        _
    $region6: #{rwkv7_forward.1} parent=1 // loop_footer
      %s29 = sadd.s32 1, %s25
    $region7: #{rwkv7_forward.1} parent=1 // loop_footer_branch
      %24 = sbr.rel target = $region3
    $region8: #{rwkv7_forward.1} parent=1 // loop_exit
      _
    %2925 = vsyncpa [#allocation3], 1
    %s2926 = scalar_lea.sflag [#allocation3], 1
    %2927 = vsyncpa %s2926, 1
    %2928 = vsyncpa [#allocation6], 1
    %2929 = vsyncpa [#allocation9], 1
    %2930 = vsyncpa [#allocation12], 1
    %2931 = vsyncpa [#allocation15], 1
    %2932 = vsyncpa [#allocation4], 1
    %s2933 = scalar_lea.sflag [#allocation4], 1
    %2934 = vsyncpa %s2933, 1

</llo_original>
